<compile_context>
chip_gen: v6e
topology: v6e:2x2x1
jax: 0.10.0
libtpu: 0.0.40
codegen_flags: <defaults>
</compile_context>

<pallas_src>
import jax
import jax.numpy as jnp
import numpy as np
from jax.experimental import pallas as pl
from jax.experimental.pallas import tpu as pltpu

LANE = 128
BN_EPS = 1e-5
VMEM_LIMIT_BYTES = 32 * 1024 * 1024   # explicit: > v5e's 16 MiB default, <= v7x VMEM


def _round_up(x, m):
    return (x + m - 1) // m * m


# -----------------------------------------------------------------------------
# Pallas kernel: 2x2 / stride-1 conv as 4 shifted-view GEMMs + fused epilogue.
# One grid step = one image; slab, folded weight and the f32 accumulator all
# live in VMEM, so patch overlap is reused from VMEM (no im2col in HBM).
# -----------------------------------------------------------------------------
def _make_conv_kernel(mode, ws, oh, n_pad):
    m_rows = oh * ws
    offs = (0, 1, ws, ws + 1)          # taps (bi, bj) = (0,0),(0,1),(1,0),(1,1)

    def _accumulate(a_ref, w_ref):
        acc = jnp.zeros((m_rows, n_pad), jnp.float32)
        for t, off in enumerate(offs):
            a = a_ref[pl.ds(off, m_rows), :]
            acc = acc + jnp.dot(a, w_ref[t], preferred_element_type=jnp.float32)
        return acc

    if mode == "stats":
        def kernel(a_ref, w_ref, mask_ref, o_ref, st_ref):
            acc = _accumulate(a_ref, w_ref)
            o_ref[...] = acc.astype(o_ref.dtype)
            yv = acc * mask_ref[...]                     # zero the halo/junk rows
            st_ref[...] = jnp.concatenate(
                [jnp.sum(yv, axis=0, keepdims=True),
                 jnp.sum(yv * acc, axis=0, keepdims=True)], axis=0)
        return kernel

    def kernel(a_ref, w_ref, o_ref):
        acc = _accumulate(a_ref, w_ref)
        if mode == "leaky":
            y = jnp.maximum(acc, 0.2 * acc)
        else:                                            # "sigmoid"
            y = 1.0 / (1.0 + jnp.exp(-acc))
        o_ref[...] = y.astype(o_ref.dtype)

    return kernel


def conv_taps(flat, w_folded, *, ws, oh, ow, mode):
    """Per-image 4-tap GEMM conv.

    flat:     (N, m_slab, Kc) bf16 flattened slab (row/channel zero-padded)
    w_folded: (4, Kc, Cout_pad) bf16, VMEM-resident across the grid
    Returns (N, oh*ws, Cout_pad); row r = oh*ws + ow, rows with ow == ws-1 are
    halo junk and are dropped by the caller.  mode == "stats" additionally
    returns per-image (sum, sum^2) over the valid rows, shape (N, 2, Cout_pad).
    """
    n_img, m_slab, kc = flat.shape
    n_pad = w_folded.shape[-1]
    m_rows = oh * ws

    kernel = _make_conv_kernel(mode, ws, oh, n_pad)
    a_spec = pl.BlockSpec((None, m_slab, kc), lambda n: (n, 0, 0))
    w_spec = pl.BlockSpec((4, kc, n_pad), lambda n: (0, 0, 0))      # fetched once
    o_dtype = jnp.float32 if mode == "sigmoid" else jnp.bfloat16
    o_spec = pl.BlockSpec((None, m_rows, n_pad), lambda n: (n, 0, 0))
    cparams = pltpu.CompilerParams(
        dimension_semantics=("parallel",),
        vmem_limit_bytes=VMEM_LIMIT_BYTES)

    if mode == "stats":
        mask = jnp.asarray(
            (np.arange(m_rows) % ws < ow).astype(np.float32).reshape(m_rows, 1))
        return pl.pallas_call(
            kernel,
            out_shape=(jax.ShapeDtypeStruct((n_img, m_rows, n_pad), o_dtype),
                       jax.ShapeDtypeStruct((n_img, 2, n_pad), jnp.float32)),
            grid=(n_img,),
            in_specs=[a_spec, w_spec,
                      pl.BlockSpec((m_rows, 1), lambda n: (0, 0))],
            out_specs=(o_spec,
                       pl.BlockSpec((None, 2, n_pad), lambda n: (n, 0, 0))),
            compiler_params=cparams,
        )(flat, w_folded, mask)

    return pl.pallas_call(
        kernel,
        out_shape=jax.ShapeDtypeStruct((n_img, m_rows, n_pad), o_dtype),
        grid=(n_img,),
        in_specs=[a_spec, w_spec],
        out_specs=o_spec,
        compiler_params=cparams,
    )(flat, w_folded)


# -----------------------------------------------------------------------------
# JAX-side prep (single fused XLA copy per layer): pad + space-to-depth +
# flatten + channel pad; and weight folding to the matching (4, Kc, Cout) form.
# -----------------------------------------------------------------------------
def _prep_strided(x_nhwc):
    """Input prep for the 4x4 / stride-2 / pad-1 convs."""
    n, h, w, c = x_nhwc.shape
    assert h % 2 == 0 and w % 2 == 0, "DCGAN discriminator expects even H/W"
    hs, ws = h // 2 + 1, w // 2 + 1
    oh, ow = h // 2, w // 2
    xp = jnp.pad(x_nhwc, ((0, 0), (1, 1), (1, 1), (0, 0)))
    xs = xp.reshape(n, hs, 2, ws, 2, c)
    xs = jnp.transpose(xs, (0, 1, 3, 2, 4, 5)).reshape(n, hs * ws, 4 * c)
    kc = _round_up(4 * c, LANE)
    m_slab = _round_up(hs * ws + 1, 8)
    flat = jnp.pad(xs, ((0, 0), (0, m_slab - hs * ws), (0, kc - 4 * c)))
    return flat.astype(jnp.bfloat16), oh, ow, ws


def _prep_unit(x_nhwc):
    """Input prep for the final 2x2 / stride-1 / pad-0 conv (no s2d needed)."""
    n, h, w, c = x_nhwc.shape
    hs, ws = h, w
    oh, ow = h - 1, w - 1
    kc = _round_up(c, LANE)
    m_slab = _round_up(hs * ws + 1, 8)
    flat = jnp.pad(x_nhwc.reshape(n, hs * ws, c),
                   ((0, 0), (0, m_slab - hs * ws), (0, kc - c)))
    return flat.astype(jnp.bfloat16), oh, ow, ws


def _fold_weight_strided(w_oihw, kc, n_pad):
    """(Cout, Cin, 4, 4) -> (4, Kc, Cout_pad) matching the s2d slab K order."""
    cout, cin = w_oihw.shape[0], w_oihw.shape[1]
    w = jnp.transpose(w_oihw, (2, 3, 1, 0))             # (di, dj, Cin, Cout)
    w = w.reshape(2, 2, 2, 2, cin, cout)                 # (bi, ri, bj, rj, ., .)
    w = jnp.transpose(w, (0, 2, 1, 3, 4, 5))             # (bi, bj, ri, rj, ., .)
    w = w.reshape(4, 4 * cin, cout)                       # tap = 2*bi + bj
    w = jnp.pad(w, ((0, 0), (0, kc - 4 * cin), (0, n_pad - cout)))
    return w.astype(jnp.bfloat16)


def _fold_weight_unit(w_oihw, kc, n_pad):
    """(Cout, Cin, 2, 2) -> (4, Kc, Cout_pad)."""
    cout, cin = w_oihw.shape[0], w_oihw.shape[1]
    w = jnp.transpose(w_oihw, (2, 3, 1, 0)).reshape(4, cin, cout)
    w = jnp.pad(w, ((0, 0), (0, kc - cin), (0, n_pad - cout)))
    return w.astype(jnp.bfloat16)


# -----------------------------------------------------------------------------
# Full DCGAN_Discriminator forward
# -----------------------------------------------------------------------------
def dcgan_discriminator_forward(x_nchw, params):
    x = jnp.transpose(x_nchw, (0, 2, 3, 1))              # NCHW -> NHWC
    n = x.shape[0]

    # Layer 1: Conv(nc, ndf, 4, 2, 1) + LeakyReLU(0.2), fused in the kernel.
    flat, oh, ow, ws = _prep_strided(x)
    cout = params["w1"].shape[0]
    n_pad = _round_up(cout, LANE)
    wt = _fold_weight_strided(params["w1"], flat.shape[-1], n_pad)
    y = conv_taps(flat, wt, ws=ws, oh=oh, ow=ow, mode="leaky")
    x = y.reshape(n, oh, ws, n_pad)[:, :, :ow, :cout]    # drop halo col + pad ch

    # Layers 2-4: Conv(4,2,1) + BatchNorm (batch stats, training mode) + Leaky.
    # Kernel writes pre-BN rows + per-image (sum, sum^2); the affine + Leaky is
    # folded into the next layer's prep copy (fused by XLA, no extra HBM pass).
    for wk, gk, bk in (("w2", "g2", "b2"), ("w3", "g3", "b3"), ("w4", "g4", "b4")):
        flat, oh, ow, ws = _prep_strided(x)
        cout = params[wk].shape[0]
        n_pad = _round_up(cout, LANE)
        wt = _fold_weight_strided(params[wk], flat.shape[-1], n_pad)
        y, st = conv_taps(flat, wt, ws=ws, oh=oh, ow=ow, mode="stats")
        st = jnp.sum(st, axis=0)                          # combine per-image partials
        cnt = jnp.float32(n * oh * ow)
        mean = st[0, :cout] / cnt
        var = st[1, :cout] / cnt - mean * mean            # biased var (PyTorch BN)
        scale = params[gk] / jnp.sqrt(var + BN_EPS)
        shift = params[bk] - mean * scale
        yv = y.reshape(n, oh, ws, n_pad)[:, :, :ow, :cout].astype(jnp.float32)
        yv = yv * scale + shift
        x = jnp.maximum(yv, 0.2 * yv)                     # LeakyReLU(0.2)

    # Layer 5: Conv(ndf*8, 1, 2, 1, 0) + Sigmoid, fused in the kernel.
    flat, oh, ow, ws = _prep_unit(x)
    cout = params["w5"].shape[0]
    n_pad = _round_up(cout, LANE)
    wt = _fold_weight_unit(params["w5"], flat.shape[-1], n_pad)
    y = conv_taps(flat, wt, ws=ws, oh=oh, ow=ow, mode="sigmoid")
    out = y.reshape(n, oh, ws, n_pad)[:, :, :ow, :cout]
    return jnp.transpose(out, (0, 3, 1, 2)).astype(jnp.float32)   # (N, 1, 1, 1)


# -----------------------------------------------------------------------------
# Deterministic parameter init (DCGAN-style: N(0, 0.02) conv weights)
# -----------------------------------------------------------------------------
def init_params(key, nc, ndf):
    ks = jax.random.split(key, 11)

    def w(k, co, ci, kh, kw):
        return (0.02 * jax.random.normal(k, (co, ci, kh, kw))).astype(jnp.float32)

    return {
        "w1": w(ks[0], ndf, nc, 4, 4),
        "w2": w(ks[1], ndf * 2, ndf, 4, 4),
        "w3": w(ks[2], ndf * 4, ndf * 2, 4, 4),
        "w4": w(ks[3], ndf * 8, ndf * 4, 4, 4),
        "w5": w(ks[4], 1, ndf * 8, 2, 2),
        "g2": 1.0 + 0.02 * jax.random.normal(ks[5], (ndf * 2,)).astype(jnp.float32),
        "b2": 0.02 * jax.random.normal(ks[6], (ndf * 2,)).astype(jnp.float32),
        "g3": 1.0 + 0.02 * jax.random.normal(ks[7], (ndf * 4,)).astype(jnp.float32),
        "b3": 0.02 * jax.random.normal(ks[8], (ndf * 4,)).astype(jnp.float32),
        "g4": 1.0 + 0.02 * jax.random.normal(ks[9], (ndf * 8,)).astype(jnp.float32),
        "b4": 0.02 * jax.random.normal(ks[10], (ndf * 8,)).astype(jnp.float32),
    }


if __name__ == "__main__":
    NC, NDF = 3, 8           # small ndf for a quick run; nc=3 as in the module
    BATCH, SPATIAL = 2, 32   # 32x32 input -> 16 -> 8 -> 4 -> 2 -> 1

    key = jax.random.PRNGKey(0)
    k_in, k_par = jax.random.split(key)
    x = jax.random.normal(k_in, (BATCH, NC, SPATIAL, SPATIAL), dtype=jnp.float32)
    params = init_params(k_par, NC, NDF)

    fwd = jax.jit(dcgan_discriminator_forward)
    out = jax.block_until_ready(fwd(x, params))

    assert out.shape == (BATCH, 1, 1, 1), out.shape
    assert bool(jnp.all(jnp.isfinite(out)))
    assert bool(jnp.all((out >= 0.0) & (out <= 1.0)))
    print("KERNEL_OK")
</pallas_src>

<mosaic_0001>
module attributes {stable_mosaic.version = 11 : i64} {
  func.func @kernel(%arg0: i32, %arg1: memref<1x296x128xbf16, #tpu.memory_space<vmem>>, %arg2: memref<4x128x128xbf16, #tpu.memory_space<vmem>>, %arg3: memref<1x272x128xbf16, #tpu.memory_space<vmem>>) attributes {dimension_semantics = [#tpu.dimension_semantics<parallel>], iteration_bounds = array<i64: 2>, scalar_prefetch = 0 : i64, scratch_operands = 0 : i64, tpu.core_type = #tpu.core_type<tc>, window_params = [{transform_indices = @transform_0, window_bounds = array<i64: 1, 296, 128>}, {pipeline_mode = #tpu.pipeline_mode<synchronous>, transform_indices = @transform_1, window_bounds = array<i64: 4, 128, 128>}, {transform_indices = @transform_2, window_bounds = array<i64: 1, 272, 128>}]} {
    %cst = arith.constant 0.000000e+00 : f32
    %0 = vector.broadcast %cst : f32 to vector<272x128xf32>
    %c0 = arith.constant 0 : index
    %c0_0 = arith.constant 0 : index
    %c0_1 = arith.constant 0 : index
    %1 = vector.load %arg1[%c0, %c0_0, %c0_1] : memref<1x296x128xbf16, #tpu.memory_space<vmem>>, vector<1x272x128xbf16>
    %2 = vector.shape_cast %1 : vector<1x272x128xbf16> to vector<272x128xbf16>
    %c0_2 = arith.constant 0 : index
    %c0_3 = arith.constant 0 : index
    %c0_4 = arith.constant 0 : index
    %3 = vector.load %arg2[%c0_2, %c0_3, %c0_4] : memref<4x128x128xbf16, #tpu.memory_space<vmem>>, vector<1x128x128xbf16>
    %4 = vector.shape_cast %3 : vector<1x128x128xbf16> to vector<128x128xbf16>
    %cst_5 = arith.constant dense<0.000000e+00> : vector<272x128xf32>
    %5 = tpu.matmul %2, %4, %cst_5 {dimension_numbers = #tpu.dot_dimension_numbers<[1], [0], [0], [1], [0, 0, 1, 1], [], []>} : vector<272x128xbf16>, vector<128x128xbf16>, vector<272x128xf32> -> vector<272x128xf32>
    %6 = arith.addf %0, %5 : vector<272x128xf32>
    %c0_6 = arith.constant 0 : index
    %c1 = arith.constant 1 : index
    %c0_7 = arith.constant 0 : index
    %7 = vector.load %arg1[%c0_6, %c1, %c0_7] : memref<1x296x128xbf16, #tpu.memory_space<vmem>>, vector<1x272x128xbf16>
    %8 = vector.shape_cast %7 : vector<1x272x128xbf16> to vector<272x128xbf16>
    %c1_8 = arith.constant 1 : index
    %c0_9 = arith.constant 0 : index
    %c0_10 = arith.constant 0 : index
    %9 = vector.load %arg2[%c1_8, %c0_9, %c0_10] : memref<4x128x128xbf16, #tpu.memory_space<vmem>>, vector<1x128x128xbf16>
    %10 = vector.shape_cast %9 : vector<1x128x128xbf16> to vector<128x128xbf16>
    %cst_11 = arith.constant dense<0.000000e+00> : vector<272x128xf32>
    %11 = tpu.matmul %8, %10, %cst_11 {dimension_numbers = #tpu.dot_dimension_numbers<[1], [0], [0], [1], [0, 0, 1, 1], [], []>} : vector<272x128xbf16>, vector<128x128xbf16>, vector<272x128xf32> -> vector<272x128xf32>
    %12 = arith.addf %6, %11 : vector<272x128xf32>
    %c0_12 = arith.constant 0 : index
    %c17 = arith.constant 17 : index
    %c0_13 = arith.constant 0 : index
    %13 = vector.load %arg1[%c0_12, %c17, %c0_13] : memref<1x296x128xbf16, #tpu.memory_space<vmem>>, vector<1x272x128xbf16>
    %14 = vector.shape_cast %13 : vector<1x272x128xbf16> to vector<272x128xbf16>
    %c2 = arith.constant 2 : index
    %c0_14 = arith.constant 0 : index
    %c0_15 = arith.constant 0 : index
    %15 = vector.load %arg2[%c2, %c0_14, %c0_15] : memref<4x128x128xbf16, #tpu.memory_space<vmem>>, vector<1x128x128xbf16>
    %16 = vector.shape_cast %15 : vector<1x128x128xbf16> to vector<128x128xbf16>
    %cst_16 = arith.constant dense<0.000000e+00> : vector<272x128xf32>
    %17 = tpu.matmul %14, %16, %cst_16 {dimension_numbers = #tpu.dot_dimension_numbers<[1], [0], [0], [1], [0, 0, 1, 1], [], []>} : vector<272x128xbf16>, vector<128x128xbf16>, vector<272x128xf32> -> vector<272x128xf32>
    %18 = arith.addf %12, %17 : vector<272x128xf32>
    %c0_17 = arith.constant 0 : index
    %c18 = arith.constant 18 : index
    %c0_18 = arith.constant 0 : index
    %19 = vector.load %arg1[%c0_17, %c18, %c0_18] : memref<1x296x128xbf16, #tpu.memory_space<vmem>>, vector<1x272x128xbf16>
    %20 = vector.shape_cast %19 : vector<1x272x128xbf16> to vector<272x128xbf16>
    %c3 = arith.constant 3 : index
    %c0_19 = arith.constant 0 : index
    %c0_20 = arith.constant 0 : index
    %21 = vector.load %arg2[%c3, %c0_19, %c0_20] : memref<4x128x128xbf16, #tpu.memory_space<vmem>>, vector<1x128x128xbf16>
    %22 = vector.shape_cast %21 : vector<1x128x128xbf16> to vector<128x128xbf16>
    %cst_21 = arith.constant dense<0.000000e+00> : vector<272x128xf32>
    %23 = tpu.matmul %20, %22, %cst_21 {dimension_numbers = #tpu.dot_dimension_numbers<[1], [0], [0], [1], [0, 0, 1, 1], [], []>} : vector<272x128xbf16>, vector<128x128xbf16>, vector<272x128xf32> -> vector<272x128xf32>
    %24 = arith.addf %18, %23 : vector<272x128xf32>
    %cst_22 = arith.constant 2.000000e-01 : f32
    %25 = vector.broadcast %cst_22 : f32 to vector<272x128xf32>
    %26 = arith.mulf %25, %24 : vector<272x128xf32>
    %27 = arith.maximumf %24, %26 : vector<272x128xf32>
    %28 = arith.truncf %27 : vector<272x128xf32> to vector<272x128xbf16>
    %c0_23 = arith.constant 0 : index
    %c0_24 = arith.constant 0 : index
    %c0_25 = arith.constant 0 : index
    %29 = vector.load %arg3[%c0_23, %c0_24, %c0_25] : memref<1x272x128xbf16, #tpu.memory_space<vmem>>, vector<1x272x128xbf16>
    %30 = vector.shape_cast %29 : vector<1x272x128xbf16> to vector<272x128xbf16>
    %31 = vector.shape_cast %28 : vector<272x128xbf16> to vector<1x272x128xbf16>
    tpu.vector_store %arg3[%c0_23, %c0_24, %c0_25], %31 {strides = array<i32>} : memref<1x272x128xbf16, #tpu.memory_space<vmem>>, vector<1x272x128xbf16>,
    return
  }
  func.func @transform_0(%arg0: i32) -> (i32, i32, i32) {
    %c0_i32 = arith.constant 0 : i32
    %c0_i32_0 = arith.constant 0 : i32
    %c0_i32_1 = arith.constant 0 : i32
    return %arg0, %c0_i32, %c0_i32_0 : i32, i32, i32
  }
  func.func @transform_1(%arg0: i32) -> (i32, i32, i32) {
    %c0_i32 = arith.constant 0 : i32
    %c0_i32_0 = arith.constant 0 : i32
    %c0_i32_1 = arith.constant 0 : i32
    %c0_i32_2 = arith.constant 0 : i32
    return %c0_i32, %c0_i32_0, %c0_i32_1 : i32, i32, i32
  }
  func.func @transform_2(%arg0: i32) -> (i32, i32, i32) {
    %c0_i32 = arith.constant 0 : i32
    %c0_i32_0 = arith.constant 0 : i32
    %c0_i32_1 = arith.constant 0 : i32
    return %arg0, %c0_i32, %c0_i32_0 : i32, i32, i32
  }
}

module attributes {stable_mosaic.version = 11 : i64} {
  func.func @kernel(%arg0: i32, %arg1: memref<1x88x128xbf16, #tpu.memory_space<vmem>>, %arg2: memref<4x128x128xbf16, #tpu.memory_space<vmem>>, %arg3: memref<72x1xf32, #tpu.memory_space<vmem>>, %arg4: memref<1x72x128xbf16, #tpu.memory_space<vmem>>, %arg5: memref<1x2x128xf32, #tpu.memory_space<vmem>>) attributes {dimension_semantics = [#tpu.dimension_semantics<parallel>], iteration_bounds = array<i64: 2>, scalar_prefetch = 0 : i64, scratch_operands = 0 : i64, tpu.core_type = #tpu.core_type<tc>, window_params = [{transform_indices = @transform_0, window_bounds = array<i64: 1, 88, 128>}, {pipeline_mode = #tpu.pipeline_mode<synchronous>, transform_indices = @transform_1, window_bounds = array<i64: 4, 128, 128>}, {pipeline_mode = #tpu.pipeline_mode<synchronous>, transform_indices = @transform_2, window_bounds = array<i64: 72, 1>}, {transform_indices = @transform_3, window_bounds = array<i64: 1, 72, 128>}, {transform_indices = @transform_4, window_bounds = array<i64: 1, 2, 128>}]} {
    %cst = arith.constant 0.000000e+00 : f32
    %0 = vector.broadcast %cst : f32 to vector<72x128xf32>
    %c0 = arith.constant 0 : index
    %c0_0 = arith.constant 0 : index
    %c0_1 = arith.constant 0 : index
    %1 = vector.load %arg1[%c0, %c0_0, %c0_1] : memref<1x88x128xbf16, #tpu.memory_space<vmem>>, vector<1x72x128xbf16>
    %2 = vector.shape_cast %1 : vector<1x72x128xbf16> to vector<72x128xbf16>
    %c0_2 = arith.constant 0 : index
    %c0_3 = arith.constant 0 : index
    %c0_4 = arith.constant 0 : index
    %3 = vector.load %arg2[%c0_2, %c0_3, %c0_4] : memref<4x128x128xbf16, #tpu.memory_space<vmem>>, vector<1x128x128xbf16>
    %4 = vector.shape_cast %3 : vector<1x128x128xbf16> to vector<128x128xbf16>
    %cst_5 = arith.constant dense<0.000000e+00> : vector<72x128xf32>
    %5 = tpu.matmul %2, %4, %cst_5 {dimension_numbers = #tpu.dot_dimension_numbers<[1], [0], [0], [1], [0, 0, 1, 1], [], []>} : vector<72x128xbf16>, vector<128x128xbf16>, vector<72x128xf32> -> vector<72x128xf32>
    %6 = arith.addf %0, %5 : vector<72x128xf32>
    %c0_6 = arith.constant 0 : index
    %c1 = arith.constant 1 : index
    %c0_7 = arith.constant 0 : index
    %7 = vector.load %arg1[%c0_6, %c1, %c0_7] : memref<1x88x128xbf16, #tpu.memory_space<vmem>>, vector<1x72x128xbf16>
    %8 = vector.shape_cast %7 : vector<1x72x128xbf16> to vector<72x128xbf16>
    %c1_8 = arith.constant 1 : index
    %c0_9 = arith.constant 0 : index
    %c0_10 = arith.constant 0 : index
    %9 = vector.load %arg2[%c1_8, %c0_9, %c0_10] : memref<4x128x128xbf16, #tpu.memory_space<vmem>>, vector<1x128x128xbf16>
    %10 = vector.shape_cast %9 : vector<1x128x128xbf16> to vector<128x128xbf16>
    %cst_11 = arith.constant dense<0.000000e+00> : vector<72x128xf32>
    %11 = tpu.matmul %8, %10, %cst_11 {dimension_numbers = #tpu.dot_dimension_numbers<[1], [0], [0], [1], [0, 0, 1, 1], [], []>} : vector<72x128xbf16>, vector<128x128xbf16>, vector<72x128xf32> -> vector<72x128xf32>
    %12 = arith.addf %6, %11 : vector<72x128xf32>
    %c0_12 = arith.constant 0 : index
    %c9 = arith.constant 9 : index
    %c0_13 = arith.constant 0 : index
    %13 = vector.load %arg1[%c0_12, %c9, %c0_13] : memref<1x88x128xbf16, #tpu.memory_space<vmem>>, vector<1x72x128xbf16>
    %14 = vector.shape_cast %13 : vector<1x72x128xbf16> to vector<72x128xbf16>
    %c2 = arith.constant 2 : index
    %c0_14 = arith.constant 0 : index
    %c0_15 = arith.constant 0 : index
    %15 = vector.load %arg2[%c2, %c0_14, %c0_15] : memref<4x128x128xbf16, #tpu.memory_space<vmem>>, vector<1x128x128xbf16>
    %16 = vector.shape_cast %15 : vector<1x128x128xbf16> to vector<128x128xbf16>
    %cst_16 = arith.constant dense<0.000000e+00> : vector<72x128xf32>
    %17 = tpu.matmul %14, %16, %cst_16 {dimension_numbers = #tpu.dot_dimension_numbers<[1], [0], [0], [1], [0, 0, 1, 1], [], []>} : vector<72x128xbf16>, vector<128x128xbf16>, vector<72x128xf32> -> vector<72x128xf32>
    %18 = arith.addf %12, %17 : vector<72x128xf32>
    %c0_17 = arith.constant 0 : index
    %c10 = arith.constant 10 : index
    %c0_18 = arith.constant 0 : index
    %19 = vector.load %arg1[%c0_17, %c10, %c0_18] : memref<1x88x128xbf16, #tpu.memory_space<vmem>>, vector<1x72x128xbf16>
    %20 = vector.shape_cast %19 : vector<1x72x128xbf16> to vector<72x128xbf16>
    %c3 = arith.constant 3 : index
    %c0_19 = arith.constant 0 : index
    %c0_20 = arith.constant 0 : index
    %21 = vector.load %arg2[%c3, %c0_19, %c0_20] : memref<4x128x128xbf16, #tpu.memory_space<vmem>>, vector<1x128x128xbf16>
    %22 = vector.shape_cast %21 : vector<1x128x128xbf16> to vector<128x128xbf16>
    %cst_21 = arith.constant dense<0.000000e+00> : vector<72x128xf32>
    %23 = tpu.matmul %20, %22, %cst_21 {dimension_numbers = #tpu.dot_dimension_numbers<[1], [0], [0], [1], [0, 0, 1, 1], [], []>} : vector<72x128xbf16>, vector<128x128xbf16>, vector<72x128xf32> -> vector<72x128xf32>
    %24 = arith.addf %18, %23 : vector<72x128xf32>
    %25 = arith.truncf %24 : vector<72x128xf32> to vector<72x128xbf16>
    %c0_22 = arith.constant 0 : index
    %c0_23 = arith.constant 0 : index
    %c0_24 = arith.constant 0 : index
    %26 = vector.load %arg4[%c0_22, %c0_23, %c0_24] : memref<1x72x128xbf16, #tpu.memory_space<vmem>>, vector<1x72x128xbf16>
    %27 = vector.shape_cast %26 : vector<1x72x128xbf16> to vector<72x128xbf16>
    %28 = vector.shape_cast %25 : vector<72x128xbf16> to vector<1x72x128xbf16>
    tpu.vector_store %arg4[%c0_22, %c0_23, %c0_24], %28 {strides = array<i32>} : memref<1x72x128xbf16, #tpu.memory_space<vmem>>, vector<1x72x128xbf16>,
    %c0_25 = arith.constant 0 : index
    %c0_26 = arith.constant 0 : index
    %29 = vector.load %arg3[%c0_25, %c0_26] : memref<72x1xf32, #tpu.memory_space<vmem>>, vector<72x1xf32>
    %30 = vector.broadcast %29 : vector<72x1xf32> to vector<72x128xf32>
    %31 = arith.mulf %24, %30 : vector<72x128xf32>
    %cst_27 = arith.constant dense<0.000000e+00> : vector<128xf32>
    %32 = vector.multi_reduction <add>, %31, %cst_27 [0] : vector<72x128xf32> to vector<128xf32>
    %33 = vector.shape_cast %32 : vector<128xf32> to vector<1x128xf32>
    %34 = arith.mulf %31, %24 : vector<72x128xf32>
    %cst_28 = arith.constant dense<0.000000e+00> : vector<128xf32>
    %35 = vector.multi_reduction <add>, %34, %cst_28 [0] : vector<72x128xf32> to vector<128xf32>
    %36 = vector.shape_cast %35 : vector<128xf32> to vector<1x128xf32>
    %37 = tpu.concatenate %33, %36 in 0 : vector<1x128xf32>, vector<1x128xf32> -> vector<2x128xf32>
    %c0_29 = arith.constant 0 : index
    %c0_30 = arith.constant 0 : index
    %c0_31 = arith.constant 0 : index
    %38 = vector.load %arg5[%c0_29, %c0_30, %c0_31] : memref<1x2x128xf32, #tpu.memory_space<vmem>>, vector<1x2x128xf32>
    %39 = vector.shape_cast %38 : vector<1x2x128xf32> to vector<2x128xf32>
    %40 = vector.shape_cast %37 : vector<2x128xf32> to vector<1x2x128xf32>
    tpu.vector_store %arg5[%c0_29, %c0_30, %c0_31], %40 {strides = array<i32>} : memref<1x2x128xf32, #tpu.memory_space<vmem>>, vector<1x2x128xf32>,
    return
  }
  func.func @transform_0(%arg0: i32) -> (i32, i32, i32) {
    %c0_i32 = arith.constant 0 : i32
    %c0_i32_0 = arith.constant 0 : i32
    %c0_i32_1 = arith.constant 0 : i32
    return %arg0, %c0_i32, %c0_i32_0 : i32, i32, i32
  }
  func.func @transform_1(%arg0: i32) -> (i32, i32, i32) {
    %c0_i32 = arith.constant 0 : i32
    %c0_i32_0 = arith.constant 0 : i32
    %c0_i32_1 = arith.constant 0 : i32
    %c0_i32_2 = arith.constant 0 : i32
    return %c0_i32, %c0_i32_0, %c0_i32_1 : i32, i32, i32
  }
  func.func @transform_2(%arg0: i32) -> (i32, i32) {
    %c0_i32 = arith.constant 0 : i32
    %c0_i32_0 = arith.constant 0 : i32
    %c0_i32_1 = arith.constant 0 : i32
    return %c0_i32, %c0_i32_0 : i32, i32
  }
  func.func @transform_3(%arg0: i32) -> (i32, i32, i32) {
    %c0_i32 = arith.constant 0 : i32
    %c0_i32_0 = arith.constant 0 : i32
    %c0_i32_1 = arith.constant 0 : i32
    return %arg0, %c0_i32, %c0_i32_0 : i32, i32, i32
  }
  func.func @transform_4(%arg0: i32) -> (i32, i32, i32) {
    %c0_i32 = arith.constant 0 : i32
    %c0_i32_0 = arith.constant 0 : i32
    %c0_i32_1 = arith.constant 0 : i32
    return %arg0, %c0_i32, %c0_i32_0 : i32, i32, i32
  }
}

module attributes {stable_mosaic.version = 11 : i64} {
  func.func @kernel(%arg0: i32, %arg1: memref<1x32x128xbf16, #tpu.memory_space<vmem>>, %arg2: memref<4x128x128xbf16, #tpu.memory_space<vmem>>, %arg3: memref<20x1xf32, #tpu.memory_space<vmem>>, %arg4: memref<1x20x128xbf16, #tpu.memory_space<vmem>>, %arg5: memref<1x2x128xf32, #tpu.memory_space<vmem>>) attributes {dimension_semantics = [#tpu.dimension_semantics<parallel>], iteration_bounds = array<i64: 2>, scalar_prefetch = 0 : i64, scratch_operands = 0 : i64, tpu.core_type = #tpu.core_type<tc>, window_params = [{transform_indices = @transform_0, window_bounds = array<i64: 1, 32, 128>}, {pipeline_mode = #tpu.pipeline_mode<synchronous>, transform_indices = @transform_1, window_bounds = array<i64: 4, 128, 128>}, {pipeline_mode = #tpu.pipeline_mode<synchronous>, transform_indices = @transform_2, window_bounds = array<i64: 20, 1>}, {transform_indices = @transform_3, window_bounds = array<i64: 1, 20, 128>}, {transform_indices = @transform_4, window_bounds = array<i64: 1, 2, 128>}]} {
    %cst = arith.constant 0.000000e+00 : f32
    %0 = vector.broadcast %cst : f32 to vector<20x128xf32>
    %c0 = arith.constant 0 : index
    %c0_0 = arith.constant 0 : index
    %c0_1 = arith.constant 0 : index
    %1 = vector.load %arg1[%c0, %c0_0, %c0_1] : memref<1x32x128xbf16, #tpu.memory_space<vmem>>, vector<1x20x128xbf16>
    %2 = vector.shape_cast %1 : vector<1x20x128xbf16> to vector<20x128xbf16>
    %c0_2 = arith.constant 0 : index
    %c0_3 = arith.constant 0 : index
    %c0_4 = arith.constant 0 : index
    %3 = vector.load %arg2[%c0_2, %c0_3, %c0_4] : memref<4x128x128xbf16, #tpu.memory_space<vmem>>, vector<1x128x128xbf16>
    %4 = vector.shape_cast %3 : vector<1x128x128xbf16> to vector<128x128xbf16>
    %cst_5 = arith.constant dense<0.000000e+00> : vector<20x128xf32>
    %5 = tpu.matmul %2, %4, %cst_5 {dimension_numbers = #tpu.dot_dimension_numbers<[1], [0], [0], [1], [0, 0, 1, 1], [], []>} : vector<20x128xbf16>, vector<128x128xbf16>, vector<20x128xf32> -> vector<20x128xf32>
    %6 = arith.addf %0, %5 : vector<20x128xf32>
    %c0_6 = arith.constant 0 : index
    %c1 = arith.constant 1 : index
    %c0_7 = arith.constant 0 : index
    %7 = vector.load %arg1[%c0_6, %c1, %c0_7] : memref<1x32x128xbf16, #tpu.memory_space<vmem>>, vector<1x20x128xbf16>
    %8 = vector.shape_cast %7 : vector<1x20x128xbf16> to vector<20x128xbf16>
    %c1_8 = arith.constant 1 : index
    %c0_9 = arith.constant 0 : index
    %c0_10 = arith.constant 0 : index
    %9 = vector.load %arg2[%c1_8, %c0_9, %c0_10] : memref<4x128x128xbf16, #tpu.memory_space<vmem>>, vector<1x128x128xbf16>
    %10 = vector.shape_cast %9 : vector<1x128x128xbf16> to vector<128x128xbf16>
    %cst_11 = arith.constant dense<0.000000e+00> : vector<20x128xf32>
    %11 = tpu.matmul %8, %10, %cst_11 {dimension_numbers = #tpu.dot_dimension_numbers<[1], [0], [0], [1], [0, 0, 1, 1], [], []>} : vector<20x128xbf16>, vector<128x128xbf16>, vector<20x128xf32> -> vector<20x128xf32>
    %12 = arith.addf %6, %11 : vector<20x128xf32>
    %c0_12 = arith.constant 0 : index
    %c5 = arith.constant 5 : index
    %c0_13 = arith.constant 0 : index
    %13 = vector.load %arg1[%c0_12, %c5, %c0_13] : memref<1x32x128xbf16, #tpu.memory_space<vmem>>, vector<1x20x128xbf16>
    %14 = vector.shape_cast %13 : vector<1x20x128xbf16> to vector<20x128xbf16>
    %c2 = arith.constant 2 : index
    %c0_14 = arith.constant 0 : index
    %c0_15 = arith.constant 0 : index
    %15 = vector.load %arg2[%c2, %c0_14, %c0_15] : memref<4x128x128xbf16, #tpu.memory_space<vmem>>, vector<1x128x128xbf16>
    %16 = vector.shape_cast %15 : vector<1x128x128xbf16> to vector<128x128xbf16>
    %cst_16 = arith.constant dense<0.000000e+00> : vector<20x128xf32>
    %17 = tpu.matmul %14, %16, %cst_16 {dimension_numbers = #tpu.dot_dimension_numbers<[1], [0], [0], [1], [0, 0, 1, 1], [], []>} : vector<20x128xbf16>, vector<128x128xbf16>, vector<20x128xf32> -> vector<20x128xf32>
    %18 = arith.addf %12, %17 : vector<20x128xf32>
    %c0_17 = arith.constant 0 : index
    %c6 = arith.constant 6 : index
    %c0_18 = arith.constant 0 : index
    %19 = vector.load %arg1[%c0_17, %c6, %c0_18] : memref<1x32x128xbf16, #tpu.memory_space<vmem>>, vector<1x20x128xbf16>
    %20 = vector.shape_cast %19 : vector<1x20x128xbf16> to vector<20x128xbf16>
    %c3 = arith.constant 3 : index
    %c0_19 = arith.constant 0 : index
    %c0_20 = arith.constant 0 : index
    %21 = vector.load %arg2[%c3, %c0_19, %c0_20] : memref<4x128x128xbf16, #tpu.memory_space<vmem>>, vector<1x128x128xbf16>
    %22 = vector.shape_cast %21 : vector<1x128x128xbf16> to vector<128x128xbf16>
    %cst_21 = arith.constant dense<0.000000e+00> : vector<20x128xf32>
    %23 = tpu.matmul %20, %22, %cst_21 {dimension_numbers = #tpu.dot_dimension_numbers<[1], [0], [0], [1], [0, 0, 1, 1], [], []>} : vector<20x128xbf16>, vector<128x128xbf16>, vector<20x128xf32> -> vector<20x128xf32>
    %24 = arith.addf %18, %23 : vector<20x128xf32>
    %25 = arith.truncf %24 : vector<20x128xf32> to vector<20x128xbf16>
    %c0_22 = arith.constant 0 : index
    %c0_23 = arith.constant 0 : index
    %c0_24 = arith.constant 0 : index
    %26 = vector.load %arg4[%c0_22, %c0_23, %c0_24] : memref<1x20x128xbf16, #tpu.memory_space<vmem>>, vector<1x20x128xbf16>
    %27 = vector.shape_cast %26 : vector<1x20x128xbf16> to vector<20x128xbf16>
    %28 = vector.shape_cast %25 : vector<20x128xbf16> to vector<1x20x128xbf16>
    tpu.vector_store %arg4[%c0_22, %c0_23, %c0_24], %28 {strides = array<i32>} : memref<1x20x128xbf16, #tpu.memory_space<vmem>>, vector<1x20x128xbf16>,
    %c0_25 = arith.constant 0 : index
    %c0_26 = arith.constant 0 : index
    %29 = vector.load %arg3[%c0_25, %c0_26] : memref<20x1xf32, #tpu.memory_space<vmem>>, vector<20x1xf32>
    %30 = vector.broadcast %29 : vector<20x1xf32> to vector<20x128xf32>
    %31 = arith.mulf %24, %30 : vector<20x128xf32>
    %cst_27 = arith.constant dense<0.000000e+00> : vector<128xf32>
    %32 = vector.multi_reduction <add>, %31, %cst_27 [0] : vector<20x128xf32> to vector<128xf32>
    %33 = vector.shape_cast %32 : vector<128xf32> to vector<1x128xf32>
    %34 = arith.mulf %31, %24 : vector<20x128xf32>
    %cst_28 = arith.constant dense<0.000000e+00> : vector<128xf32>
    %35 = vector.multi_reduction <add>, %34, %cst_28 [0] : vector<20x128xf32> to vector<128xf32>
    %36 = vector.shape_cast %35 : vector<128xf32> to vector<1x128xf32>
    %37 = tpu.concatenate %33, %36 in 0 : vector<1x128xf32>, vector<1x128xf32> -> vector<2x128xf32>
    %c0_29 = arith.constant 0 : index
    %c0_30 = arith.constant 0 : index
    %c0_31 = arith.constant 0 : index
    %38 = vector.load %arg5[%c0_29, %c0_30, %c0_31] : memref<1x2x128xf32, #tpu.memory_space<vmem>>, vector<1x2x128xf32>
    %39 = vector.shape_cast %38 : vector<1x2x128xf32> to vector<2x128xf32>
    %40 = vector.shape_cast %37 : vector<2x128xf32> to vector<1x2x128xf32>
    tpu.vector_store %arg5[%c0_29, %c0_30, %c0_31], %40 {strides = array<i32>} : memref<1x2x128xf32, #tpu.memory_space<vmem>>, vector<1x2x128xf32>,
    return
  }
  func.func @transform_0(%arg0: i32) -> (i32, i32, i32) {
    %c0_i32 = arith.constant 0 : i32
    %c0_i32_0 = arith.constant 0 : i32
    %c0_i32_1 = arith.constant 0 : i32
    return %arg0, %c0_i32, %c0_i32_0 : i32, i32, i32
  }
  func.func @transform_1(%arg0: i32) -> (i32, i32, i32) {
    %c0_i32 = arith.constant 0 : i32
    %c0_i32_0 = arith.constant 0 : i32
    %c0_i32_1 = arith.constant 0 : i32
    %c0_i32_2 = arith.constant 0 : i32
    return %c0_i32, %c0_i32_0, %c0_i32_1 : i32, i32, i32
  }
  func.func @transform_2(%arg0: i32) -> (i32, i32) {
    %c0_i32 = arith.constant 0 : i32
    %c0_i32_0 = arith.constant 0 : i32
    %c0_i32_1 = arith.constant 0 : i32
    return %c0_i32, %c0_i32_0 : i32, i32
  }
  func.func @transform_3(%arg0: i32) -> (i32, i32, i32) {
    %c0_i32 = arith.constant 0 : i32
    %c0_i32_0 = arith.constant 0 : i32
    %c0_i32_1 = arith.constant 0 : i32
    return %arg0, %c0_i32, %c0_i32_0 : i32, i32, i32
  }
  func.func @transform_4(%arg0: i32) -> (i32, i32, i32) {
    %c0_i32 = arith.constant 0 : i32
    %c0_i32_0 = arith.constant 0 : i32
    %c0_i32_1 = arith.constant 0 : i32
    return %arg0, %c0_i32, %c0_i32_0 : i32, i32, i32
  }
}

module attributes {stable_mosaic.version = 11 : i64} {
  func.func @kernel(%arg0: i32, %arg1: memref<1x16x128xbf16, #tpu.memory_space<vmem>>, %arg2: memref<4x128x128xbf16, #tpu.memory_space<vmem>>, %arg3: memref<6x1xf32, #tpu.memory_space<vmem>>, %arg4: memref<1x6x128xbf16, #tpu.memory_space<vmem>>, %arg5: memref<1x2x128xf32, #tpu.memory_space<vmem>>) attributes {dimension_semantics = [#tpu.dimension_semantics<parallel>], iteration_bounds = array<i64: 2>, scalar_prefetch = 0 : i64, scratch_operands = 0 : i64, tpu.core_type = #tpu.core_type<tc>, window_params = [{transform_indices = @transform_0, window_bounds = array<i64: 1, 16, 128>}, {pipeline_mode = #tpu.pipeline_mode<synchronous>, transform_indices = @transform_1, window_bounds = array<i64: 4, 128, 128>}, {pipeline_mode = #tpu.pipeline_mode<synchronous>, transform_indices = @transform_2, window_bounds = array<i64: 6, 1>}, {transform_indices = @transform_3, window_bounds = array<i64: 1, 6, 128>}, {transform_indices = @transform_4, window_bounds = array<i64: 1, 2, 128>}]} {
    %cst = arith.constant 0.000000e+00 : f32
    %0 = vector.broadcast %cst : f32 to vector<6x128xf32>
    %c0 = arith.constant 0 : index
    %c0_0 = arith.constant 0 : index
    %c0_1 = arith.constant 0 : index
    %1 = vector.load %arg1[%c0, %c0_0, %c0_1] : memref<1x16x128xbf16, #tpu.memory_space<vmem>>, vector<1x6x128xbf16>
    %2 = vector.shape_cast %1 : vector<1x6x128xbf16> to vector<6x128xbf16>
    %c0_2 = arith.constant 0 : index
    %c0_3 = arith.constant 0 : index
    %c0_4 = arith.constant 0 : index
    %3 = vector.load %arg2[%c0_2, %c0_3, %c0_4] : memref<4x128x128xbf16, #tpu.memory_space<vmem>>, vector<1x128x128xbf16>
    %4 = vector.shape_cast %3 : vector<1x128x128xbf16> to vector<128x128xbf16>
    %cst_5 = arith.constant dense<0.000000e+00> : vector<6x128xf32>
    %5 = tpu.matmul %2, %4, %cst_5 {dimension_numbers = #tpu.dot_dimension_numbers<[1], [0], [0], [1], [0, 0, 1, 1], [], []>} : vector<6x128xbf16>, vector<128x128xbf16>, vector<6x128xf32> -> vector<6x128xf32>
    %6 = arith.addf %0, %5 : vector<6x128xf32>
    %c0_6 = arith.constant 0 : index
    %c1 = arith.constant 1 : index
    %c0_7 = arith.constant 0 : index
    %7 = vector.load %arg1[%c0_6, %c1, %c0_7] : memref<1x16x128xbf16, #tpu.memory_space<vmem>>, vector<1x6x128xbf16>
    %8 = vector.shape_cast %7 : vector<1x6x128xbf16> to vector<6x128xbf16>
    %c1_8 = arith.constant 1 : index
    %c0_9 = arith.constant 0 : index
    %c0_10 = arith.constant 0 : index
    %9 = vector.load %arg2[%c1_8, %c0_9, %c0_10] : memref<4x128x128xbf16, #tpu.memory_space<vmem>>, vector<1x128x128xbf16>
    %10 = vector.shape_cast %9 : vector<1x128x128xbf16> to vector<128x128xbf16>
    %cst_11 = arith.constant dense<0.000000e+00> : vector<6x128xf32>
    %11 = tpu.matmul %8, %10, %cst_11 {dimension_numbers = #tpu.dot_dimension_numbers<[1], [0], [0], [1], [0, 0, 1, 1], [], []>} : vector<6x128xbf16>, vector<128x128xbf16>, vector<6x128xf32> -> vector<6x128xf32>
    %12 = arith.addf %6, %11 : vector<6x128xf32>
    %c0_12 = arith.constant 0 : index
    %c3 = arith.constant 3 : index
    %c0_13 = arith.constant 0 : index
    %13 = vector.load %arg1[%c0_12, %c3, %c0_13] : memref<1x16x128xbf16, #tpu.memory_space<vmem>>, vector<1x6x128xbf16>
    %14 = vector.shape_cast %13 : vector<1x6x128xbf16> to vector<6x128xbf16>
    %c2 = arith.constant 2 : index
    %c0_14 = arith.constant 0 : index
    %c0_15 = arith.constant 0 : index
    %15 = vector.load %arg2[%c2, %c0_14, %c0_15] : memref<4x128x128xbf16, #tpu.memory_space<vmem>>, vector<1x128x128xbf16>
    %16 = vector.shape_cast %15 : vector<1x128x128xbf16> to vector<128x128xbf16>
    %cst_16 = arith.constant dense<0.000000e+00> : vector<6x128xf32>
    %17 = tpu.matmul %14, %16, %cst_16 {dimension_numbers = #tpu.dot_dimension_numbers<[1], [0], [0], [1], [0, 0, 1, 1], [], []>} : vector<6x128xbf16>, vector<128x128xbf16>, vector<6x128xf32> -> vector<6x128xf32>
    %18 = arith.addf %12, %17 : vector<6x128xf32>
    %c0_17 = arith.constant 0 : index
    %c4 = arith.constant 4 : index
    %c0_18 = arith.constant 0 : index
    %19 = vector.load %arg1[%c0_17, %c4, %c0_18] : memref<1x16x128xbf16, #tpu.memory_space<vmem>>, vector<1x6x128xbf16>
    %20 = vector.shape_cast %19 : vector<1x6x128xbf16> to vector<6x128xbf16>
    %c3_19 = arith.constant 3 : index
    %c0_20 = arith.constant 0 : index
    %c0_21 = arith.constant 0 : index
    %21 = vector.load %arg2[%c3_19, %c0_20, %c0_21] : memref<4x128x128xbf16, #tpu.memory_space<vmem>>, vector<1x128x128xbf16>
    %22 = vector.shape_cast %21 : vector<1x128x128xbf16> to vector<128x128xbf16>
    %cst_22 = arith.constant dense<0.000000e+00> : vector<6x128xf32>
    %23 = tpu.matmul %20, %22, %cst_22 {dimension_numbers = #tpu.dot_dimension_numbers<[1], [0], [0], [1], [0, 0, 1, 1], [], []>} : vector<6x128xbf16>, vector<128x128xbf16>, vector<6x128xf32> -> vector<6x128xf32>
    %24 = arith.addf %18, %23 : vector<6x128xf32>
    %25 = arith.truncf %24 : vector<6x128xf32> to vector<6x128xbf16>
    %c0_23 = arith.constant 0 : index
    %c0_24 = arith.constant 0 : index
    %c0_25 = arith.constant 0 : index
    %26 = vector.load %arg4[%c0_23, %c0_24, %c0_25] : memref<1x6x128xbf16, #tpu.memory_space<vmem>>, vector<1x6x128xbf16>
    %27 = vector.shape_cast %26 : vector<1x6x128xbf16> to vector<6x128xbf16>
    %28 = vector.shape_cast %25 : vector<6x128xbf16> to vector<1x6x128xbf16>
    tpu.vector_store %arg4[%c0_23, %c0_24, %c0_25], %28 {strides = array<i32>} : memref<1x6x128xbf16, #tpu.memory_space<vmem>>, vector<1x6x128xbf16>,
    %c0_26 = arith.constant 0 : index
    %c0_27 = arith.constant 0 : index
    %29 = vector.load %arg3[%c0_26, %c0_27] : memref<6x1xf32, #tpu.memory_space<vmem>>, vector<6x1xf32>
    %30 = vector.broadcast %29 : vector<6x1xf32> to vector<6x128xf32>
    %31 = arith.mulf %24, %30 : vector<6x128xf32>
    %cst_28 = arith.constant dense<0.000000e+00> : vector<128xf32>
    %32 = vector.multi_reduction <add>, %31, %cst_28 [0] : vector<6x128xf32> to vector<128xf32>
    %33 = vector.shape_cast %32 : vector<128xf32> to vector<1x128xf32>
    %34 = arith.mulf %31, %24 : vector<6x128xf32>
    %cst_29 = arith.constant dense<0.000000e+00> : vector<128xf32>
    %35 = vector.multi_reduction <add>, %34, %cst_29 [0] : vector<6x128xf32> to vector<128xf32>
    %36 = vector.shape_cast %35 : vector<128xf32> to vector<1x128xf32>
    %37 = tpu.concatenate %33, %36 in 0 : vector<1x128xf32>, vector<1x128xf32> -> vector<2x128xf32>
    %c0_30 = arith.constant 0 : index
    %c0_31 = arith.constant 0 : index
    %c0_32 = arith.constant 0 : index
    %38 = vector.load %arg5[%c0_30, %c0_31, %c0_32] : memref<1x2x128xf32, #tpu.memory_space<vmem>>, vector<1x2x128xf32>
    %39 = vector.shape_cast %38 : vector<1x2x128xf32> to vector<2x128xf32>
    %40 = vector.shape_cast %37 : vector<2x128xf32> to vector<1x2x128xf32>
    tpu.vector_store %arg5[%c0_30, %c0_31, %c0_32], %40 {strides = array<i32>} : memref<1x2x128xf32, #tpu.memory_space<vmem>>, vector<1x2x128xf32>,
    return
  }
  func.func @transform_0(%arg0: i32) -> (i32, i32, i32) {
    %c0_i32 = arith.constant 0 : i32
    %c0_i32_0 = arith.constant 0 : i32
    %c0_i32_1 = arith.constant 0 : i32
    return %arg0, %c0_i32, %c0_i32_0 : i32, i32, i32
  }
  func.func @transform_1(%arg0: i32) -> (i32, i32, i32) {
    %c0_i32 = arith.constant 0 : i32
    %c0_i32_0 = arith.constant 0 : i32
    %c0_i32_1 = arith.constant 0 : i32
    %c0_i32_2 = arith.constant 0 : i32
    return %c0_i32, %c0_i32_0, %c0_i32_1 : i32, i32, i32
  }
  func.func @transform_2(%arg0: i32) -> (i32, i32) {
    %c0_i32 = arith.constant 0 : i32
    %c0_i32_0 = arith.constant 0 : i32
    %c0_i32_1 = arith.constant 0 : i32
    return %c0_i32, %c0_i32_0 : i32, i32
  }
  func.func @transform_3(%arg0: i32) -> (i32, i32, i32) {
    %c0_i32 = arith.constant 0 : i32
    %c0_i32_0 = arith.constant 0 : i32
    %c0_i32_1 = arith.constant 0 : i32
    return %arg0, %c0_i32, %c0_i32_0 : i32, i32, i32
  }
  func.func @transform_4(%arg0: i32) -> (i32, i32, i32) {
    %c0_i32 = arith.constant 0 : i32
    %c0_i32_0 = arith.constant 0 : i32
    %c0_i32_1 = arith.constant 0 : i32
    return %arg0, %c0_i32, %c0_i32_0 : i32, i32, i32
  }
}

module attributes {stable_mosaic.version = 11 : i64} {
  func.func @kernel(%arg0: i32, %arg1: memref<1x8x128xbf16, #tpu.memory_space<vmem>>, %arg2: memref<4x128x128xbf16, #tpu.memory_space<vmem>>, %arg3: memref<1x2x128xf32, #tpu.memory_space<vmem>>) attributes {dimension_semantics = [#tpu.dimension_semantics<parallel>], iteration_bounds = array<i64: 2>, scalar_prefetch = 0 : i64, scratch_operands = 0 : i64, tpu.core_type = #tpu.core_type<tc>, window_params = [{transform_indices = @transform_0, window_bounds = array<i64: 1, 8, 128>}, {pipeline_mode = #tpu.pipeline_mode<synchronous>, transform_indices = @transform_1, window_bounds = array<i64: 4, 128, 128>}, {transform_indices = @transform_2, window_bounds = array<i64: 1, 2, 128>}]} {
    %cst = arith.constant 0.000000e+00 : f32
    %0 = vector.broadcast %cst : f32 to vector<2x128xf32>
    %c0 = arith.constant 0 : index
    %c0_0 = arith.constant 0 : index
    %c0_1 = arith.constant 0 : index
    %1 = vector.load %arg1[%c0, %c0_0, %c0_1] : memref<1x8x128xbf16, #tpu.memory_space<vmem>>, vector<1x2x128xbf16>
    %2 = vector.shape_cast %1 : vector<1x2x128xbf16> to vector<2x128xbf16>
    %c0_2 = arith.constant 0 : index
    %c0_3 = arith.constant 0 : index
    %c0_4 = arith.constant 0 : index
    %3 = vector.load %arg2[%c0_2, %c0_3, %c0_4] : memref<4x128x128xbf16, #tpu.memory_space<vmem>>, vector<1x128x128xbf16>
    %4 = vector.shape_cast %3 : vector<1x128x128xbf16> to vector<128x128xbf16>
    %cst_5 = arith.constant dense<0.000000e+00> : vector<2x128xf32>
    %5 = tpu.matmul %2, %4, %cst_5 {dimension_numbers = #tpu.dot_dimension_numbers<[1], [0], [0], [1], [0, 0, 1, 1], [], []>} : vector<2x128xbf16>, vector<128x128xbf16>, vector<2x128xf32> -> vector<2x128xf32>
    %6 = arith.addf %0, %5 : vector<2x128xf32>
    %c0_6 = arith.constant 0 : index
    %c1 = arith.constant 1 : index
    %c0_7 = arith.constant 0 : index
    %7 = vector.load %arg1[%c0_6, %c1, %c0_7] : memref<1x8x128xbf16, #tpu.memory_space<vmem>>, vector<1x2x128xbf16>
    %8 = vector.shape_cast %7 : vector<1x2x128xbf16> to vector<2x128xbf16>
    %c1_8 = arith.constant 1 : index
    %c0_9 = arith.constant 0 : index
    %c0_10 = arith.constant 0 : index
    %9 = vector.load %arg2[%c1_8, %c0_9, %c0_10] : memref<4x128x128xbf16, #tpu.memory_space<vmem>>, vector<1x128x128xbf16>
    %10 = vector.shape_cast %9 : vector<1x128x128xbf16> to vector<128x128xbf16>
    %cst_11 = arith.constant dense<0.000000e+00> : vector<2x128xf32>
    %11 = tpu.matmul %8, %10, %cst_11 {dimension_numbers = #tpu.dot_dimension_numbers<[1], [0], [0], [1], [0, 0, 1, 1], [], []>} : vector<2x128xbf16>, vector<128x128xbf16>, vector<2x128xf32> -> vector<2x128xf32>
    %12 = arith.addf %6, %11 : vector<2x128xf32>
    %c0_12 = arith.constant 0 : index
    %c2 = arith.constant 2 : index
    %c0_13 = arith.constant 0 : index
    %13 = vector.load %arg1[%c0_12, %c2, %c0_13] : memref<1x8x128xbf16, #tpu.memory_space<vmem>>, vector<1x2x128xbf16>
    %14 = vector.shape_cast %13 : vector<1x2x128xbf16> to vector<2x128xbf16>
    %c2_14 = arith.constant 2 : index
    %c0_15 = arith.constant 0 : index
    %c0_16 = arith.constant 0 : index
    %15 = vector.load %arg2[%c2_14, %c0_15, %c0_16] : memref<4x128x128xbf16, #tpu.memory_space<vmem>>, vector<1x128x128xbf16>
    %16 = vector.shape_cast %15 : vector<1x128x128xbf16> to vector<128x128xbf16>
    %cst_17 = arith.constant dense<0.000000e+00> : vector<2x128xf32>
    %17 = tpu.matmul %14, %16, %cst_17 {dimension_numbers = #tpu.dot_dimension_numbers<[1], [0], [0], [1], [0, 0, 1, 1], [], []>} : vector<2x128xbf16>, vector<128x128xbf16>, vector<2x128xf32> -> vector<2x128xf32>
    %18 = arith.addf %12, %17 : vector<2x128xf32>
    %c0_18 = arith.constant 0 : index
    %c3 = arith.constant 3 : index
    %c0_19 = arith.constant 0 : index
    %19 = vector.load %arg1[%c0_18, %c3, %c0_19] : memref<1x8x128xbf16, #tpu.memory_space<vmem>>, vector<1x2x128xbf16>
    %20 = vector.shape_cast %19 : vector<1x2x128xbf16> to vector<2x128xbf16>
    %c3_20 = arith.constant 3 : index
    %c0_21 = arith.constant 0 : index
    %c0_22 = arith.constant 0 : index
    %21 = vector.load %arg2[%c3_20, %c0_21, %c0_22] : memref<4x128x128xbf16, #tpu.memory_space<vmem>>, vector<1x128x128xbf16>
    %22 = vector.shape_cast %21 : vector<1x128x128xbf16> to vector<128x128xbf16>
    %cst_23 = arith.constant dense<0.000000e+00> : vector<2x128xf32>
    %23 = tpu.matmul %20, %22, %cst_23 {dimension_numbers = #tpu.dot_dimension_numbers<[1], [0], [0], [1], [0, 0, 1, 1], [], []>} : vector<2x128xbf16>, vector<128x128xbf16>, vector<2x128xf32> -> vector<2x128xf32>
    %24 = arith.addf %18, %23 : vector<2x128xf32>
    %cst_24 = arith.constant 0.000000e+00 : f32
    %25 = vector.broadcast %cst_24 : f32 to vector<2x128xf32>
    %26 = arith.subf %25, %24 : vector<2x128xf32>
    %27 = math.exp %26 : vector<2x128xf32>
    %cst_25 = arith.constant 1.000000e+00 : f32
    %28 = vector.broadcast %cst_25 : f32 to vector<2x128xf32>
    %29 = arith.addf %28, %27 : vector<2x128xf32>
    %cst_26 = arith.constant 1.000000e+00 : f32
    %30 = vector.broadcast %cst_26 : f32 to vector<2x128xf32>
    %31 = arith.divf %30, %29 : vector<2x128xf32>
    %c0_27 = arith.constant 0 : index
    %c0_28 = arith.constant 0 : index
    %c0_29 = arith.constant 0 : index
    %32 = vector.load %arg3[%c0_27, %c0_28, %c0_29] : memref<1x2x128xf32, #tpu.memory_space<vmem>>, vector<1x2x128xf32>
    %33 = vector.shape_cast %32 : vector<1x2x128xf32> to vector<2x128xf32>
    %34 = vector.shape_cast %31 : vector<2x128xf32> to vector<1x2x128xf32>
    tpu.vector_store %arg3[%c0_27, %c0_28, %c0_29], %34 {strides = array<i32>} : memref<1x2x128xf32, #tpu.memory_space<vmem>>, vector<1x2x128xf32>,
    return
  }
  func.func @transform_0(%arg0: i32) -> (i32, i32, i32) {
    %c0_i32 = arith.constant 0 : i32
    %c0_i32_0 = arith.constant 0 : i32
    %c0_i32_1 = arith.constant 0 : i32
    return %arg0, %c0_i32, %c0_i32_0 : i32, i32, i32
  }
  func.func @transform_1(%arg0: i32) -> (i32, i32, i32) {
    %c0_i32 = arith.constant 0 : i32
    %c0_i32_0 = arith.constant 0 : i32
    %c0_i32_1 = arith.constant 0 : i32
    %c0_i32_2 = arith.constant 0 : i32
    return %c0_i32, %c0_i32_0, %c0_i32_1 : i32, i32, i32
  }
  func.func @transform_2(%arg0: i32) -> (i32, i32, i32) {
    %c0_i32 = arith.constant 0 : i32
    %c0_i32_0 = arith.constant 0 : i32
    %c0_i32_1 = arith.constant 0 : i32
    return %arg0, %c0_i32, %c0_i32_0 : i32, i32, i32
  }
}

</mosaic_0001>

<llo_original>
// kernel: dcgan_discriminator_forward.5
$region0: #{dcgan_discriminator_forward.5}
  #allocation0 [shape = 'u32[]', space=smem, size = 0x4, offset = 0x4, fixed_abs, tag = 'smem constant byte address 0x4 - core index']
  #allocation1 [shape = 'u32[144,128]{1,0:T(1,128)}', space=vmem, size = 0x12000, scoped, tag = 'internal scratch']
  %s0 = inlined_call_operand.vmem [shape: bf16[2,296,128], index: 0, kind: input, shape index: {}]
  %s1 = inlined_call_operand.vmem [shape: bf16[4,128,128], index: 1, kind: input, shape index: {}]
  %s2 = inlined_call_operand.vmem [shape: bf16[2,272,128], index: 2, kind: output, shape index: {}]
  %s3 = sld [smem:[#allocation0]]
  $region41: #{dcgan_discriminator_forward.5} parent=0
    _
  %s5 = ssub.s32 1, %s3
  %s6 = scalar_select 0, %s5, %s3
  loop: start=0, step=1, limit=4
  $region2: #{dcgan_discriminator_forward.5} parent=0 // loop_pre_header
    _
  $region3: #{dcgan_discriminator_forward.5} parent=0 // loop_header
    %s8 = sphi 0, %s12
    %p9 = scmp.ge.s32.totalorder %s8, 4
    %s18 = sphi 0, %s20
    %s21 = sphi 0, %s18
    %s22 = sphi 0, %s21
    %s38 = sphi 0, %s22
    %s42 = sphi 0, %s42
    %s44 = sphi 0, %s42
    %s45 = sphi 0, %s44
    %s59 = sphi 0, %s45
    %s65 = sphi 0, %s67
    %s68 = sphi 0, %s65
    %s69 = sphi 0, %s68
    %s85 = sphi 0, %s69
  $region4: #{dcgan_discriminator_forward.5} parent=0 // loop_header_branch
    %11 = sbr.rel (%p9) target = $region8
  $region5: #{dcgan_discriminator_forward.5} parent=0 // loop_body
    %s13 = ssub.s32 %s8, 1
    %s14 = ssub.s32 %s8, 2
    %s15 = sadd.s32 %s8, 1
    %s16 = ssub.s32 %s8, %s15
    %p17 = scmp.eq.s32.totalorder %s16, 0
    %s19 = sadd.s32 %s18, 1
    %s20 = scalar_select %p17, %s18, %s19
    %p23 = pneg %p17
    %p24 = scmp.eq.s32.totalorder %s8, 1
    %p25 = por %p23, %p24
    %p26 = scmp.ne.s32.totalorder %s18, %s21
    %p27 = scmp.eq.s32.totalorder %s8, 0
    %p28 = por %p26, %p27
    %p29 = scmp.ne.s32.totalorder %s18, %s21
    %p30 = scmp.eq.s32.totalorder %s13, 1
    %p31 = por %p29, %p30
    %p32 = scmp.ne.s32.totalorder %s21, %s22
    %p33 = scmp.eq.s32.totalorder %s13, 0
    %p34 = por %p32, %p33
    %p35 = scmp.ne.s32.totalorder %s21, %s22
    %p36 = scmp.eq.s32.totalorder %s14, 1
    %p37 = por %p35, %p36
    %p39 = scmp.ne.s32.totalorder %s22, %s38
    %p40 = scmp.eq.s32.totalorder %s14, 0
    %p41 = por %p39, %p40
    %s43 = sadd.s32 %s42, 1
    %p46 = scmp.eq.s32.totalorder %s8, 1
    %p47 = scmp.ne.s32.totalorder %s42, %s44
    %p48 = scmp.eq.s32.totalorder %s8, 0
    %p49 = por %p47, %p48
    %p50 = scmp.ne.s32.totalorder %s42, %s44
    %p51 = scmp.eq.s32.totalorder %s13, 1
    %p52 = por %p50, %p51
    %p53 = scmp.ne.s32.totalorder %s44, %s45
    %p54 = scmp.eq.s32.totalorder %s13, 0
    %p55 = por %p53, %p54
    %p56 = scmp.ne.s32.totalorder %s44, %s45
    %p57 = scmp.eq.s32.totalorder %s14, 1
    %p58 = por %p56, %p57
    %p60 = scmp.ne.s32.totalorder %s45, %s59
    %p61 = scmp.eq.s32.totalorder %s14, 0
    %p62 = por %p60, %p61
    %s63 = ssub.s32 %s8, %s15
    %p64 = scmp.eq.s32.totalorder %s63, 0
    %s66 = sadd.s32 %s65, 1
    %s67 = scalar_select %p64, %s65, %s66
    %p70 = pneg %p64
    %p71 = scmp.eq.s32.totalorder %s8, 1
    %p72 = por %p70, %p71
    %p73 = scmp.ne.s32.totalorder %s65, %s68
    %p74 = scmp.eq.s32.totalorder %s8, 0
    %p75 = por %p73, %p74
    %p76 = scmp.ne.s32.totalorder %s65, %s68
    %p77 = scmp.eq.s32.totalorder %s13, 1
    %p78 = por %p76, %p77
    %p79 = scmp.ne.s32.totalorder %s68, %s69
    %p80 = scmp.eq.s32.totalorder %s13, 0
    %p81 = por %p79, %p80
    %p82 = scmp.ne.s32.totalorder %s68, %s69
    %p83 = scmp.eq.s32.totalorder %s14, 1
    %p84 = por %p82, %p83
    %p86 = scmp.ne.s32.totalorder %s69, %s85
    %p87 = scmp.eq.s32.totalorder %s14, 0
    %p88 = por %p86, %p87
    %p89 = scmp.le.s32.totalorder 1, %s8
    %p90 = scmp.lt.s32.totalorder %s8, 3
    %p91 = pnand %p89, %p90
    %p92 = pneg %p91
    // Predicated region
    $region9: #{dcgan_discriminator_forward.5} parent=5 // pred_check
      _
    $region10: #{dcgan_discriminator_forward.5} parent=5 // pred_check_branch
      %94 = sbr.rel (%p91) target = $region12
    $region11: #{dcgan_discriminator_forward.5} parent=5 // pred_region
      %s95 = ssub.s32 %s8, 1
      // Predicated region
      $region13: #{dcgan_discriminator_forward.5} parent=11 // pred_check
        %p96 = pneg %p55
      $region14: #{dcgan_discriminator_forward.5} parent=11 // pred_check_branch
        %98 = sbr.rel (%p96) target = $region16
      $region15: #{dcgan_discriminator_forward.5} parent=11 // pred_region
        _
      $region16: #{dcgan_discriminator_forward.5} parent=11 // pred_fallthru
        _
    $region12: #{dcgan_discriminator_forward.5} parent=5 // pred_fallthru
      _
    %p99 = scmp.lt.s32.totalorder %s8, 2
    // Predicated region
    $region17: #{dcgan_discriminator_forward.5} parent=5 // pred_check
      %p100 = pneg %p99
    $region18: #{dcgan_discriminator_forward.5} parent=5 // pred_check_branch
      %102 = sbr.rel (%p100) target = $region20
    $region19: #{dcgan_discriminator_forward.5} parent=5 // pred_region
      // Predicated region
      $region21: #{dcgan_discriminator_forward.5} parent=19 // pred_check
        %p103 = pneg %p28
      $region22: #{dcgan_discriminator_forward.5} parent=19 // pred_check_branch
        %105 = sbr.rel (%p103) target = $region24
      $region23: #{dcgan_discriminator_forward.5} parent=19 // pred_region
        %p106 = scmp.lt.s32.totalorder %s8, 1
        %s107 = scalar_select %p106, %s8, 1
        %s108 = smul.addr %s107, 37
        %s109 = smul.addr %s108, 4
        %s110 = scalar_lea.vmem %s0, %s109
      $region24: #{dcgan_discriminator_forward.5} parent=19 // pred_fallthru
        _
    $region20: #{dcgan_discriminator_forward.5} parent=5 // pred_fallthru
      _
    %p111 = scmp.le.s32.totalorder 1, %s8
    %p112 = scmp.lt.s32.totalorder %s8, 3
    %p113 = pnand %p111, %p112
    %p114 = pneg %p113
    // Predicated region
    $region25: #{dcgan_discriminator_forward.5} parent=5 // pred_check
      _
    $region26: #{dcgan_discriminator_forward.5} parent=5 // pred_check_branch
      %116 = sbr.rel (%p113) target = $region28
    $region27: #{dcgan_discriminator_forward.5} parent=5 // pred_region
      %s117 = ssub.s32 %s8, 1
      %p118 = scmp.lt.s32.totalorder %s13, 1
      %s119 = scalar_select %p118, %s13, 1
      %s120 = smul.addr %s119, 37
      %s121 = smul.addr %s120, 4
      %s122 = scalar_lea.vmem %s0, %s121
      %p123 = pneg %p34
      %p124 = pneg %p31
      %p125 = pneg %p55
      %p126 = pneg %p52
      %p127 = pneg %p81
      %p128 = pneg %p78
      %p129 = scmp.lt.s32.totalorder %s13, 1
      %s130 = scalar_select %p129, %s13, 1
      %s131 = smul.addr %s130, 34
      %s132 = smul.addr %s131, 4
      %s133 = scalar_lea.vmem %s2, %s132
      %p134 = scmp.lt.s32.totalorder %s13, 1
      %s135 = scalar_select %p134, %s13, 1
      %s136 = smul.addr %s135, 37
      %s137 = smul.addr %s136, 4
      %s138 = scalar_lea.vmem %s0, %s137
      %p139 = scmp.lt.s32.totalorder %s13, 1
      %s140 = scalar_select %p139, %s13, 1
      %s141 = smul.addr %s140, 34
      %s142 = smul.addr %s141, 4
      %s143 = scalar_lea.vmem %s2, %s142
      %v145 = vld [vmem:[%s138] sm:$0xf]
      %v146 = vld [vmem:[%s138 + $0x4] sm:$0xf]
      %v147 = vld [vmem:[%s138 + $0x8] sm:$0xf]
      %v148 = vld [vmem:[%s138 + $0xc] sm:$0xf]
      %v149 = vld [vmem:[%s138 + $0x10] sm:$0xf]
      %v150 = vld [vmem:[%s138 + $0x14] sm:$0xf]
      %v151 = vld [vmem:[%s138 + $0x18] sm:$0xf]
      %v152 = vld [vmem:[%s138 + $0x1c] sm:$0xf]
      %v153 = vld [vmem:[%s138 + $0x20] sm:$0xf]
      %v154 = vld [vmem:[%s138 + $0x24] sm:$0xf]
      %v155 = vld [vmem:[%s138 + $0x28] sm:$0xf]
      %v156 = vld [vmem:[%s138 + $0x2c] sm:$0xf]
      %v157 = vld [vmem:[%s138 + $0x30] sm:$0xf]
      %v158 = vld [vmem:[%s138 + $0x34] sm:$0xf]
      %v159 = vld [vmem:[%s138 + $0x38] sm:$0xf]
      %v160 = vld [vmem:[%s138 + $0x3c] sm:$0xf]
      %v161 = vld [vmem:[%s138 + $0x40] sm:$0xf]
      %v162 = vld [vmem:[%s138 + $0x44] sm:$0xf]
      %v163 = vld [vmem:[%s138 + $0x48] sm:$0xf]
      %v164 = vld [vmem:[%s138 + $0x4c] sm:$0xf]
      %v165 = vld [vmem:[%s138 + $0x50] sm:$0xf]
      %v166 = vld [vmem:[%s138 + $0x54] sm:$0xf]
      %v167 = vld [vmem:[%s138 + $0x58] sm:$0xf]
      %v168 = vld [vmem:[%s138 + $0x5c] sm:$0xf]
      %v169 = vld [vmem:[%s138 + $0x60] sm:$0xf]
      %v170 = vld [vmem:[%s138 + $0x64] sm:$0xf]
      %v171 = vld [vmem:[%s138 + $0x68] sm:$0xf]
      %v172 = vld [vmem:[%s138 + $0x6c] sm:$0xf]
      %v173 = vld [vmem:[%s138 + $0x70] sm:$0xf]
      %v174 = vld [vmem:[%s138 + $0x74] sm:$0xf]
      %v175 = vld [vmem:[%s138 + $0x78] sm:$0xf]
      %v176 = vld [vmem:[%s138 + $0x7c] sm:$0xf]
      %v177 = vld [vmem:[%s138 + $0x80] sm:$0xf]
      %v178 = vld [vmem:[%s138 + $0x84] sm:$0xf]
      %v179 = vld [vmem:[%s1] sm:$0xf]
      %v180 = vld [vmem:[%s1 + $0x4] sm:$0xf]
      %v181 = vld [vmem:[%s1 + $0x8] sm:$0xf]
      %v182 = vld [vmem:[%s1 + $0xc] sm:$0xf]
      %v183 = vld [vmem:[%s1 + $0x10] sm:$0xf]
      %v184 = vld [vmem:[%s1 + $0x14] sm:$0xf]
      %v185 = vld [vmem:[%s1 + $0x18] sm:$0xf]
      %v186 = vld [vmem:[%s1 + $0x1c] sm:$0xf]
      %v187 = vld [vmem:[%s1 + $0x20] sm:$0xf]
      %v188 = vld [vmem:[%s1 + $0x24] sm:$0xf]
      %v189 = vld [vmem:[%s1 + $0x28] sm:$0xf]
      %v190 = vld [vmem:[%s1 + $0x2c] sm:$0xf]
      %v191 = vld [vmem:[%s1 + $0x30] sm:$0xf]
      %v192 = vld [vmem:[%s1 + $0x34] sm:$0xf]
      %v193 = vld [vmem:[%s1 + $0x38] sm:$0xf]
      %v194 = vld [vmem:[%s1 + $0x3c] sm:$0xf]
      %v195 = vld [vmem:[%s138 + $0x88] sm:$0x1]
      %s196 = scalar_lea.vmem %s1, 64
      %v197 = vld [vmem:[%s196] sm:$0xf]
      %v198 = vld [vmem:[%s196 + $0x4] sm:$0xf]
      %v199 = vld [vmem:[%s196 + $0x8] sm:$0xf]
      %v200 = vld [vmem:[%s196 + $0xc] sm:$0xf]
      %v201 = vld [vmem:[%s196 + $0x10] sm:$0xf]
      %v202 = vld [vmem:[%s196 + $0x14] sm:$0xf]
      %v203 = vld [vmem:[%s196 + $0x18] sm:$0xf]
      %v204 = vld [vmem:[%s196 + $0x1c] sm:$0xf]
      %v205 = vld [vmem:[%s196 + $0x20] sm:$0xf]
      %v206 = vld [vmem:[%s196 + $0x24] sm:$0xf]
      %v207 = vld [vmem:[%s196 + $0x28] sm:$0xf]
      %v208 = vld [vmem:[%s196 + $0x2c] sm:$0xf]
      %v209 = vld [vmem:[%s196 + $0x30] sm:$0xf]
      %v210 = vld [vmem:[%s196 + $0x34] sm:$0xf]
      %v211 = vld [vmem:[%s196 + $0x38] sm:$0xf]
      %v212 = vld [vmem:[%s196 + $0x3c] sm:$0xf]
      %v248 = vunpack.c.l.b16 %v145
      %v249 = vunpack.c.l.b16 %v146
      %v250 = vunpack.c.l.b16 %v147
      %v251 = vunpack.c.l.b16 %v148
      %v252 = vunpack.c.l.b16 %v149
      %v253 = vunpack.c.l.b16 %v150
      %v254 = vunpack.c.l.b16 %v151
      %v255 = vunpack.c.l.b16 %v152
      %v256 = vunpack.c.l.b16 %v153
      %v257 = vunpack.c.l.b16 %v154
      %v258 = vunpack.c.l.b16 %v155
      %v259 = vunpack.c.l.b16 %v156
      %v260 = vunpack.c.l.b16 %v157
      %v261 = vunpack.c.l.b16 %v158
      %v262 = vunpack.c.l.b16 %v159
      %v263 = vunpack.c.l.b16 %v160
      %v264 = vunpack.c.l.b16 %v161
      %v265 = vunpack.c.l.b16 %v162
      %v266 = vunpack.c.l.b16 %v163
      %v267 = vunpack.c.l.b16 %v164
      %v268 = vunpack.c.l.b16 %v165
      %v269 = vunpack.c.l.b16 %v166
      %v270 = vunpack.c.l.b16 %v167
      %v271 = vunpack.c.l.b16 %v168
      %v272 = vunpack.c.l.b16 %v169
      %v273 = vunpack.c.l.b16 %v170
      %v274 = vunpack.c.l.b16 %v171
      %v275 = vunpack.c.l.b16 %v172
      %v276 = vunpack.c.l.b16 %v173
      %v277 = vunpack.c.l.b16 %v174
      %v278 = vunpack.c.l.b16 %v175
      %v279 = vunpack.c.l.b16 %v176
      %v280 = vunpack.c.l.b16 %v177
      %v281 = vunpack.c.l.b16 %v178
      %v282 = vunpack.c.l.b16 %v195
      %v283 = vpack.c.b16 %v249, %v248
      %v284 = vpack.c.b16 %v251, %v250
      %v285 = vpack.c.b16 %v253, %v252
      %v286 = vpack.c.b16 %v255, %v254
      %v287 = vpack.c.b16 %v257, %v256
      %v288 = vpack.c.b16 %v259, %v258
      %v289 = vpack.c.b16 %v261, %v260
      %v290 = vpack.c.b16 %v263, %v262
      %v291 = vpack.c.b16 %v265, %v264
      %v292 = vpack.c.b16 %v267, %v266
      %v293 = vpack.c.b16 %v269, %v268
      %v294 = vpack.c.b16 %v271, %v270
      %v295 = vpack.c.b16 %v273, %v272
      %v296 = vpack.c.b16 %v275, %v274
      %v297 = vpack.c.b16 %v277, %v276
      %v298 = vpack.c.b16 %v279, %v278
      %v299 = vpack.c.b16 %v281, %v280
      %v300 = vpack.c.b16 %v282, %v282
      %vm301 = vsmask.f32 7424
      %v303 = vshrl.u32 %v283, 16
      %v305 = vshll.u32 %v283, 16
      %v307 = vrot.slane %v305, 1
      %v308 = vor.u32 %v303, %v307
      %v310 = vshll.u32 %v284, 16
      %v312 = vrot.slane %v310, 1
      %v313 = vsel %vm301, %v308, %v312
      %v314 = vshrl.u32 %v284, 16
      %v316 = vor.u32 %v314, %v312
      %v318 = vshll.u32 %v285, 16
      %v320 = vrot.slane %v318, 1
      %v321 = vsel %vm301, %v316, %v320
      %v322 = vshrl.u32 %v285, 16
      %v324 = vor.u32 %v322, %v320
      %v326 = vshll.u32 %v286, 16
      %v328 = vrot.slane %v326, 1
      %v329 = vsel %vm301, %v324, %v328
      %v330 = vshrl.u32 %v286, 16
      %v332 = vor.u32 %v330, %v328
      %v334 = vshll.u32 %v287, 16
      %v336 = vrot.slane %v334, 1
      %v337 = vsel %vm301, %v332, %v336
      %v338 = vshrl.u32 %v287, 16
      %v340 = vor.u32 %v338, %v336
      %v342 = vshll.u32 %v288, 16
      %v344 = vrot.slane %v342, 1
      %v345 = vsel %vm301, %v340, %v344
      %v346 = vshrl.u32 %v288, 16
      %v348 = vor.u32 %v346, %v344
      %v350 = vshll.u32 %v289, 16
      %v352 = vrot.slane %v350, 1
      %v353 = vsel %vm301, %v348, %v352
      %v354 = vshrl.u32 %v289, 16
      %v356 = vor.u32 %v354, %v352
      %v358 = vshll.u32 %v290, 16
      %v360 = vrot.slane %v358, 1
      %v361 = vsel %vm301, %v356, %v360
      %v362 = vshrl.u32 %v290, 16
      %v364 = vor.u32 %v362, %v360
      %v366 = vshll.u32 %v291, 16
      %v368 = vrot.slane %v366, 1
      %v369 = vsel %vm301, %v364, %v368
      %v370 = vshrl.u32 %v291, 16
      %v372 = vor.u32 %v370, %v368
      %v374 = vshll.u32 %v292, 16
      %v376 = vrot.slane %v374, 1
      %v377 = vsel %vm301, %v372, %v376
      %v378 = vshrl.u32 %v292, 16
      %v380 = vor.u32 %v378, %v376
      %v382 = vshll.u32 %v293, 16
      %v384 = vrot.slane %v382, 1
      %v385 = vsel %vm301, %v380, %v384
      %v386 = vshrl.u32 %v293, 16
      %v388 = vor.u32 %v386, %v384
      %v390 = vshll.u32 %v294, 16
      %v392 = vrot.slane %v390, 1
      %v393 = vsel %vm301, %v388, %v392
      %v394 = vshrl.u32 %v294, 16
      %v396 = vor.u32 %v394, %v392
      %v398 = vshll.u32 %v295, 16
      %v400 = vrot.slane %v398, 1
      %v401 = vsel %vm301, %v396, %v400
      %v402 = vshrl.u32 %v295, 16
      %v404 = vor.u32 %v402, %v400
      %v406 = vshll.u32 %v296, 16
      %v408 = vrot.slane %v406, 1
      %v409 = vsel %vm301, %v404, %v408
      %v410 = vshrl.u32 %v296, 16
      %v412 = vor.u32 %v410, %v408
      %v414 = vshll.u32 %v297, 16
      %v416 = vrot.slane %v414, 1
      %v417 = vsel %vm301, %v412, %v416
      %v418 = vshrl.u32 %v297, 16
      %v420 = vor.u32 %v418, %v416
      %v422 = vshll.u32 %v298, 16
      %v424 = vrot.slane %v422, 1
      %v425 = vsel %vm301, %v420, %v424
      %v426 = vshrl.u32 %v298, 16
      %v428 = vor.u32 %v426, %v424
      %v430 = vshll.u32 %v299, 16
      %v432 = vrot.slane %v430, 1
      %v433 = vsel %vm301, %v428, %v432
      %v434 = vshrl.u32 %v299, 16
      %v436 = vor.u32 %v434, %v432
      %v438 = vshll.u32 %v300, 16
      %v440 = vrot.slane %v438, 1
      %v441 = vsel %vm301, %v436, %v440
      %v475 = vunpack.c.l.b16 %v197
      %v476 = vunpack.c.l.b16 %v198
      %v477 = vunpack.c.l.b16 %v199
      %v478 = vunpack.c.l.b16 %v200
      %v479 = vunpack.c.l.b16 %v201
      %v480 = vunpack.c.l.b16 %v202
      %v481 = vunpack.c.l.b16 %v203
      %v482 = vunpack.c.l.b16 %v204
      %v483 = vunpack.c.l.b16 %v205
      %v484 = vunpack.c.l.b16 %v206
      %v485 = vunpack.c.l.b16 %v207
      %v486 = vunpack.c.l.b16 %v208
      %v487 = vunpack.c.l.b16 %v209
      %v488 = vunpack.c.l.b16 %v210
      %v489 = vunpack.c.l.b16 %v211
      %v490 = vunpack.c.l.b16 %v212
      %v491 = vpack.c.b16 %v476, %v475
      %v492 = vpack.c.b16 %v478, %v477
      %v493 = vpack.c.b16 %v480, %v479
      %v494 = vpack.c.b16 %v482, %v481
      %v495 = vpack.c.b16 %v484, %v483
      %v496 = vpack.c.b16 %v486, %v485
      %v497 = vpack.c.b16 %v488, %v487
      %v498 = vpack.c.b16 %v490, %v489
      %507 = vmatprep.subr.bf16.mxu0 0
      %508 = vmatpush1.bf16.msra.mxu0 %v498
      %509 = vmatprep.subr.bf16.mxu0 0
      %510 = vmatpush1.bf16.msra.mxu0 %v497
      %511 = vmatprep.subr.bf16.mxu0 0
      %512 = vmatpush1.bf16.msra.mxu0 %v496
      %513 = vmatprep.subr.bf16.mxu0 0
      %514 = vmatpush1.bf16.msra.mxu0 %v495
      %515 = vmatprep.subr.bf16.mxu0 0
      %516 = vmatpush1.bf16.msra.mxu0 %v494
      %517 = vmatprep.subr.bf16.mxu0 0
      %518 = vmatpush1.bf16.msra.mxu0 %v493
      %519 = vmatprep.subr.bf16.mxu0 0
      %520 = vmatpush1.bf16.msra.mxu0 %v492
      %521 = vmatprep.subr.bf16.mxu0 0
      %522 = vmatpush1.bf16.msra.mxu0 %v491
      %523 = vmatprep.subr.bf16.mxu0 0
      %524 = vmatpush2.bf16.msra.mxu0 0
      %525 = vmatprep.subr.bf16.mxu0 0
      %526 = vmatpush2.bf16.msra.mxu0 0
      %527 = vmatprep.subr.bf16.mxu0 0
      %528 = vmatpush2.bf16.msra.mxu0 0
      %529 = vmatprep.subr.bf16.mxu0 0
      %530 = vmatpush2.bf16.msra.mxu0 0
      %531 = vmatprep.subr.bf16.mxu0 0
      %532 = vmatpush2.bf16.msra.mxu0 0
      %533 = vmatprep.subr.bf16.mxu0 0
      %534 = vmatpush2.bf16.msra.mxu0 0
      %535 = vmatprep.subr.bf16.mxu0 0
      %536 = vmatpush2.bf16.msra.mxu0 0
      %537 = vmatprep.subr.bf16.mxu0 0
      %538 = vmatpush2.bf16.msra.mxu0 0
      %539 = vmatprep.mubr.bf16.mxu0 0
      %540 = vmatmul.mubr.bf16.gmra.mxu0 %v313
      %v541 = vpop.f32.mrf.mxu0
      %v542 = vadd.f32 0.0, %v541
      %v543 = vpop.f32.mrf.mxu0
      %v544 = vpop.f32.mrf.mxu0
      %v545 = vadd.f32 0.0, %v544
      %v546 = vpop.f32.mrf.mxu0
      %547 = vmatprep.mubr.bf16.mxu0 0
      %548 = vmatmul.mubr.bf16.gmra.mxu0 %v321
      %v549 = vpop.f32.mrf.mxu0
      %v550 = vadd.f32 0.0, %v549
      %v551 = vpop.f32.mrf.mxu0
      %v552 = vpop.f32.mrf.mxu0
      %v553 = vadd.f32 0.0, %v552
      %v554 = vpop.f32.mrf.mxu0
      %555 = vmatprep.mubr.bf16.mxu0 0
      %556 = vmatmul.mubr.bf16.gmra.mxu0 %v329
      %v557 = vpop.f32.mrf.mxu0
      %v558 = vadd.f32 0.0, %v557
      %v559 = vpop.f32.mrf.mxu0
      %v560 = vpop.f32.mrf.mxu0
      %v561 = vadd.f32 0.0, %v560
      %v562 = vpop.f32.mrf.mxu0
      %563 = vmatprep.mubr.bf16.mxu0 0
      %564 = vmatmul.mubr.bf16.gmra.mxu0 %v337
      %v565 = vpop.f32.mrf.mxu0
      %v566 = vadd.f32 0.0, %v565
      %v567 = vpop.f32.mrf.mxu0
      %v568 = vpop.f32.mrf.mxu0
      %v569 = vadd.f32 0.0, %v568
      %v570 = vpop.f32.mrf.mxu0
      %571 = vmatprep.mubr.bf16.mxu0 0
      %572 = vmatmul.mubr.bf16.gmra.mxu0 %v345
      %v573 = vpop.f32.mrf.mxu0
      %v574 = vadd.f32 0.0, %v573
      %v575 = vpop.f32.mrf.mxu0
      %v576 = vpop.f32.mrf.mxu0
      %v577 = vadd.f32 0.0, %v576
      %v578 = vpop.f32.mrf.mxu0
      %579 = vmatprep.mubr.bf16.mxu0 0
      %580 = vmatmul.mubr.bf16.gmra.mxu0 %v353
      %v581 = vpop.f32.mrf.mxu0
      %v582 = vadd.f32 0.0, %v581
      %v583 = vpop.f32.mrf.mxu0
      %v584 = vpop.f32.mrf.mxu0
      %v585 = vadd.f32 0.0, %v584
      %v586 = vpop.f32.mrf.mxu0
      %587 = vmatprep.mubr.bf16.mxu0 0
      %588 = vmatmul.mubr.bf16.gmra.mxu0 %v361
      %v589 = vpop.f32.mrf.mxu0
      %v590 = vadd.f32 0.0, %v589
      %v591 = vpop.f32.mrf.mxu0
      %v592 = vpop.f32.mrf.mxu0
      %v593 = vadd.f32 0.0, %v592
      %v594 = vpop.f32.mrf.mxu0
      %595 = vmatprep.mubr.bf16.mxu0 0
      %596 = vmatmul.mubr.bf16.gmra.mxu0 %v369
      %v597 = vpop.f32.mrf.mxu0
      %v598 = vadd.f32 0.0, %v597
      %v599 = vpop.f32.mrf.mxu0
      %v600 = vpop.f32.mrf.mxu0
      %v601 = vadd.f32 0.0, %v600
      %v602 = vpop.f32.mrf.mxu0
      %603 = vmatprep.mubr.bf16.mxu0 0
      %604 = vmatmul.mubr.bf16.gmra.mxu0 %v377
      %v605 = vpop.f32.mrf.mxu0
      %v606 = vadd.f32 0.0, %v605
      %v607 = vpop.f32.mrf.mxu0
      %v608 = vpop.f32.mrf.mxu0
      %v609 = vadd.f32 0.0, %v608
      %v610 = vpop.f32.mrf.mxu0
      %611 = vmatprep.mubr.bf16.mxu0 0
      %612 = vmatmul.mubr.bf16.gmra.mxu0 %v385
      %v613 = vpop.f32.mrf.mxu0
      %v614 = vadd.f32 0.0, %v613
      %v615 = vpop.f32.mrf.mxu0
      %v616 = vpop.f32.mrf.mxu0
      %v617 = vadd.f32 0.0, %v616
      %v618 = vpop.f32.mrf.mxu0
      %619 = vmatprep.mubr.bf16.mxu0 0
      %620 = vmatmul.mubr.bf16.gmra.mxu0 %v393
      %v621 = vpop.f32.mrf.mxu0
      %v622 = vadd.f32 0.0, %v621
      %v623 = vpop.f32.mrf.mxu0
      %v624 = vpop.f32.mrf.mxu0
      %v625 = vadd.f32 0.0, %v624
      %v626 = vpop.f32.mrf.mxu0
      %627 = vmatprep.mubr.bf16.mxu0 0
      %628 = vmatmul.mubr.bf16.gmra.mxu0 %v401
      %v629 = vpop.f32.mrf.mxu0
      %v630 = vadd.f32 0.0, %v629
      %v631 = vpop.f32.mrf.mxu0
      %v632 = vpop.f32.mrf.mxu0
      %v633 = vadd.f32 0.0, %v632
      %v634 = vpop.f32.mrf.mxu0
      %635 = vmatprep.mubr.bf16.mxu0 0
      %636 = vmatmul.mubr.bf16.gmra.mxu0 %v409
      %v637 = vpop.f32.mrf.mxu0
      %v638 = vadd.f32 0.0, %v637
      %v639 = vpop.f32.mrf.mxu0
      %v640 = vpop.f32.mrf.mxu0
      %v641 = vadd.f32 0.0, %v640
      %v642 = vpop.f32.mrf.mxu0
      %643 = vmatprep.mubr.bf16.mxu0 0
      %644 = vmatmul.mubr.bf16.gmra.mxu0 %v417
      %v645 = vpop.f32.mrf.mxu0
      %v646 = vadd.f32 0.0, %v645
      %v647 = vpop.f32.mrf.mxu0
      %v648 = vpop.f32.mrf.mxu0
      %v649 = vadd.f32 0.0, %v648
      %v650 = vpop.f32.mrf.mxu0
      %651 = vmatprep.mubr.bf16.mxu0 0
      %652 = vmatmul.mubr.bf16.gmra.mxu0 %v425
      %v653 = vpop.f32.mrf.mxu0
      %v654 = vadd.f32 0.0, %v653
      %v655 = vpop.f32.mrf.mxu0
      %v656 = vpop.f32.mrf.mxu0
      %v657 = vadd.f32 0.0, %v656
      %v658 = vpop.f32.mrf.mxu0
      %659 = vmatprep.mubr.bf16.mxu0 0
      %660 = vmatmul.mubr.bf16.gmra.mxu0 %v433
      %v661 = vpop.f32.mrf.mxu0
      %v662 = vadd.f32 0.0, %v661
      %v663 = vpop.f32.mrf.mxu0
      %v664 = vpop.f32.mrf.mxu0
      %v665 = vadd.f32 0.0, %v664
      %v666 = vpop.f32.mrf.mxu0
      %667 = vmatprep.mubr.bf16.mxu0 0
      %668 = vmatmul.mubr.bf16.gmra.mxu0 %v441
      %v669 = vpop.f32.mrf.mxu0
      %v670 = vadd.f32 0.0, %v669
      %v671 = vpop.f32.mrf.mxu0
      %v672 = vpop.f32.mrf.mxu0
      %v673 = vadd.f32 0.0, %v672
      %v674 = vpop.f32.mrf.mxu0
      %675 = vdwg.mxu0
      %v709 = vunpack.c.l.b16 %v179
      %v710 = vunpack.c.l.b16 %v180
      %v711 = vunpack.c.l.b16 %v181
      %v712 = vunpack.c.l.b16 %v182
      %v713 = vunpack.c.l.b16 %v183
      %v714 = vunpack.c.l.b16 %v184
      %v715 = vunpack.c.l.b16 %v185
      %v716 = vunpack.c.l.b16 %v186
      %v717 = vunpack.c.l.b16 %v187
      %v718 = vunpack.c.l.b16 %v188
      %v719 = vunpack.c.l.b16 %v189
      %v720 = vunpack.c.l.b16 %v190
      %v721 = vunpack.c.l.b16 %v191
      %v722 = vunpack.c.l.b16 %v192
      %v723 = vunpack.c.l.b16 %v193
      %v724 = vunpack.c.l.b16 %v194
      %v725 = vpack.c.b16 %v710, %v709
      %v726 = vpack.c.b16 %v712, %v711
      %v727 = vpack.c.b16 %v714, %v713
      %v728 = vpack.c.b16 %v716, %v715
      %v729 = vpack.c.b16 %v718, %v717
      %v730 = vpack.c.b16 %v720, %v719
      %v731 = vpack.c.b16 %v722, %v721
      %v732 = vpack.c.b16 %v724, %v723
      %741 = vmatprep.subr.bf16.mxu0 0
      %742 = vmatpush1.bf16.msra.mxu0 %v732
      %743 = vmatprep.subr.bf16.mxu0 0
      %744 = vmatpush1.bf16.msra.mxu0 %v731
      %745 = vmatprep.subr.bf16.mxu0 0
      %746 = vmatpush1.bf16.msra.mxu0 %v730
      %747 = vmatprep.subr.bf16.mxu0 0
      %748 = vmatpush1.bf16.msra.mxu0 %v729
      %749 = vmatprep.subr.bf16.mxu0 0
      %750 = vmatpush1.bf16.msra.mxu0 %v728
      %751 = vmatprep.subr.bf16.mxu0 0
      %752 = vmatpush1.bf16.msra.mxu0 %v727
      %753 = vmatprep.subr.bf16.mxu0 0
      %754 = vmatpush1.bf16.msra.mxu0 %v726
      %755 = vmatprep.subr.bf16.mxu0 0
      %756 = vmatpush1.bf16.msra.mxu0 %v725
      %757 = vmatprep.subr.bf16.mxu0 0
      %758 = vmatpush2.bf16.msra.mxu0 0
      %759 = vmatprep.subr.bf16.mxu0 0
      %760 = vmatpush2.bf16.msra.mxu0 0
      %761 = vmatprep.subr.bf16.mxu0 0
      %762 = vmatpush2.bf16.msra.mxu0 0
      %763 = vmatprep.subr.bf16.mxu0 0
      %764 = vmatpush2.bf16.msra.mxu0 0
      %765 = vmatprep.subr.bf16.mxu0 0
      %766 = vmatpush2.bf16.msra.mxu0 0
      %767 = vmatprep.subr.bf16.mxu0 0
      %768 = vmatpush2.bf16.msra.mxu0 0
      %769 = vmatprep.subr.bf16.mxu0 0
      %770 = vmatpush2.bf16.msra.mxu0 0
      %771 = vmatprep.subr.bf16.mxu0 0
      %772 = vmatpush2.bf16.msra.mxu0 0
      %773 = vmatprep.mubr.bf16.mxu0 0
      %774 = vmatmul.mubr.bf16.gmra.mxu0 %v283
      %v775 = vpop.f32.mrf.mxu0
      %v776 = vadd.f32 %v542, %v775
      %v777 = vpop.f32.mrf.mxu0
      %v778 = vpop.f32.mrf.mxu0
      %v779 = vadd.f32 %v545, %v778
      %v780 = vpop.f32.mrf.mxu0
      %781 = vmatprep.mubr.bf16.mxu0 0
      %782 = vmatmul.mubr.bf16.gmra.mxu0 %v284
      %v783 = vpop.f32.mrf.mxu0
      %v784 = vadd.f32 %v550, %v783
      %v785 = vpop.f32.mrf.mxu0
      %v786 = vpop.f32.mrf.mxu0
      %v787 = vadd.f32 %v553, %v786
      %v788 = vpop.f32.mrf.mxu0
      %789 = vmatprep.mubr.bf16.mxu0 0
      %790 = vmatmul.mubr.bf16.gmra.mxu0 %v285
      %v791 = vpop.f32.mrf.mxu0
      %v792 = vadd.f32 %v558, %v791
      %v793 = vpop.f32.mrf.mxu0
      %v794 = vpop.f32.mrf.mxu0
      %v795 = vadd.f32 %v561, %v794
      %v796 = vpop.f32.mrf.mxu0
      %797 = vmatprep.mubr.bf16.mxu0 0
      %798 = vmatmul.mubr.bf16.gmra.mxu0 %v286
      %v799 = vpop.f32.mrf.mxu0
      %v800 = vadd.f32 %v566, %v799
      %v801 = vpop.f32.mrf.mxu0
      %v802 = vpop.f32.mrf.mxu0
      %v803 = vadd.f32 %v569, %v802
      %v804 = vpop.f32.mrf.mxu0
      %805 = vmatprep.mubr.bf16.mxu0 0
      %806 = vmatmul.mubr.bf16.gmra.mxu0 %v287
      %v807 = vpop.f32.mrf.mxu0
      %v808 = vadd.f32 %v574, %v807
      %v809 = vpop.f32.mrf.mxu0
      %v810 = vpop.f32.mrf.mxu0
      %v811 = vadd.f32 %v577, %v810
      %v812 = vpop.f32.mrf.mxu0
      %813 = vmatprep.mubr.bf16.mxu0 0
      %814 = vmatmul.mubr.bf16.gmra.mxu0 %v288
      %v815 = vpop.f32.mrf.mxu0
      %v816 = vadd.f32 %v582, %v815
      %v817 = vpop.f32.mrf.mxu0
      %v818 = vpop.f32.mrf.mxu0
      %v819 = vadd.f32 %v585, %v818
      %v820 = vpop.f32.mrf.mxu0
      %821 = vmatprep.mubr.bf16.mxu0 0
      %822 = vmatmul.mubr.bf16.gmra.mxu0 %v289
      %v823 = vpop.f32.mrf.mxu0
      %v824 = vadd.f32 %v590, %v823
      %v825 = vpop.f32.mrf.mxu0
      %v826 = vpop.f32.mrf.mxu0
      %v827 = vadd.f32 %v593, %v826
      %v828 = vpop.f32.mrf.mxu0
      %829 = vmatprep.mubr.bf16.mxu0 0
      %830 = vmatmul.mubr.bf16.gmra.mxu0 %v290
      %v831 = vpop.f32.mrf.mxu0
      %v832 = vadd.f32 %v598, %v831
      %v833 = vpop.f32.mrf.mxu0
      %v834 = vpop.f32.mrf.mxu0
      %v835 = vadd.f32 %v601, %v834
      %v836 = vpop.f32.mrf.mxu0
      %837 = vmatprep.mubr.bf16.mxu0 0
      %838 = vmatmul.mubr.bf16.gmra.mxu0 %v291
      %v839 = vpop.f32.mrf.mxu0
      %v840 = vadd.f32 %v606, %v839
      %v841 = vpop.f32.mrf.mxu0
      %v842 = vpop.f32.mrf.mxu0
      %v843 = vadd.f32 %v609, %v842
      %v844 = vpop.f32.mrf.mxu0
      %845 = vmatprep.mubr.bf16.mxu0 0
      %846 = vmatmul.mubr.bf16.gmra.mxu0 %v292
      %v847 = vpop.f32.mrf.mxu0
      %v848 = vadd.f32 %v614, %v847
      %v849 = vpop.f32.mrf.mxu0
      %v850 = vpop.f32.mrf.mxu0
      %v851 = vadd.f32 %v617, %v850
      %v852 = vpop.f32.mrf.mxu0
      %853 = vmatprep.mubr.bf16.mxu0 0
      %854 = vmatmul.mubr.bf16.gmra.mxu0 %v293
      %v855 = vpop.f32.mrf.mxu0
      %v856 = vadd.f32 %v622, %v855
      %v857 = vpop.f32.mrf.mxu0
      %v858 = vpop.f32.mrf.mxu0
      %v859 = vadd.f32 %v625, %v858
      %v860 = vpop.f32.mrf.mxu0
      %861 = vmatprep.mubr.bf16.mxu0 0
      %862 = vmatmul.mubr.bf16.gmra.mxu0 %v294
      %v863 = vpop.f32.mrf.mxu0
      %v864 = vadd.f32 %v630, %v863
      %v865 = vpop.f32.mrf.mxu0
      %v866 = vpop.f32.mrf.mxu0
      %v867 = vadd.f32 %v633, %v866
      %v868 = vpop.f32.mrf.mxu0
      %869 = vmatprep.mubr.bf16.mxu0 0
      %870 = vmatmul.mubr.bf16.gmra.mxu0 %v295
      %v871 = vpop.f32.mrf.mxu0
      %v872 = vadd.f32 %v638, %v871
      %v873 = vpop.f32.mrf.mxu0
      %v874 = vpop.f32.mrf.mxu0
      %v875 = vadd.f32 %v641, %v874
      %v876 = vpop.f32.mrf.mxu0
      %877 = vmatprep.mubr.bf16.mxu0 0
      %878 = vmatmul.mubr.bf16.gmra.mxu0 %v296
      %v879 = vpop.f32.mrf.mxu0
      %v880 = vadd.f32 %v646, %v879
      %v881 = vpop.f32.mrf.mxu0
      %v882 = vpop.f32.mrf.mxu0
      %v883 = vadd.f32 %v649, %v882
      %v884 = vpop.f32.mrf.mxu0
      %885 = vmatprep.mubr.bf16.mxu0 0
      %886 = vmatmul.mubr.bf16.gmra.mxu0 %v297
      %v887 = vpop.f32.mrf.mxu0
      %v888 = vadd.f32 %v654, %v887
      %v889 = vpop.f32.mrf.mxu0
      %v890 = vpop.f32.mrf.mxu0
      %v891 = vadd.f32 %v657, %v890
      %v892 = vpop.f32.mrf.mxu0
      %893 = vmatprep.mubr.bf16.mxu0 0
      %894 = vmatmul.mubr.bf16.gmra.mxu0 %v298
      %v895 = vpop.f32.mrf.mxu0
      %v896 = vadd.f32 %v662, %v895
      %v897 = vpop.f32.mrf.mxu0
      %v898 = vpop.f32.mrf.mxu0
      %v899 = vadd.f32 %v665, %v898
      %v900 = vpop.f32.mrf.mxu0
      %901 = vmatprep.mubr.bf16.mxu0 0
      %902 = vmatmul.mubr.bf16.gmra.mxu0 %v299
      %v903 = vpop.f32.mrf.mxu0
      %v904 = vadd.f32 %v670, %v903
      %v905 = vpop.f32.mrf.mxu0
      %v906 = vpop.f32.mrf.mxu0
      %v907 = vadd.f32 %v673, %v906
      %v908 = vpop.f32.mrf.mxu0
      %909 = vdwg.mxu0
      %v910 = vld [vmem:[%s138 + $0x8] sm:$0xf]
      %v911 = vld [vmem:[%s138 + $0xc] sm:$0xf]
      %v912 = vld [vmem:[%s138 + $0x10] sm:$0xf]
      %v913 = vld [vmem:[%s138 + $0x14] sm:$0xf]
      %v914 = vld [vmem:[%s138 + $0x18] sm:$0xf]
      %v915 = vld [vmem:[%s138 + $0x1c] sm:$0xf]
      %v916 = vld [vmem:[%s138 + $0x20] sm:$0xf]
      %v917 = vld [vmem:[%s138 + $0x24] sm:$0xf]
      %v918 = vld [vmem:[%s138 + $0x28] sm:$0xf]
      %v919 = vld [vmem:[%s138 + $0x2c] sm:$0xf]
      %v920 = vld [vmem:[%s138 + $0x30] sm:$0xf]
      %v921 = vld [vmem:[%s138 + $0x34] sm:$0xf]
      %v922 = vld [vmem:[%s138 + $0x38] sm:$0xf]
      %v923 = vld [vmem:[%s138 + $0x3c] sm:$0xf]
      %v924 = vld [vmem:[%s138 + $0x40] sm:$0xf]
      %v925 = vld [vmem:[%s138 + $0x44] sm:$0xf]
      %v926 = vld [vmem:[%s138 + $0x48] sm:$0xf]
      %v927 = vld [vmem:[%s138 + $0x4c] sm:$0xf]
      %v928 = vld [vmem:[%s138 + $0x50] sm:$0xf]
      %v929 = vld [vmem:[%s138 + $0x54] sm:$0xf]
      %v930 = vld [vmem:[%s138 + $0x58] sm:$0xf]
      %v931 = vld [vmem:[%s138 + $0x5c] sm:$0xf]
      %v932 = vld [vmem:[%s138 + $0x60] sm:$0xf]
      %v933 = vld [vmem:[%s138 + $0x64] sm:$0xf]
      %v934 = vld [vmem:[%s138 + $0x68] sm:$0xf]
      %v935 = vld [vmem:[%s138 + $0x6c] sm:$0xf]
      %v936 = vld [vmem:[%s138 + $0x70] sm:$0xf]
      %v937 = vld [vmem:[%s138 + $0x74] sm:$0xf]
      %v938 = vld [vmem:[%s138 + $0x78] sm:$0xf]
      %v939 = vld [vmem:[%s138 + $0x7c] sm:$0xf]
      %v940 = vld [vmem:[%s138 + $0x80] sm:$0xf]
      %v941 = vld [vmem:[%s138 + $0x84] sm:$0xf]
      %v942 = vld [vmem:[%s138 + $0x88] sm:$0xf]
      %v943 = vld [vmem:[%s138 + $0x8c] sm:$0xf]
      %v944 = vld [vmem:[%s138 + $0x90] sm:$0x1]
      %s945 = scalar_lea.vmem %s1, 128
      %v946 = vld [vmem:[%s945] sm:$0xf]
      %v947 = vld [vmem:[%s945 + $0x4] sm:$0xf]
      %v948 = vld [vmem:[%s945 + $0x8] sm:$0xf]
      %v949 = vld [vmem:[%s945 + $0xc] sm:$0xf]
      %v950 = vld [vmem:[%s945 + $0x10] sm:$0xf]
      %v951 = vld [vmem:[%s945 + $0x14] sm:$0xf]
      %v952 = vld [vmem:[%s945 + $0x18] sm:$0xf]
      %v953 = vld [vmem:[%s945 + $0x1c] sm:$0xf]
      %v954 = vld [vmem:[%s945 + $0x20] sm:$0xf]
      %v955 = vld [vmem:[%s945 + $0x24] sm:$0xf]
      %v956 = vld [vmem:[%s945 + $0x28] sm:$0xf]
      %v957 = vld [vmem:[%s945 + $0x2c] sm:$0xf]
      %v958 = vld [vmem:[%s945 + $0x30] sm:$0xf]
      %v959 = vld [vmem:[%s945 + $0x34] sm:$0xf]
      %v960 = vld [vmem:[%s945 + $0x38] sm:$0xf]
      %v961 = vld [vmem:[%s945 + $0x3c] sm:$0xf]
      %v997 = vunpack.c.l.b16 %v910
      %v998 = vunpack.c.l.b16 %v911
      %v999 = vunpack.c.l.b16 %v912
      %v1000 = vunpack.c.l.b16 %v913
      %v1001 = vunpack.c.l.b16 %v914
      %v1002 = vunpack.c.l.b16 %v915
      %v1003 = vunpack.c.l.b16 %v916
      %v1004 = vunpack.c.l.b16 %v917
      %v1005 = vunpack.c.l.b16 %v918
      %v1006 = vunpack.c.l.b16 %v919
      %v1007 = vunpack.c.l.b16 %v920
      %v1008 = vunpack.c.l.b16 %v921
      %v1009 = vunpack.c.l.b16 %v922
      %v1010 = vunpack.c.l.b16 %v923
      %v1011 = vunpack.c.l.b16 %v924
      %v1012 = vunpack.c.l.b16 %v925
      %v1013 = vunpack.c.l.b16 %v926
      %v1014 = vunpack.c.l.b16 %v927
      %v1015 = vunpack.c.l.b16 %v928
      %v1016 = vunpack.c.l.b16 %v929
      %v1017 = vunpack.c.l.b16 %v930
      %v1018 = vunpack.c.l.b16 %v931
      %v1019 = vunpack.c.l.b16 %v932
      %v1020 = vunpack.c.l.b16 %v933
      %v1021 = vunpack.c.l.b16 %v934
      %v1022 = vunpack.c.l.b16 %v935
      %v1023 = vunpack.c.l.b16 %v936
      %v1024 = vunpack.c.l.b16 %v937
      %v1025 = vunpack.c.l.b16 %v938
      %v1026 = vunpack.c.l.b16 %v939
      %v1027 = vunpack.c.l.b16 %v940
      %v1028 = vunpack.c.l.b16 %v941
      %v1029 = vunpack.c.l.b16 %v942
      %v1030 = vunpack.c.l.b16 %v943
      %v1031 = vunpack.c.l.b16 %v944
      %v1032 = vpack.c.b16 %v998, %v997
      %v1033 = vpack.c.b16 %v1000, %v999
      %v1034 = vpack.c.b16 %v1002, %v1001
      %v1035 = vpack.c.b16 %v1004, %v1003
      %v1036 = vpack.c.b16 %v1006, %v1005
      %v1037 = vpack.c.b16 %v1008, %v1007
      %v1038 = vpack.c.b16 %v1010, %v1009
      %v1039 = vpack.c.b16 %v1012, %v1011
      %v1040 = vpack.c.b16 %v1014, %v1013
      %v1041 = vpack.c.b16 %v1016, %v1015
      %v1042 = vpack.c.b16 %v1018, %v1017
      %v1043 = vpack.c.b16 %v1020, %v1019
      %v1044 = vpack.c.b16 %v1022, %v1021
      %v1045 = vpack.c.b16 %v1024, %v1023
      %v1046 = vpack.c.b16 %v1026, %v1025
      %v1047 = vpack.c.b16 %v1028, %v1027
      %v1048 = vpack.c.b16 %v1030, %v1029
      %v1049 = vpack.c.b16 %v1031, %v1031
      %v1051 = vshrl.u32 %v1032, 16
      %v1053 = vshll.u32 %v1032, 16
      %v1055 = vrot.slane %v1053, 1
      %v1056 = vor.u32 %v1051, %v1055
      %v1058 = vshll.u32 %v1033, 16
      %v1060 = vrot.slane %v1058, 1
      %v1061 = vsel %vm301, %v1056, %v1060
      %v1062 = vshrl.u32 %v1033, 16
      %v1064 = vor.u32 %v1062, %v1060
      %v1066 = vshll.u32 %v1034, 16
      %v1068 = vrot.slane %v1066, 1
      %v1069 = vsel %vm301, %v1064, %v1068
      %v1070 = vshrl.u32 %v1034, 16
      %v1072 = vor.u32 %v1070, %v1068
      %v1074 = vshll.u32 %v1035, 16
      %v1076 = vrot.slane %v1074, 1
      %v1077 = vsel %vm301, %v1072, %v1076
      %v1078 = vshrl.u32 %v1035, 16
      %v1080 = vor.u32 %v1078, %v1076
      %v1082 = vshll.u32 %v1036, 16
      %v1084 = vrot.slane %v1082, 1
      %v1085 = vsel %vm301, %v1080, %v1084
      %v1086 = vshrl.u32 %v1036, 16
      %v1088 = vor.u32 %v1086, %v1084
      %v1090 = vshll.u32 %v1037, 16
      %v1092 = vrot.slane %v1090, 1
      %v1093 = vsel %vm301, %v1088, %v1092
      %v1094 = vshrl.u32 %v1037, 16
      %v1096 = vor.u32 %v1094, %v1092
      %v1098 = vshll.u32 %v1038, 16
      %v1100 = vrot.slane %v1098, 1
      %v1101 = vsel %vm301, %v1096, %v1100
      %v1102 = vshrl.u32 %v1038, 16
      %v1104 = vor.u32 %v1102, %v1100
      %v1106 = vshll.u32 %v1039, 16
      %v1108 = vrot.slane %v1106, 1
      %v1109 = vsel %vm301, %v1104, %v1108
      %v1110 = vshrl.u32 %v1039, 16
      %v1112 = vor.u32 %v1110, %v1108
      %v1114 = vshll.u32 %v1040, 16
      %v1116 = vrot.slane %v1114, 1
      %v1117 = vsel %vm301, %v1112, %v1116
      %v1118 = vshrl.u32 %v1040, 16
      %v1120 = vor.u32 %v1118, %v1116
      %v1122 = vshll.u32 %v1041, 16
      %v1124 = vrot.slane %v1122, 1
      %v1125 = vsel %vm301, %v1120, %v1124
      %v1126 = vshrl.u32 %v1041, 16
      %v1128 = vor.u32 %v1126, %v1124
      %v1130 = vshll.u32 %v1042, 16
      %v1132 = vrot.slane %v1130, 1
      %v1133 = vsel %vm301, %v1128, %v1132
      %v1134 = vshrl.u32 %v1042, 16
      %v1136 = vor.u32 %v1134, %v1132
      %v1138 = vshll.u32 %v1043, 16
      %v1140 = vrot.slane %v1138, 1
      %v1141 = vsel %vm301, %v1136, %v1140
      %v1142 = vshrl.u32 %v1043, 16
      %v1144 = vor.u32 %v1142, %v1140
      %v1146 = vshll.u32 %v1044, 16
      %v1148 = vrot.slane %v1146, 1
      %v1149 = vsel %vm301, %v1144, %v1148
      %v1150 = vshrl.u32 %v1044, 16
      %v1152 = vor.u32 %v1150, %v1148
      %v1154 = vshll.u32 %v1045, 16
      %v1156 = vrot.slane %v1154, 1
      %v1157 = vsel %vm301, %v1152, %v1156
      %v1158 = vshrl.u32 %v1045, 16
      %v1160 = vor.u32 %v1158, %v1156
      %v1162 = vshll.u32 %v1046, 16
      %v1164 = vrot.slane %v1162, 1
      %v1165 = vsel %vm301, %v1160, %v1164
      %v1166 = vshrl.u32 %v1046, 16
      %v1168 = vor.u32 %v1166, %v1164
      %v1170 = vshll.u32 %v1047, 16
      %v1172 = vrot.slane %v1170, 1
      %v1173 = vsel %vm301, %v1168, %v1172
      %v1174 = vshrl.u32 %v1047, 16
      %v1176 = vor.u32 %v1174, %v1172
      %v1178 = vshll.u32 %v1048, 16
      %v1180 = vrot.slane %v1178, 1
      %v1181 = vsel %vm301, %v1176, %v1180
      %v1182 = vshrl.u32 %v1048, 16
      %v1184 = vor.u32 %v1182, %v1180
      %v1186 = vshll.u32 %v1049, 16
      %v1188 = vrot.slane %v1186, 1
      %v1189 = vsel %vm301, %v1184, %v1188
      %v1223 = vunpack.c.l.b16 %v946
      %v1224 = vunpack.c.l.b16 %v947
      %v1225 = vunpack.c.l.b16 %v948
      %v1226 = vunpack.c.l.b16 %v949
      %v1227 = vunpack.c.l.b16 %v950
      %v1228 = vunpack.c.l.b16 %v951
      %v1229 = vunpack.c.l.b16 %v952
      %v1230 = vunpack.c.l.b16 %v953
      %v1231 = vunpack.c.l.b16 %v954
      %v1232 = vunpack.c.l.b16 %v955
      %v1233 = vunpack.c.l.b16 %v956
      %v1234 = vunpack.c.l.b16 %v957
      %v1235 = vunpack.c.l.b16 %v958
      %v1236 = vunpack.c.l.b16 %v959
      %v1237 = vunpack.c.l.b16 %v960
      %v1238 = vunpack.c.l.b16 %v961
      %v1239 = vpack.c.b16 %v1224, %v1223
      %v1240 = vpack.c.b16 %v1226, %v1225
      %v1241 = vpack.c.b16 %v1228, %v1227
      %v1242 = vpack.c.b16 %v1230, %v1229
      %v1243 = vpack.c.b16 %v1232, %v1231
      %v1244 = vpack.c.b16 %v1234, %v1233
      %v1245 = vpack.c.b16 %v1236, %v1235
      %v1246 = vpack.c.b16 %v1238, %v1237
      %1255 = vmatprep.subr.bf16.mxu0 0
      %1256 = vmatpush1.bf16.msra.mxu0 %v1246
      %1257 = vmatprep.subr.bf16.mxu0 0
      %1258 = vmatpush1.bf16.msra.mxu0 %v1245
      %1259 = vmatprep.subr.bf16.mxu0 0
      %1260 = vmatpush1.bf16.msra.mxu0 %v1244
      %1261 = vmatprep.subr.bf16.mxu0 0
      %1262 = vmatpush1.bf16.msra.mxu0 %v1243
      %1263 = vmatprep.subr.bf16.mxu0 0
      %1264 = vmatpush1.bf16.msra.mxu0 %v1242
      %1265 = vmatprep.subr.bf16.mxu0 0
      %1266 = vmatpush1.bf16.msra.mxu0 %v1241
      %1267 = vmatprep.subr.bf16.mxu0 0
      %1268 = vmatpush1.bf16.msra.mxu0 %v1240
      %1269 = vmatprep.subr.bf16.mxu0 0
      %1270 = vmatpush1.bf16.msra.mxu0 %v1239
      %1271 = vmatprep.subr.bf16.mxu0 0
      %1272 = vmatpush2.bf16.msra.mxu0 0
      %1273 = vmatprep.subr.bf16.mxu0 0
      %1274 = vmatpush2.bf16.msra.mxu0 0
      %1275 = vmatprep.subr.bf16.mxu0 0
      %1276 = vmatpush2.bf16.msra.mxu0 0
      %1277 = vmatprep.subr.bf16.mxu0 0
      %1278 = vmatpush2.bf16.msra.mxu0 0
      %1279 = vmatprep.subr.bf16.mxu0 0
      %1280 = vmatpush2.bf16.msra.mxu0 0
      %1281 = vmatprep.subr.bf16.mxu0 0
      %1282 = vmatpush2.bf16.msra.mxu0 0
      %1283 = vmatprep.subr.bf16.mxu0 0
      %1284 = vmatpush2.bf16.msra.mxu0 0
      %1285 = vmatprep.subr.bf16.mxu0 0
      %1286 = vmatpush2.bf16.msra.mxu0 0
      %1287 = vmatprep.mubr.bf16.mxu0 0
      %1288 = vmatmul.mubr.bf16.gmra.mxu0 %v1061
      %v1289 = vpop.f32.mrf.mxu0
      %v1290 = vadd.f32 0.0, %v1289
      %v1291 = vpop.f32.mrf.mxu0
      %v1292 = vpop.f32.mrf.mxu0
      %v1293 = vadd.f32 0.0, %v1292
      %v1294 = vpop.f32.mrf.mxu0
      %1295 = vmatprep.mubr.bf16.mxu0 0
      %1296 = vmatmul.mubr.bf16.gmra.mxu0 %v1069
      %v1297 = vpop.f32.mrf.mxu0
      %v1298 = vadd.f32 0.0, %v1297
      %v1299 = vpop.f32.mrf.mxu0
      %v1300 = vpop.f32.mrf.mxu0
      %v1301 = vadd.f32 0.0, %v1300
      %v1302 = vpop.f32.mrf.mxu0
      %1303 = vmatprep.mubr.bf16.mxu0 0
      %1304 = vmatmul.mubr.bf16.gmra.mxu0 %v1077
      %v1305 = vpop.f32.mrf.mxu0
      %v1306 = vadd.f32 0.0, %v1305
      %v1307 = vpop.f32.mrf.mxu0
      %v1308 = vpop.f32.mrf.mxu0
      %v1309 = vadd.f32 0.0, %v1308
      %v1310 = vpop.f32.mrf.mxu0
      %1311 = vmatprep.mubr.bf16.mxu0 0
      %1312 = vmatmul.mubr.bf16.gmra.mxu0 %v1085
      %v1313 = vpop.f32.mrf.mxu0
      %v1314 = vadd.f32 0.0, %v1313
      %v1315 = vpop.f32.mrf.mxu0
      %v1316 = vpop.f32.mrf.mxu0
      %v1317 = vadd.f32 0.0, %v1316
      %v1318 = vpop.f32.mrf.mxu0
      %1319 = vmatprep.mubr.bf16.mxu0 0
      %1320 = vmatmul.mubr.bf16.gmra.mxu0 %v1093
      %v1321 = vpop.f32.mrf.mxu0
      %v1322 = vadd.f32 0.0, %v1321
      %v1323 = vpop.f32.mrf.mxu0
      %v1324 = vpop.f32.mrf.mxu0
      %v1325 = vadd.f32 0.0, %v1324
      %v1326 = vpop.f32.mrf.mxu0
      %1327 = vmatprep.mubr.bf16.mxu0 0
      %1328 = vmatmul.mubr.bf16.gmra.mxu0 %v1101
      %v1329 = vpop.f32.mrf.mxu0
      %v1330 = vadd.f32 0.0, %v1329
      %v1331 = vpop.f32.mrf.mxu0
      %v1332 = vpop.f32.mrf.mxu0
      %v1333 = vadd.f32 0.0, %v1332
      %v1334 = vpop.f32.mrf.mxu0
      %1335 = vmatprep.mubr.bf16.mxu0 0
      %1336 = vmatmul.mubr.bf16.gmra.mxu0 %v1109
      %v1337 = vpop.f32.mrf.mxu0
      %v1338 = vadd.f32 0.0, %v1337
      %v1339 = vpop.f32.mrf.mxu0
      %v1340 = vpop.f32.mrf.mxu0
      %v1341 = vadd.f32 0.0, %v1340
      %v1342 = vpop.f32.mrf.mxu0
      %1343 = vmatprep.mubr.bf16.mxu0 0
      %1344 = vmatmul.mubr.bf16.gmra.mxu0 %v1117
      %v1345 = vpop.f32.mrf.mxu0
      %v1346 = vadd.f32 0.0, %v1345
      %v1347 = vpop.f32.mrf.mxu0
      %v1348 = vpop.f32.mrf.mxu0
      %v1349 = vadd.f32 0.0, %v1348
      %v1350 = vpop.f32.mrf.mxu0
      %1351 = vmatprep.mubr.bf16.mxu0 0
      %1352 = vmatmul.mubr.bf16.gmra.mxu0 %v1125
      %v1353 = vpop.f32.mrf.mxu0
      %v1354 = vadd.f32 0.0, %v1353
      %v1355 = vpop.f32.mrf.mxu0
      %v1356 = vpop.f32.mrf.mxu0
      %v1357 = vadd.f32 0.0, %v1356
      %v1358 = vpop.f32.mrf.mxu0
      %1359 = vmatprep.mubr.bf16.mxu0 0
      %1360 = vmatmul.mubr.bf16.gmra.mxu0 %v1133
      %v1361 = vpop.f32.mrf.mxu0
      %v1362 = vadd.f32 0.0, %v1361
      %v1363 = vpop.f32.mrf.mxu0
      %v1364 = vpop.f32.mrf.mxu0
      %v1365 = vadd.f32 0.0, %v1364
      %v1366 = vpop.f32.mrf.mxu0
      %1367 = vmatprep.mubr.bf16.mxu0 0
      %1368 = vmatmul.mubr.bf16.gmra.mxu0 %v1141
      %v1369 = vpop.f32.mrf.mxu0
      %v1370 = vadd.f32 0.0, %v1369
      %v1371 = vpop.f32.mrf.mxu0
      %v1372 = vpop.f32.mrf.mxu0
      %v1373 = vadd.f32 0.0, %v1372
      %v1374 = vpop.f32.mrf.mxu0
      %1375 = vmatprep.mubr.bf16.mxu0 0
      %1376 = vmatmul.mubr.bf16.gmra.mxu0 %v1149
      %v1377 = vpop.f32.mrf.mxu0
      %v1378 = vadd.f32 0.0, %v1377
      %v1379 = vpop.f32.mrf.mxu0
      %v1380 = vpop.f32.mrf.mxu0
      %v1381 = vadd.f32 0.0, %v1380
      %v1382 = vpop.f32.mrf.mxu0
      %1383 = vmatprep.mubr.bf16.mxu0 0
      %1384 = vmatmul.mubr.bf16.gmra.mxu0 %v1157
      %v1385 = vpop.f32.mrf.mxu0
      %v1386 = vadd.f32 0.0, %v1385
      %v1387 = vpop.f32.mrf.mxu0
      %v1388 = vpop.f32.mrf.mxu0
      %v1389 = vadd.f32 0.0, %v1388
      %v1390 = vpop.f32.mrf.mxu0
      %1391 = vmatprep.mubr.bf16.mxu0 0
      %1392 = vmatmul.mubr.bf16.gmra.mxu0 %v1165
      %v1393 = vpop.f32.mrf.mxu0
      %v1394 = vadd.f32 0.0, %v1393
      %v1395 = vpop.f32.mrf.mxu0
      %v1396 = vpop.f32.mrf.mxu0
      %v1397 = vadd.f32 0.0, %v1396
      %v1398 = vpop.f32.mrf.mxu0
      %1399 = vmatprep.mubr.bf16.mxu0 0
      %1400 = vmatmul.mubr.bf16.gmra.mxu0 %v1173
      %v1401 = vpop.f32.mrf.mxu0
      %v1402 = vadd.f32 0.0, %v1401
      %v1403 = vpop.f32.mrf.mxu0
      %v1404 = vpop.f32.mrf.mxu0
      %v1405 = vadd.f32 0.0, %v1404
      %v1406 = vpop.f32.mrf.mxu0
      %1407 = vmatprep.mubr.bf16.mxu0 0
      %1408 = vmatmul.mubr.bf16.gmra.mxu0 %v1181
      %v1409 = vpop.f32.mrf.mxu0
      %v1410 = vadd.f32 0.0, %v1409
      %v1411 = vpop.f32.mrf.mxu0
      %v1412 = vpop.f32.mrf.mxu0
      %v1413 = vadd.f32 0.0, %v1412
      %v1414 = vpop.f32.mrf.mxu0
      %1415 = vmatprep.mubr.bf16.mxu0 0
      %1416 = vmatmul.mubr.bf16.gmra.mxu0 %v1189
      %v1417 = vpop.f32.mrf.mxu0
      %v1418 = vadd.f32 0.0, %v1417
      %v1419 = vpop.f32.mrf.mxu0
      %v1420 = vpop.f32.mrf.mxu0
      %v1421 = vadd.f32 0.0, %v1420
      %v1422 = vpop.f32.mrf.mxu0
      %1423 = vdwg.mxu0
      %v1424 = vadd.f32 %v776, %v1290
      %v1425 = vadd.f32 %v779, %v1293
      %v1426 = vadd.f32 %v784, %v1298
      %v1427 = vadd.f32 %v787, %v1301
      %v1428 = vadd.f32 %v792, %v1306
      %v1429 = vadd.f32 %v795, %v1309
      %v1430 = vadd.f32 %v800, %v1314
      %v1431 = vadd.f32 %v803, %v1317
      %v1432 = vadd.f32 %v808, %v1322
      %v1433 = vadd.f32 %v811, %v1325
      %v1434 = vadd.f32 %v816, %v1330
      %v1435 = vadd.f32 %v819, %v1333
      %v1436 = vadd.f32 %v824, %v1338
      %v1437 = vadd.f32 %v827, %v1341
      %v1438 = vadd.f32 %v832, %v1346
      %v1439 = vadd.f32 %v835, %v1349
      %v1440 = vadd.f32 %v840, %v1354
      %v1441 = vadd.f32 %v843, %v1357
      %v1442 = vadd.f32 %v848, %v1362
      %v1443 = vadd.f32 %v851, %v1365
      %v1444 = vadd.f32 %v856, %v1370
      %v1445 = vadd.f32 %v859, %v1373
      %v1446 = vadd.f32 %v864, %v1378
      %v1447 = vadd.f32 %v867, %v1381
      %v1448 = vadd.f32 %v872, %v1386
      %v1449 = vadd.f32 %v875, %v1389
      %v1450 = vadd.f32 %v880, %v1394
      %v1451 = vadd.f32 %v883, %v1397
      %v1452 = vadd.f32 %v888, %v1402
      %v1453 = vadd.f32 %v891, %v1405
      %v1454 = vadd.f32 %v896, %v1410
      %v1455 = vadd.f32 %v899, %v1413
      %v1456 = vadd.f32 %v904, %v1418
      %v1457 = vadd.f32 %v907, %v1421
      %v1458 = vld [vmem:[%s138 + $0x8] sm:$0xe]
      %s1459 = scalar_lea.vmem %s1, 192
      %v1460 = vld [vmem:[%s1459] sm:$0xf]
      %v1461 = vld [vmem:[%s1459 + $0x4] sm:$0xf]
      %v1462 = vld [vmem:[%s1459 + $0x8] sm:$0xf]
      %v1463 = vld [vmem:[%s1459 + $0xc] sm:$0xf]
      %v1464 = vld [vmem:[%s1459 + $0x10] sm:$0xf]
      %v1465 = vld [vmem:[%s1459 + $0x14] sm:$0xf]
      %v1466 = vld [vmem:[%s1459 + $0x18] sm:$0xf]
      %v1467 = vld [vmem:[%s1459 + $0x1c] sm:$0xf]
      %v1468 = vld [vmem:[%s1459 + $0x20] sm:$0xf]
      %v1469 = vld [vmem:[%s1459 + $0x24] sm:$0xf]
      %v1470 = vld [vmem:[%s1459 + $0x28] sm:$0xf]
      %v1471 = vld [vmem:[%s1459 + $0x2c] sm:$0xf]
      %v1472 = vld [vmem:[%s1459 + $0x30] sm:$0xf]
      %v1473 = vld [vmem:[%s1459 + $0x34] sm:$0xf]
      %v1474 = vld [vmem:[%s1459 + $0x38] sm:$0xf]
      %v1475 = vld [vmem:[%s1459 + $0x3c] sm:$0xf]
      %v1477 = vunpack.c.l.b16 %v1458
      %v1478 = vpack.c.b16 %v998, %v1477
      %vm1479 = vcmask 1046528
      %v1480 = vrot.slane %v1478, 1
      %v1481 = vrot.slane %v1033, 1
      %v1482 = vsel %vm1479, %v1480, %v1481
      %v1483 = vrot.slane %v1034, 1
      %v1484 = vsel %vm1479, %v1481, %v1483
      %v1485 = vrot.slane %v1035, 1
      %v1486 = vsel %vm1479, %v1483, %v1485
      %v1487 = vrot.slane %v1036, 1
      %v1488 = vsel %vm1479, %v1485, %v1487
      %v1489 = vrot.slane %v1037, 1
      %v1490 = vsel %vm1479, %v1487, %v1489
      %v1491 = vrot.slane %v1038, 1
      %v1492 = vsel %vm1479, %v1489, %v1491
      %v1493 = vrot.slane %v1039, 1
      %v1494 = vsel %vm1479, %v1491, %v1493
      %v1495 = vrot.slane %v1040, 1
      %v1496 = vsel %vm1479, %v1493, %v1495
      %v1497 = vrot.slane %v1041, 1
      %v1498 = vsel %vm1479, %v1495, %v1497
      %v1499 = vrot.slane %v1042, 1
      %v1500 = vsel %vm1479, %v1497, %v1499
      %v1501 = vrot.slane %v1043, 1
      %v1502 = vsel %vm1479, %v1499, %v1501
      %v1503 = vrot.slane %v1044, 1
      %v1504 = vsel %vm1479, %v1501, %v1503
      %v1505 = vrot.slane %v1045, 1
      %v1506 = vsel %vm1479, %v1503, %v1505
      %v1507 = vrot.slane %v1046, 1
      %v1508 = vsel %vm1479, %v1505, %v1507
      %v1509 = vrot.slane %v1047, 1
      %v1510 = vsel %vm1479, %v1507, %v1509
      %v1511 = vrot.slane %v1048, 1
      %v1512 = vsel %vm1479, %v1509, %v1511
      %v1513 = vrot.slane %v1049, 1
      %v1514 = vsel %vm1479, %v1511, %v1513
      %v1548 = vunpack.c.l.b16 %v1460
      %v1549 = vunpack.c.l.b16 %v1461
      %v1550 = vunpack.c.l.b16 %v1462
      %v1551 = vunpack.c.l.b16 %v1463
      %v1552 = vunpack.c.l.b16 %v1464
      %v1553 = vunpack.c.l.b16 %v1465
      %v1554 = vunpack.c.l.b16 %v1466
      %v1555 = vunpack.c.l.b16 %v1467
      %v1556 = vunpack.c.l.b16 %v1468
      %v1557 = vunpack.c.l.b16 %v1469
      %v1558 = vunpack.c.l.b16 %v1470
      %v1559 = vunpack.c.l.b16 %v1471
      %v1560 = vunpack.c.l.b16 %v1472
      %v1561 = vunpack.c.l.b16 %v1473
      %v1562 = vunpack.c.l.b16 %v1474
      %v1563 = vunpack.c.l.b16 %v1475
      %v1564 = vpack.c.b16 %v1549, %v1548
      %v1565 = vpack.c.b16 %v1551, %v1550
      %v1566 = vpack.c.b16 %v1553, %v1552
      %v1567 = vpack.c.b16 %v1555, %v1554
      %v1568 = vpack.c.b16 %v1557, %v1556
      %v1569 = vpack.c.b16 %v1559, %v1558
      %v1570 = vpack.c.b16 %v1561, %v1560
      %v1571 = vpack.c.b16 %v1563, %v1562
      %1580 = vmatprep.subr.bf16.mxu0 0
      %1581 = vmatpush1.bf16.msra.mxu0 %v1571
      %1582 = vmatprep.subr.bf16.mxu0 0
      %1583 = vmatpush1.bf16.msra.mxu0 %v1570
      %1584 = vmatprep.subr.bf16.mxu0 0
      %1585 = vmatpush1.bf16.msra.mxu0 %v1569
      %1586 = vmatprep.subr.bf16.mxu0 0
      %1587 = vmatpush1.bf16.msra.mxu0 %v1568
      %1588 = vmatprep.subr.bf16.mxu0 0
      %1589 = vmatpush1.bf16.msra.mxu0 %v1567
      %1590 = vmatprep.subr.bf16.mxu0 0
      %1591 = vmatpush1.bf16.msra.mxu0 %v1566
      %1592 = vmatprep.subr.bf16.mxu0 0
      %1593 = vmatpush1.bf16.msra.mxu0 %v1565
      %1594 = vmatprep.subr.bf16.mxu0 0
      %1595 = vmatpush1.bf16.msra.mxu0 %v1564
      %1596 = vmatprep.subr.bf16.mxu0 0
      %1597 = vmatpush2.bf16.msra.mxu0 0
      %1598 = vmatprep.subr.bf16.mxu0 0
      %1599 = vmatpush2.bf16.msra.mxu0 0
      %1600 = vmatprep.subr.bf16.mxu0 0
      %1601 = vmatpush2.bf16.msra.mxu0 0
      %1602 = vmatprep.subr.bf16.mxu0 0
      %1603 = vmatpush2.bf16.msra.mxu0 0
      %1604 = vmatprep.subr.bf16.mxu0 0
      %1605 = vmatpush2.bf16.msra.mxu0 0
      %1606 = vmatprep.subr.bf16.mxu0 0
      %1607 = vmatpush2.bf16.msra.mxu0 0
      %1608 = vmatprep.subr.bf16.mxu0 0
      %1609 = vmatpush2.bf16.msra.mxu0 0
      %1610 = vmatprep.subr.bf16.mxu0 0
      %1611 = vmatpush2.bf16.msra.mxu0 0
      %1612 = vmatprep.mubr.bf16.mxu0 0
      %1613 = vmatmul.mubr.bf16.gmra.mxu0 %v1482
      %v1614 = vpop.f32.mrf.mxu0
      %v1615 = vadd.f32 0.0, %v1614
      %v1616 = vpop.f32.mrf.mxu0
      %v1617 = vpop.f32.mrf.mxu0
      %v1618 = vadd.f32 0.0, %v1617
      %v1619 = vpop.f32.mrf.mxu0
      %1620 = vmatprep.mubr.bf16.mxu0 0
      %1621 = vmatmul.mubr.bf16.gmra.mxu0 %v1484
      %v1622 = vpop.f32.mrf.mxu0
      %v1623 = vadd.f32 0.0, %v1622
      %v1624 = vpop.f32.mrf.mxu0
      %v1625 = vpop.f32.mrf.mxu0
      %v1626 = vadd.f32 0.0, %v1625
      %v1627 = vpop.f32.mrf.mxu0
      %1628 = vmatprep.mubr.bf16.mxu0 0
      %1629 = vmatmul.mubr.bf16.gmra.mxu0 %v1486
      %v1630 = vpop.f32.mrf.mxu0
      %v1631 = vadd.f32 0.0, %v1630
      %v1632 = vpop.f32.mrf.mxu0
      %v1633 = vpop.f32.mrf.mxu0
      %v1634 = vadd.f32 0.0, %v1633
      %v1635 = vpop.f32.mrf.mxu0
      %1636 = vmatprep.mubr.bf16.mxu0 0
      %1637 = vmatmul.mubr.bf16.gmra.mxu0 %v1488
      %v1638 = vpop.f32.mrf.mxu0
      %v1639 = vadd.f32 0.0, %v1638
      %v1640 = vpop.f32.mrf.mxu0
      %v1641 = vpop.f32.mrf.mxu0
      %v1642 = vadd.f32 0.0, %v1641
      %v1643 = vpop.f32.mrf.mxu0
      %1644 = vmatprep.mubr.bf16.mxu0 0
      %1645 = vmatmul.mubr.bf16.gmra.mxu0 %v1490
      %v1646 = vpop.f32.mrf.mxu0
      %v1647 = vadd.f32 0.0, %v1646
      %v1648 = vpop.f32.mrf.mxu0
      %v1649 = vpop.f32.mrf.mxu0
      %v1650 = vadd.f32 0.0, %v1649
      %v1651 = vpop.f32.mrf.mxu0
      %1652 = vmatprep.mubr.bf16.mxu0 0
      %1653 = vmatmul.mubr.bf16.gmra.mxu0 %v1492
      %v1654 = vpop.f32.mrf.mxu0
      %v1655 = vadd.f32 0.0, %v1654
      %v1656 = vpop.f32.mrf.mxu0
      %v1657 = vpop.f32.mrf.mxu0
      %v1658 = vadd.f32 0.0, %v1657
      %v1659 = vpop.f32.mrf.mxu0
      %1660 = vmatprep.mubr.bf16.mxu0 0
      %1661 = vmatmul.mubr.bf16.gmra.mxu0 %v1494
      %v1662 = vpop.f32.mrf.mxu0
      %v1663 = vadd.f32 0.0, %v1662
      %v1664 = vpop.f32.mrf.mxu0
      %v1665 = vpop.f32.mrf.mxu0
      %v1666 = vadd.f32 0.0, %v1665
      %v1667 = vpop.f32.mrf.mxu0
      %1668 = vmatprep.mubr.bf16.mxu0 0
      %1669 = vmatmul.mubr.bf16.gmra.mxu0 %v1496
      %v1670 = vpop.f32.mrf.mxu0
      %v1671 = vadd.f32 0.0, %v1670
      %v1672 = vpop.f32.mrf.mxu0
      %v1673 = vpop.f32.mrf.mxu0
      %v1674 = vadd.f32 0.0, %v1673
      %v1675 = vpop.f32.mrf.mxu0
      %1676 = vmatprep.mubr.bf16.mxu0 0
      %1677 = vmatmul.mubr.bf16.gmra.mxu0 %v1498
      %v1678 = vpop.f32.mrf.mxu0
      %v1679 = vadd.f32 0.0, %v1678
      %v1680 = vpop.f32.mrf.mxu0
      %v1681 = vpop.f32.mrf.mxu0
      %v1682 = vadd.f32 0.0, %v1681
      %v1683 = vpop.f32.mrf.mxu0
      %1684 = vmatprep.mubr.bf16.mxu0 0
      %1685 = vmatmul.mubr.bf16.gmra.mxu0 %v1500
      %v1686 = vpop.f32.mrf.mxu0
      %v1687 = vadd.f32 0.0, %v1686
      %v1688 = vpop.f32.mrf.mxu0
      %v1689 = vpop.f32.mrf.mxu0
      %v1690 = vadd.f32 0.0, %v1689
      %v1691 = vpop.f32.mrf.mxu0
      %1692 = vmatprep.mubr.bf16.mxu0 0
      %1693 = vmatmul.mubr.bf16.gmra.mxu0 %v1502
      %v1694 = vpop.f32.mrf.mxu0
      %v1695 = vadd.f32 0.0, %v1694
      %v1696 = vpop.f32.mrf.mxu0
      %v1697 = vpop.f32.mrf.mxu0
      %v1698 = vadd.f32 0.0, %v1697
      %v1699 = vpop.f32.mrf.mxu0
      %1700 = vmatprep.mubr.bf16.mxu0 0
      %1701 = vmatmul.mubr.bf16.gmra.mxu0 %v1504
      %v1702 = vpop.f32.mrf.mxu0
      %v1703 = vadd.f32 0.0, %v1702
      %v1704 = vpop.f32.mrf.mxu0
      %v1705 = vpop.f32.mrf.mxu0
      %v1706 = vadd.f32 0.0, %v1705
      %v1707 = vpop.f32.mrf.mxu0
      %1708 = vmatprep.mubr.bf16.mxu0 0
      %1709 = vmatmul.mubr.bf16.gmra.mxu0 %v1506
      %v1710 = vpop.f32.mrf.mxu0
      %v1711 = vadd.f32 0.0, %v1710
      %v1712 = vpop.f32.mrf.mxu0
      %v1713 = vpop.f32.mrf.mxu0
      %v1714 = vadd.f32 0.0, %v1713
      %v1715 = vpop.f32.mrf.mxu0
      %1716 = vmatprep.mubr.bf16.mxu0 0
      %1717 = vmatmul.mubr.bf16.gmra.mxu0 %v1508
      %v1718 = vpop.f32.mrf.mxu0
      %v1719 = vadd.f32 0.0, %v1718
      %v1720 = vpop.f32.mrf.mxu0
      %v1721 = vpop.f32.mrf.mxu0
      %v1722 = vadd.f32 0.0, %v1721
      %v1723 = vpop.f32.mrf.mxu0
      %1724 = vmatprep.mubr.bf16.mxu0 0
      %1725 = vmatmul.mubr.bf16.gmra.mxu0 %v1510
      %v1726 = vpop.f32.mrf.mxu0
      %v1727 = vadd.f32 0.0, %v1726
      %v1728 = vpop.f32.mrf.mxu0
      %v1729 = vpop.f32.mrf.mxu0
      %v1730 = vadd.f32 0.0, %v1729
      %v1731 = vpop.f32.mrf.mxu0
      %1732 = vmatprep.mubr.bf16.mxu0 0
      %1733 = vmatmul.mubr.bf16.gmra.mxu0 %v1512
      %v1734 = vpop.f32.mrf.mxu0
      %v1735 = vadd.f32 0.0, %v1734
      %v1736 = vpop.f32.mrf.mxu0
      %v1737 = vpop.f32.mrf.mxu0
      %v1738 = vadd.f32 0.0, %v1737
      %v1739 = vpop.f32.mrf.mxu0
      %1740 = vmatprep.mubr.bf16.mxu0 0
      %1741 = vmatmul.mubr.bf16.gmra.mxu0 %v1514
      %v1742 = vpop.f32.mrf.mxu0
      %v1743 = vadd.f32 0.0, %v1742
      %v1744 = vpop.f32.mrf.mxu0
      %v1745 = vpop.f32.mrf.mxu0
      %v1746 = vadd.f32 0.0, %v1745
      %v1747 = vpop.f32.mrf.mxu0
      %1748 = vdwg.mxu0
      %v1749 = vadd.f32 %v1424, %v1615
      %v1750 = vadd.f32 %v1425, %v1618
      %v1751 = vadd.f32 %v1426, %v1623
      %v1752 = vadd.f32 %v1427, %v1626
      %v1753 = vadd.f32 %v1428, %v1631
      %v1754 = vadd.f32 %v1429, %v1634
      %v1755 = vadd.f32 %v1430, %v1639
      %v1756 = vadd.f32 %v1431, %v1642
      %v1757 = vadd.f32 %v1432, %v1647
      %v1758 = vadd.f32 %v1433, %v1650
      %v1759 = vadd.f32 %v1434, %v1655
      %v1760 = vadd.f32 %v1435, %v1658
      %v1761 = vadd.f32 %v1436, %v1663
      %v1762 = vadd.f32 %v1437, %v1666
      %v1763 = vadd.f32 %v1438, %v1671
      %v1764 = vadd.f32 %v1439, %v1674
      %v1765 = vadd.f32 %v1440, %v1679
      %v1766 = vadd.f32 %v1441, %v1682
      %v1767 = vadd.f32 %v1442, %v1687
      %v1768 = vadd.f32 %v1443, %v1690
      %v1769 = vadd.f32 %v1444, %v1695
      %v1770 = vadd.f32 %v1445, %v1698
      %v1771 = vadd.f32 %v1446, %v1703
      %v1772 = vadd.f32 %v1447, %v1706
      %v1773 = vadd.f32 %v1448, %v1711
      %v1774 = vadd.f32 %v1449, %v1714
      %v1775 = vadd.f32 %v1450, %v1719
      %v1776 = vadd.f32 %v1451, %v1722
      %v1777 = vadd.f32 %v1452, %v1727
      %v1778 = vadd.f32 %v1453, %v1730
      %v1779 = vadd.f32 %v1454, %v1735
      %v1780 = vadd.f32 %v1455, %v1738
      %v1781 = vadd.f32 %v1456, %v1743
      %v1782 = vadd.f32 %v1457, %v1746
      %v1783 = vmul.f32 %v1749, 0.2
      %v1784 = vmul.f32 %v1750, 0.2
      %v1785 = vmul.f32 %v1751, 0.2
      %v1786 = vmul.f32 %v1752, 0.2
      %v1787 = vmul.f32 %v1753, 0.2
      %v1788 = vmul.f32 %v1754, 0.2
      %v1789 = vmul.f32 %v1755, 0.2
      %v1790 = vmul.f32 %v1756, 0.2
      %v1791 = vmul.f32 %v1757, 0.2
      %v1792 = vmul.f32 %v1758, 0.2
      %v1793 = vmul.f32 %v1759, 0.2
      %v1794 = vmul.f32 %v1760, 0.2
      %v1795 = vmul.f32 %v1761, 0.2
      %v1796 = vmul.f32 %v1762, 0.2
      %v1797 = vmul.f32 %v1763, 0.2
      %v1798 = vmul.f32 %v1764, 0.2
      %v1799 = vmul.f32 %v1765, 0.2
      %v1800 = vmul.f32 %v1766, 0.2
      %v1801 = vmul.f32 %v1767, 0.2
      %v1802 = vmul.f32 %v1768, 0.2
      %v1803 = vmul.f32 %v1769, 0.2
      %v1804 = vmul.f32 %v1770, 0.2
      %v1805 = vmul.f32 %v1771, 0.2
      %v1806 = vmul.f32 %v1772, 0.2
      %v1807 = vmul.f32 %v1773, 0.2
      %v1808 = vmul.f32 %v1774, 0.2
      %v1809 = vmul.f32 %v1775, 0.2
      %v1810 = vmul.f32 %v1776, 0.2
      %v1811 = vmul.f32 %v1777, 0.2
      %v1812 = vmul.f32 %v1778, 0.2
      %v1813 = vmul.f32 %v1779, 0.2
      %v1814 = vmul.f32 %v1780, 0.2
      %v1815 = vmul.f32 %v1781, 0.2
      %v1816 = vmul.f32 %v1782, 0.2
      %v1817 = vmax.f32 %v1749, %v1783
      %v1818 = vmax.f32 %v1750, %v1784
      %v1819 = vmax.f32 %v1751, %v1785
      %v1820 = vmax.f32 %v1752, %v1786
      %v1821 = vmax.f32 %v1753, %v1787
      %v1822 = vmax.f32 %v1754, %v1788
      %v1823 = vmax.f32 %v1755, %v1789
      %v1824 = vmax.f32 %v1756, %v1790
      %v1825 = vmax.f32 %v1757, %v1791
      %v1826 = vmax.f32 %v1758, %v1792
      %v1827 = vmax.f32 %v1759, %v1793
      %v1828 = vmax.f32 %v1760, %v1794
      %v1829 = vmax.f32 %v1761, %v1795
      %v1830 = vmax.f32 %v1762, %v1796
      %v1831 = vmax.f32 %v1763, %v1797
      %v1832 = vmax.f32 %v1764, %v1798
      %v1833 = vmax.f32 %v1765, %v1799
      %v1834 = vmax.f32 %v1766, %v1800
      %v1835 = vmax.f32 %v1767, %v1801
      %v1836 = vmax.f32 %v1768, %v1802
      %v1837 = vmax.f32 %v1769, %v1803
      %v1838 = vmax.f32 %v1770, %v1804
      %v1839 = vmax.f32 %v1771, %v1805
      %v1840 = vmax.f32 %v1772, %v1806
      %v1841 = vmax.f32 %v1773, %v1807
      %v1842 = vmax.f32 %v1774, %v1808
      %v1843 = vmax.f32 %v1775, %v1809
      %v1844 = vmax.f32 %v1776, %v1810
      %v1845 = vmax.f32 %v1777, %v1811
      %v1846 = vmax.f32 %v1778, %v1812
      %v1847 = vmax.f32 %v1779, %v1813
      %v1848 = vmax.f32 %v1780, %v1814
      %v1849 = vmax.f32 %v1781, %v1815
      %v1850 = vmax.f32 %v1782, %v1816
      %v1851 = vpack.c.bf16 %v1818, %v1817
      %v1852 = vpack.c.bf16 %v1820, %v1819
      %v1853 = vpack.c.bf16 %v1822, %v1821
      %v1854 = vpack.c.bf16 %v1824, %v1823
      %v1855 = vpack.c.bf16 %v1826, %v1825
      %v1856 = vpack.c.bf16 %v1828, %v1827
      %v1857 = vpack.c.bf16 %v1830, %v1829
      %v1858 = vpack.c.bf16 %v1832, %v1831
      %v1859 = vpack.c.bf16 %v1834, %v1833
      %v1860 = vpack.c.bf16 %v1836, %v1835
      %v1861 = vpack.c.bf16 %v1838, %v1837
      %v1862 = vpack.c.bf16 %v1840, %v1839
      %v1863 = vpack.c.bf16 %v1842, %v1841
      %v1864 = vpack.c.bf16 %v1844, %v1843
      %v1865 = vpack.c.bf16 %v1846, %v1845
      %v1866 = vpack.c.bf16 %v1848, %v1847
      %v1867 = vpack.c.bf16 %v1850, %v1849
      %v1885 = vunpack.c.l.b16 %v1851
      %v1886 = vunpack.c.h.b16 %v1851
      %v1887 = vunpack.c.l.b16 %v1852
      %v1888 = vunpack.c.h.b16 %v1852
      %v1889 = vunpack.c.l.b16 %v1853
      %v1890 = vunpack.c.h.b16 %v1853
      %v1891 = vunpack.c.l.b16 %v1854
      %v1892 = vunpack.c.h.b16 %v1854
      %v1893 = vunpack.c.l.b16 %v1855
      %v1894 = vunpack.c.h.b16 %v1855
      %v1895 = vunpack.c.l.b16 %v1856
      %v1896 = vunpack.c.h.b16 %v1856
      %v1897 = vunpack.c.l.b16 %v1857
      %v1898 = vunpack.c.h.b16 %v1857
      %v1899 = vunpack.c.l.b16 %v1858
      %v1900 = vunpack.c.h.b16 %v1858
      %v1901 = vunpack.c.l.b16 %v1859
      %v1902 = vunpack.c.h.b16 %v1859
      %v1903 = vunpack.c.l.b16 %v1860
      %v1904 = vunpack.c.h.b16 %v1860
      %v1905 = vunpack.c.l.b16 %v1861
      %v1906 = vunpack.c.h.b16 %v1861
      %v1907 = vunpack.c.l.b16 %v1862
      %v1908 = vunpack.c.h.b16 %v1862
      %v1909 = vunpack.c.l.b16 %v1863
      %v1910 = vunpack.c.h.b16 %v1863
      %v1911 = vunpack.c.l.b16 %v1864
      %v1912 = vunpack.c.h.b16 %v1864
      %v1913 = vunpack.c.l.b16 %v1865
      %v1914 = vunpack.c.h.b16 %v1865
      %v1915 = vunpack.c.l.b16 %v1866
      %v1916 = vunpack.c.h.b16 %v1866
      %v1917 = vunpack.c.l.b16 %v1867
      %v1918 = vunpack.c.h.b16 %v1867
      %v1919 = vpack.c.b16 %v1885, %v1885
      %v1920 = vpack.c.b16 %v1886, %v1886
      %v1921 = vpack.c.b16 %v1887, %v1887
      %v1922 = vpack.c.b16 %v1888, %v1888
      %v1923 = vpack.c.b16 %v1889, %v1889
      %v1924 = vpack.c.b16 %v1890, %v1890
      %v1925 = vpack.c.b16 %v1891, %v1891
      %v1926 = vpack.c.b16 %v1892, %v1892
      %v1927 = vpack.c.b16 %v1893, %v1893
      %v1928 = vpack.c.b16 %v1894, %v1894
      %v1929 = vpack.c.b16 %v1895, %v1895
      %v1930 = vpack.c.b16 %v1896, %v1896
      %v1931 = vpack.c.b16 %v1897, %v1897
      %v1932 = vpack.c.b16 %v1898, %v1898
      %v1933 = vpack.c.b16 %v1899, %v1899
      %v1934 = vpack.c.b16 %v1900, %v1900
      %v1935 = vpack.c.b16 %v1901, %v1901
      %v1936 = vpack.c.b16 %v1902, %v1902
      %v1937 = vpack.c.b16 %v1903, %v1903
      %v1938 = vpack.c.b16 %v1904, %v1904
      %v1939 = vpack.c.b16 %v1905, %v1905
      %v1940 = vpack.c.b16 %v1906, %v1906
      %v1941 = vpack.c.b16 %v1907, %v1907
      %v1942 = vpack.c.b16 %v1908, %v1908
      %v1943 = vpack.c.b16 %v1909, %v1909
      %v1944 = vpack.c.b16 %v1910, %v1910
      %v1945 = vpack.c.b16 %v1911, %v1911
      %v1946 = vpack.c.b16 %v1912, %v1912
      %v1947 = vpack.c.b16 %v1913, %v1913
      %v1948 = vpack.c.b16 %v1914, %v1914
      %v1949 = vpack.c.b16 %v1915, %v1915
      %v1950 = vpack.c.b16 %v1916, %v1916
      %v1951 = vpack.c.b16 %v1917, %v1917
      %v1952 = vpack.c.b16 %v1918, %v1918
      %1987 = vst [vmem:[%s143] sm:$0xf] %v1919
      %1988 = vst [vmem:[%s143 + $0x4] sm:$0xf] %v1920
      %1989 = vst [vmem:[%s143 + $0x8] sm:$0xf] %v1921
      %1990 = vst [vmem:[%s143 + $0xc] sm:$0xf] %v1922
      %1991 = vst [vmem:[%s143 + $0x10] sm:$0xf] %v1923
      %1992 = vst [vmem:[%s143 + $0x14] sm:$0xf] %v1924
      %1993 = vst [vmem:[%s143 + $0x18] sm:$0xf] %v1925
      %1994 = vst [vmem:[%s143 + $0x1c] sm:$0xf] %v1926
      %1995 = vst [vmem:[%s143 + $0x20] sm:$0xf] %v1927
      %1996 = vst [vmem:[%s143 + $0x24] sm:$0xf] %v1928
      %1997 = vst [vmem:[%s143 + $0x28] sm:$0xf] %v1929
      %1998 = vst [vmem:[%s143 + $0x2c] sm:$0xf] %v1930
      %1999 = vst [vmem:[%s143 + $0x30] sm:$0xf] %v1931
      %2000 = vst [vmem:[%s143 + $0x34] sm:$0xf] %v1932
      %2001 = vst [vmem:[%s143 + $0x38] sm:$0xf] %v1933
      %2002 = vst [vmem:[%s143 + $0x3c] sm:$0xf] %v1934
      %2003 = vst [vmem:[%s143 + $0x40] sm:$0xf] %v1935
      %2004 = vst [vmem:[%s143 + $0x44] sm:$0xf] %v1936
      %2005 = vst [vmem:[%s143 + $0x48] sm:$0xf] %v1937
      %2006 = vst [vmem:[%s143 + $0x4c] sm:$0xf] %v1938
      %2007 = vst [vmem:[%s143 + $0x50] sm:$0xf] %v1939
      %2008 = vst [vmem:[%s143 + $0x54] sm:$0xf] %v1940
      %2009 = vst [vmem:[%s143 + $0x58] sm:$0xf] %v1941
      %2010 = vst [vmem:[%s143 + $0x5c] sm:$0xf] %v1942
      %2011 = vst [vmem:[%s143 + $0x60] sm:$0xf] %v1943
      %2012 = vst [vmem:[%s143 + $0x64] sm:$0xf] %v1944
      %2013 = vst [vmem:[%s143 + $0x68] sm:$0xf] %v1945
      %2014 = vst [vmem:[%s143 + $0x6c] sm:$0xf] %v1946
      %2015 = vst [vmem:[%s143 + $0x70] sm:$0xf] %v1947
      %2016 = vst [vmem:[%s143 + $0x74] sm:$0xf] %v1948
      %2017 = vst [vmem:[%s143 + $0x78] sm:$0xf] %v1949
      %2018 = vst [vmem:[%s143 + $0x7c] sm:$0xf] %v1950
      %2019 = vst [vmem:[%s143 + $0x80] sm:$0xf] %v1951
      %2020 = vst [vmem:[%s143 + $0x84] sm:$0xf] %v1952
      %p2021 = scmp.lt.s32.totalorder %s13, 1
      %s2022 = scalar_select %p2021, %s13, 1
      %s2023 = smul.addr %s2022, 34
      %s2024 = smul.addr %s2023, 4
      %s2025 = scalar_lea.vmem %s2, %s2024
      // Predicated region
      $region29: #{dcgan_discriminator_forward.5} parent=27 // pred_check
        %p2026 = pneg %p78
      $region30: #{dcgan_discriminator_forward.5} parent=27 // pred_check_branch
        %2028 = sbr.rel (%p2026) target = $region32
      $region31: #{dcgan_discriminator_forward.5} parent=27 // pred_region
        _
      $region32: #{dcgan_discriminator_forward.5} parent=27 // pred_fallthru
        _
    $region28: #{dcgan_discriminator_forward.5} parent=5 // pred_fallthru
      _
    %p2029 = scmp.le.s32.totalorder 2, %s8
    // Predicated region
    $region33: #{dcgan_discriminator_forward.5} parent=5 // pred_check
      %p2030 = pneg %p2029
    $region34: #{dcgan_discriminator_forward.5} parent=5 // pred_check_branch
      %2032 = sbr.rel (%p2030) target = $region36
    $region35: #{dcgan_discriminator_forward.5} parent=5 // pred_region
      %s2033 = ssub.s32 %s8, 2
      // Predicated region
      $region37: #{dcgan_discriminator_forward.5} parent=35 // pred_check
        %p2034 = pneg %p84
      $region38: #{dcgan_discriminator_forward.5} parent=35 // pred_check_branch
        %2036 = sbr.rel (%p2034) target = $region40
      $region39: #{dcgan_discriminator_forward.5} parent=35 // pred_region
        %p2037 = scmp.lt.s32.totalorder %s14, 1
        %s2038 = scalar_select %p2037, %s14, 1
        %s2039 = smul.addr %s2038, 34
        %s2040 = smul.addr %s2039, 4
        %s2041 = scalar_lea.vmem %s2, %s2040
      $region40: #{dcgan_discriminator_forward.5} parent=35 // pred_fallthru
        _
    $region36: #{dcgan_discriminator_forward.5} parent=5 // pred_fallthru
      _
  $region6: #{dcgan_discriminator_forward.5} parent=0 // loop_footer
    %s12 = sadd.s32 1, %s8
  $region7: #{dcgan_discriminator_forward.5} parent=0 // loop_footer_branch
    %7 = sbr.rel target = $region3
  $region8: #{dcgan_discriminator_forward.5} parent=0 // loop_exit
    _

// kernel: dcgan_discriminator_forward.6
$region0: #{dcgan_discriminator_forward.6}
  #allocation0 [shape = 'u32[]', space=smem, size = 0x4, offset = 0x4, fixed_abs, tag = 'smem constant byte address 0x4 - core index']
  #allocation1 [shape = 'u32[144,128]{1,0:T(1,128)}', space=vmem, size = 0x12000, scoped, tag = 'internal scratch']
  %s0 = inlined_call_operand.vmem [shape: bf16[2,88,128], index: 0, kind: input, shape index: {}]
  %s1 = inlined_call_operand.vmem [shape: bf16[4,128,128], index: 1, kind: input, shape index: {}]
  %s2 = inlined_call_operand.vmem [shape: f32[72,1], index: 2, kind: input, shape index: {}]
  %s3 = inlined_call_operand.vmem [shape: bf16[2,72,128], index: 3, kind: output, shape index: {0}]
  %s4 = inlined_call_operand.vmem [shape: f32[2,2,128], index: 4, kind: output, shape index: {1}]
  %5 = xla_tuple %s3, %s4
  %s6 = sld [smem:[#allocation0]]
  $region53: #{dcgan_discriminator_forward.6} parent=0
    _
  %s8 = ssub.s32 1, %s6
  %s9 = scalar_select 0, %s8, %s6
  loop: start=0, step=1, limit=4
  $region2: #{dcgan_discriminator_forward.6} parent=0 // loop_pre_header
    _
  $region3: #{dcgan_discriminator_forward.6} parent=0 // loop_header
    %s11 = sphi 0, %s15
    %p12 = scmp.ge.s32.totalorder %s11, 4
    %s21 = sphi 0, %s23
    %s24 = sphi 0, %s21
    %s25 = sphi 0, %s24
    %s41 = sphi 0, %s25
    %s45 = sphi 0, %s45
    %s47 = sphi 0, %s45
    %s48 = sphi 0, %s47
    %s62 = sphi 0, %s48
    %s66 = sphi 0, %s66
    %s68 = sphi 0, %s66
    %s69 = sphi 0, %s68
    %s83 = sphi 0, %s69
    %s89 = sphi 0, %s91
    %s92 = sphi 0, %s89
    %s93 = sphi 0, %s92
    %s109 = sphi 0, %s93
    %s115 = sphi 0, %s117
    %s118 = sphi 0, %s115
    %s119 = sphi 0, %s118
    %s135 = sphi 0, %s119
  $region4: #{dcgan_discriminator_forward.6} parent=0 // loop_header_branch
    %14 = sbr.rel (%p12) target = $region8
  $region5: #{dcgan_discriminator_forward.6} parent=0 // loop_body
    %s16 = ssub.s32 %s11, 1
    %s17 = ssub.s32 %s11, 2
    %s18 = sadd.s32 %s11, 1
    %s19 = ssub.s32 %s11, %s18
    %p20 = scmp.eq.s32.totalorder %s19, 0
    %s22 = sadd.s32 %s21, 1
    %s23 = scalar_select %p20, %s21, %s22
    %p26 = pneg %p20
    %p27 = scmp.eq.s32.totalorder %s11, 1
    %p28 = por %p26, %p27
    %p29 = scmp.ne.s32.totalorder %s21, %s24
    %p30 = scmp.eq.s32.totalorder %s11, 0
    %p31 = por %p29, %p30
    %p32 = scmp.ne.s32.totalorder %s21, %s24
    %p33 = scmp.eq.s32.totalorder %s16, 1
    %p34 = por %p32, %p33
    %p35 = scmp.ne.s32.totalorder %s24, %s25
    %p36 = scmp.eq.s32.totalorder %s16, 0
    %p37 = por %p35, %p36
    %p38 = scmp.ne.s32.totalorder %s24, %s25
    %p39 = scmp.eq.s32.totalorder %s17, 1
    %p40 = por %p38, %p39
    %p42 = scmp.ne.s32.totalorder %s25, %s41
    %p43 = scmp.eq.s32.totalorder %s17, 0
    %p44 = por %p42, %p43
    %s46 = sadd.s32 %s45, 1
    %p49 = scmp.eq.s32.totalorder %s11, 1
    %p50 = scmp.ne.s32.totalorder %s45, %s47
    %p51 = scmp.eq.s32.totalorder %s11, 0
    %p52 = por %p50, %p51
    %p53 = scmp.ne.s32.totalorder %s45, %s47
    %p54 = scmp.eq.s32.totalorder %s16, 1
    %p55 = por %p53, %p54
    %p56 = scmp.ne.s32.totalorder %s47, %s48
    %p57 = scmp.eq.s32.totalorder %s16, 0
    %p58 = por %p56, %p57
    %p59 = scmp.ne.s32.totalorder %s47, %s48
    %p60 = scmp.eq.s32.totalorder %s17, 1
    %p61 = por %p59, %p60
    %p63 = scmp.ne.s32.totalorder %s48, %s62
    %p64 = scmp.eq.s32.totalorder %s17, 0
    %p65 = por %p63, %p64
    %s67 = sadd.s32 %s66, 1
    %p70 = scmp.eq.s32.totalorder %s11, 1
    %p71 = scmp.ne.s32.totalorder %s66, %s68
    %p72 = scmp.eq.s32.totalorder %s11, 0
    %p73 = por %p71, %p72
    %p74 = scmp.ne.s32.totalorder %s66, %s68
    %p75 = scmp.eq.s32.totalorder %s16, 1
    %p76 = por %p74, %p75
    %p77 = scmp.ne.s32.totalorder %s68, %s69
    %p78 = scmp.eq.s32.totalorder %s16, 0
    %p79 = por %p77, %p78
    %p80 = scmp.ne.s32.totalorder %s68, %s69
    %p81 = scmp.eq.s32.totalorder %s17, 1
    %p82 = por %p80, %p81
    %p84 = scmp.ne.s32.totalorder %s69, %s83
    %p85 = scmp.eq.s32.totalorder %s17, 0
    %p86 = por %p84, %p85
    %s87 = ssub.s32 %s11, %s18
    %p88 = scmp.eq.s32.totalorder %s87, 0
    %s90 = sadd.s32 %s89, 1
    %s91 = scalar_select %p88, %s89, %s90
    %p94 = pneg %p88
    %p95 = scmp.eq.s32.totalorder %s11, 1
    %p96 = por %p94, %p95
    %p97 = scmp.ne.s32.totalorder %s89, %s92
    %p98 = scmp.eq.s32.totalorder %s11, 0
    %p99 = por %p97, %p98
    %p100 = scmp.ne.s32.totalorder %s89, %s92
    %p101 = scmp.eq.s32.totalorder %s16, 1
    %p102 = por %p100, %p101
    %p103 = scmp.ne.s32.totalorder %s92, %s93
    %p104 = scmp.eq.s32.totalorder %s16, 0
    %p105 = por %p103, %p104
    %p106 = scmp.ne.s32.totalorder %s92, %s93
    %p107 = scmp.eq.s32.totalorder %s17, 1
    %p108 = por %p106, %p107
    %p110 = scmp.ne.s32.totalorder %s93, %s109
    %p111 = scmp.eq.s32.totalorder %s17, 0
    %p112 = por %p110, %p111
    %s113 = ssub.s32 %s11, %s18
    %p114 = scmp.eq.s32.totalorder %s113, 0
    %s116 = sadd.s32 %s115, 1
    %s117 = scalar_select %p114, %s115, %s116
    %p120 = pneg %p114
    %p121 = scmp.eq.s32.totalorder %s11, 1
    %p122 = por %p120, %p121
    %p123 = scmp.ne.s32.totalorder %s115, %s118
    %p124 = scmp.eq.s32.totalorder %s11, 0
    %p125 = por %p123, %p124
    %p126 = scmp.ne.s32.totalorder %s115, %s118
    %p127 = scmp.eq.s32.totalorder %s16, 1
    %p128 = por %p126, %p127
    %p129 = scmp.ne.s32.totalorder %s118, %s119
    %p130 = scmp.eq.s32.totalorder %s16, 0
    %p131 = por %p129, %p130
    %p132 = scmp.ne.s32.totalorder %s118, %s119
    %p133 = scmp.eq.s32.totalorder %s17, 1
    %p134 = por %p132, %p133
    %p136 = scmp.ne.s32.totalorder %s119, %s135
    %p137 = scmp.eq.s32.totalorder %s17, 0
    %p138 = por %p136, %p137
    %p139 = scmp.le.s32.totalorder 1, %s11
    %p140 = scmp.lt.s32.totalorder %s11, 3
    %p141 = pnand %p139, %p140
    %p142 = pneg %p141
    // Predicated region
    $region9: #{dcgan_discriminator_forward.6} parent=5 // pred_check
      _
    $region10: #{dcgan_discriminator_forward.6} parent=5 // pred_check_branch
      %144 = sbr.rel (%p141) target = $region12
    $region11: #{dcgan_discriminator_forward.6} parent=5 // pred_region
      %s145 = ssub.s32 %s11, 1
      // Predicated region
      $region13: #{dcgan_discriminator_forward.6} parent=11 // pred_check
        %p146 = pneg %p58
      $region14: #{dcgan_discriminator_forward.6} parent=11 // pred_check_branch
        %148 = sbr.rel (%p146) target = $region16
      $region15: #{dcgan_discriminator_forward.6} parent=11 // pred_region
        _
      $region16: #{dcgan_discriminator_forward.6} parent=11 // pred_fallthru
        _
      // Predicated region
      $region17: #{dcgan_discriminator_forward.6} parent=11 // pred_check
        %p149 = pneg %p79
      $region18: #{dcgan_discriminator_forward.6} parent=11 // pred_check_branch
        %151 = sbr.rel (%p149) target = $region20
      $region19: #{dcgan_discriminator_forward.6} parent=11 // pred_region
        _
      $region20: #{dcgan_discriminator_forward.6} parent=11 // pred_fallthru
        _
    $region12: #{dcgan_discriminator_forward.6} parent=5 // pred_fallthru
      _
    %p152 = scmp.lt.s32.totalorder %s11, 2
    // Predicated region
    $region21: #{dcgan_discriminator_forward.6} parent=5 // pred_check
      %p153 = pneg %p152
    $region22: #{dcgan_discriminator_forward.6} parent=5 // pred_check_branch
      %155 = sbr.rel (%p153) target = $region24
    $region23: #{dcgan_discriminator_forward.6} parent=5 // pred_region
      // Predicated region
      $region25: #{dcgan_discriminator_forward.6} parent=23 // pred_check
        %p156 = pneg %p31
      $region26: #{dcgan_discriminator_forward.6} parent=23 // pred_check_branch
        %158 = sbr.rel (%p156) target = $region28
      $region27: #{dcgan_discriminator_forward.6} parent=23 // pred_region
        %p159 = scmp.lt.s32.totalorder %s11, 1
        %s160 = scalar_select %p159, %s11, 1
        %s161 = smul.addr %s160, 11
        %s162 = smul.addr %s161, 4
        %s163 = scalar_lea.vmem %s0, %s162
      $region28: #{dcgan_discriminator_forward.6} parent=23 // pred_fallthru
        _
    $region24: #{dcgan_discriminator_forward.6} parent=5 // pred_fallthru
      _
    %p164 = scmp.le.s32.totalorder 1, %s11
    %p165 = scmp.lt.s32.totalorder %s11, 3
    %p166 = pnand %p164, %p165
    %p167 = pneg %p166
    // Predicated region
    $region29: #{dcgan_discriminator_forward.6} parent=5 // pred_check
      _
    $region30: #{dcgan_discriminator_forward.6} parent=5 // pred_check_branch
      %169 = sbr.rel (%p166) target = $region32
    $region31: #{dcgan_discriminator_forward.6} parent=5 // pred_region
      %s170 = ssub.s32 %s11, 1
      %p171 = scmp.lt.s32.totalorder %s16, 1
      %s172 = scalar_select %p171, %s16, 1
      %s173 = smul.addr %s172, 11
      %s174 = smul.addr %s173, 4
      %s175 = scalar_lea.vmem %s0, %s174
      %p176 = pneg %p37
      %p177 = pneg %p34
      %p178 = pneg %p58
      %p179 = pneg %p55
      %p180 = pneg %p79
      %p181 = pneg %p76
      %p182 = pneg %p105
      %p183 = pneg %p102
      %p184 = scmp.lt.s32.totalorder %s16, 1
      %s185 = scalar_select %p184, %s16, 1
      %s186 = smul.addr %s185, 9
      %s187 = smul.addr %s186, 4
      %s188 = scalar_lea.vmem %s3, %s187
      %p189 = pneg %p131
      %p190 = pneg %p128
      %p191 = scmp.lt.s32.totalorder %s16, 1
      %s192 = scalar_select %p191, %s16, 1
      %s193 = smul.addr %s192, 2
      %s194 = scalar_lea.vmem %s4, %s193
      %p195 = scmp.lt.s32.totalorder %s16, 1
      %s196 = scalar_select %p195, %s16, 1
      %s197 = smul.addr %s196, 11
      %s198 = smul.addr %s197, 4
      %s199 = scalar_lea.vmem %s0, %s198
      %p200 = scmp.lt.s32.totalorder %s16, 1
      %s201 = scalar_select %p200, %s16, 1
      %s202 = smul.addr %s201, 9
      %s203 = smul.addr %s202, 4
      %s204 = scalar_lea.vmem %s3, %s203
      %p205 = scmp.lt.s32.totalorder %s16, 1
      %s206 = scalar_select %p205, %s16, 1
      %s207 = smul.addr %s206, 2
      %s208 = scalar_lea.vmem %s4, %s207
      %v210 = vld [vmem:[%s199] sm:$0xf]
      %v211 = vld [vmem:[%s199 + $0x4] sm:$0xf]
      %v212 = vld [vmem:[%s199 + $0x8] sm:$0xf]
      %v213 = vld [vmem:[%s199 + $0xc] sm:$0xf]
      %v214 = vld [vmem:[%s199 + $0x10] sm:$0xf]
      %v215 = vld [vmem:[%s199 + $0x14] sm:$0xf]
      %v216 = vld [vmem:[%s199 + $0x18] sm:$0xf]
      %v217 = vld [vmem:[%s199 + $0x1c] sm:$0xf]
      %v218 = vld [vmem:[%s199 + $0x20] sm:$0xf]
      %v219 = vld [vmem:[%s1] sm:$0xf]
      %v220 = vld [vmem:[%s1 + $0x4] sm:$0xf]
      %v221 = vld [vmem:[%s1 + $0x8] sm:$0xf]
      %v222 = vld [vmem:[%s1 + $0xc] sm:$0xf]
      %v223 = vld [vmem:[%s1 + $0x10] sm:$0xf]
      %v224 = vld [vmem:[%s1 + $0x14] sm:$0xf]
      %v225 = vld [vmem:[%s1 + $0x18] sm:$0xf]
      %v226 = vld [vmem:[%s1 + $0x1c] sm:$0xf]
      %v227 = vld [vmem:[%s1 + $0x20] sm:$0xf]
      %v228 = vld [vmem:[%s1 + $0x24] sm:$0xf]
      %v229 = vld [vmem:[%s1 + $0x28] sm:$0xf]
      %v230 = vld [vmem:[%s1 + $0x2c] sm:$0xf]
      %v231 = vld [vmem:[%s1 + $0x30] sm:$0xf]
      %v232 = vld [vmem:[%s1 + $0x34] sm:$0xf]
      %v233 = vld [vmem:[%s1 + $0x38] sm:$0xf]
      %v234 = vld [vmem:[%s1 + $0x3c] sm:$0xf]
      %v235 = vld [vmem:[%s199 + $0x24] sm:$0x1]
      %s236 = scalar_lea.vmem %s1, 64
      %v237 = vld [vmem:[%s236] sm:$0xf]
      %v238 = vld [vmem:[%s236 + $0x4] sm:$0xf]
      %v239 = vld [vmem:[%s236 + $0x8] sm:$0xf]
      %v240 = vld [vmem:[%s236 + $0xc] sm:$0xf]
      %v241 = vld [vmem:[%s236 + $0x10] sm:$0xf]
      %v242 = vld [vmem:[%s236 + $0x14] sm:$0xf]
      %v243 = vld [vmem:[%s236 + $0x18] sm:$0xf]
      %v244 = vld [vmem:[%s236 + $0x1c] sm:$0xf]
      %v245 = vld [vmem:[%s236 + $0x20] sm:$0xf]
      %v246 = vld [vmem:[%s236 + $0x24] sm:$0xf]
      %v247 = vld [vmem:[%s236 + $0x28] sm:$0xf]
      %v248 = vld [vmem:[%s236 + $0x2c] sm:$0xf]
      %v249 = vld [vmem:[%s236 + $0x30] sm:$0xf]
      %v250 = vld [vmem:[%s236 + $0x34] sm:$0xf]
      %v251 = vld [vmem:[%s236 + $0x38] sm:$0xf]
      %v252 = vld [vmem:[%s236 + $0x3c] sm:$0xf]
      %v263 = vunpack.c.l.b16 %v210
      %v264 = vunpack.c.l.b16 %v211
      %v265 = vunpack.c.l.b16 %v212
      %v266 = vunpack.c.l.b16 %v213
      %v267 = vunpack.c.l.b16 %v214
      %v268 = vunpack.c.l.b16 %v215
      %v269 = vunpack.c.l.b16 %v216
      %v270 = vunpack.c.l.b16 %v217
      %v271 = vunpack.c.l.b16 %v218
      %v272 = vunpack.c.l.b16 %v235
      %v273 = vpack.c.b16 %v264, %v263
      %v274 = vpack.c.b16 %v266, %v265
      %v275 = vpack.c.b16 %v268, %v267
      %v276 = vpack.c.b16 %v270, %v269
      %v277 = vpack.c.b16 %v272, %v271
      %vm278 = vsmask.f32 7424
      %v280 = vshrl.u32 %v273, 16
      %v282 = vshll.u32 %v273, 16
      %v284 = vrot.slane %v282, 1
      %v285 = vor.u32 %v280, %v284
      %v287 = vshll.u32 %v274, 16
      %v289 = vrot.slane %v287, 1
      %v290 = vsel %vm278, %v285, %v289
      %v291 = vshrl.u32 %v274, 16
      %v293 = vor.u32 %v291, %v289
      %v295 = vshll.u32 %v275, 16
      %v297 = vrot.slane %v295, 1
      %v298 = vsel %vm278, %v293, %v297
      %v299 = vshrl.u32 %v275, 16
      %v301 = vor.u32 %v299, %v297
      %v303 = vshll.u32 %v276, 16
      %v305 = vrot.slane %v303, 1
      %v306 = vsel %vm278, %v301, %v305
      %v307 = vshrl.u32 %v276, 16
      %v309 = vor.u32 %v307, %v305
      %v311 = vshll.u32 %v277, 16
      %v313 = vrot.slane %v311, 1
      %v314 = vsel %vm278, %v309, %v313
      %v315 = vshrl.u32 %v277, 16
      %v317 = vor.u32 %v315, %v313
      %v339 = vunpack.c.l.b16 %v237
      %v340 = vunpack.c.l.b16 %v238
      %v341 = vunpack.c.l.b16 %v239
      %v342 = vunpack.c.l.b16 %v240
      %v343 = vunpack.c.l.b16 %v241
      %v344 = vunpack.c.l.b16 %v242
      %v345 = vunpack.c.l.b16 %v243
      %v346 = vunpack.c.l.b16 %v244
      %v347 = vunpack.c.l.b16 %v245
      %v348 = vunpack.c.l.b16 %v246
      %v349 = vunpack.c.l.b16 %v247
      %v350 = vunpack.c.l.b16 %v248
      %v351 = vunpack.c.l.b16 %v249
      %v352 = vunpack.c.l.b16 %v250
      %v353 = vunpack.c.l.b16 %v251
      %v354 = vunpack.c.l.b16 %v252
      %v355 = vpack.c.b16 %v340, %v339
      %v356 = vpack.c.b16 %v342, %v341
      %v357 = vpack.c.b16 %v344, %v343
      %v358 = vpack.c.b16 %v346, %v345
      %v359 = vpack.c.b16 %v348, %v347
      %v360 = vpack.c.b16 %v350, %v349
      %v361 = vpack.c.b16 %v352, %v351
      %v362 = vpack.c.b16 %v354, %v353
      %371 = vmatprep.subr.bf16.mxu0 0
      %372 = vmatpush1.bf16.msra.mxu0 %v362
      %373 = vmatprep.subr.bf16.mxu0 0
      %374 = vmatpush1.bf16.msra.mxu0 %v361
      %375 = vmatprep.subr.bf16.mxu0 0
      %376 = vmatpush1.bf16.msra.mxu0 %v360
      %377 = vmatprep.subr.bf16.mxu0 0
      %378 = vmatpush1.bf16.msra.mxu0 %v359
      %379 = vmatprep.subr.bf16.mxu0 0
      %380 = vmatpush1.bf16.msra.mxu0 %v358
      %381 = vmatprep.subr.bf16.mxu0 0
      %382 = vmatpush1.bf16.msra.mxu0 %v357
      %383 = vmatprep.subr.bf16.mxu0 0
      %384 = vmatpush1.bf16.msra.mxu0 %v356
      %385 = vmatprep.subr.bf16.mxu0 0
      %386 = vmatpush1.bf16.msra.mxu0 %v355
      %387 = vmatprep.subr.bf16.mxu0 0
      %388 = vmatpush2.bf16.msra.mxu0 0
      %389 = vmatprep.subr.bf16.mxu0 0
      %390 = vmatpush2.bf16.msra.mxu0 0
      %391 = vmatprep.subr.bf16.mxu0 0
      %392 = vmatpush2.bf16.msra.mxu0 0
      %393 = vmatprep.subr.bf16.mxu0 0
      %394 = vmatpush2.bf16.msra.mxu0 0
      %395 = vmatprep.subr.bf16.mxu0 0
      %396 = vmatpush2.bf16.msra.mxu0 0
      %397 = vmatprep.subr.bf16.mxu0 0
      %398 = vmatpush2.bf16.msra.mxu0 0
      %399 = vmatprep.subr.bf16.mxu0 0
      %400 = vmatpush2.bf16.msra.mxu0 0
      %401 = vmatprep.subr.bf16.mxu0 0
      %402 = vmatpush2.bf16.msra.mxu0 0
      %403 = vmatprep.mubr.bf16.mxu0 0
      %404 = vmatmul.mubr.bf16.gmra.mxu0 %v290
      %v405 = vpop.f32.mrf.mxu0
      %v406 = vadd.f32 0.0, %v405
      %v407 = vpop.f32.mrf.mxu0
      %v408 = vpop.f32.mrf.mxu0
      %v409 = vadd.f32 0.0, %v408
      %v410 = vpop.f32.mrf.mxu0
      %411 = vmatprep.mubr.bf16.mxu0 0
      %412 = vmatmul.mubr.bf16.gmra.mxu0 %v298
      %v413 = vpop.f32.mrf.mxu0
      %v414 = vadd.f32 0.0, %v413
      %v415 = vpop.f32.mrf.mxu0
      %v416 = vpop.f32.mrf.mxu0
      %v417 = vadd.f32 0.0, %v416
      %v418 = vpop.f32.mrf.mxu0
      %419 = vmatprep.mubr.bf16.mxu0 0
      %420 = vmatmul.mubr.bf16.gmra.mxu0 %v306
      %v421 = vpop.f32.mrf.mxu0
      %v422 = vadd.f32 0.0, %v421
      %v423 = vpop.f32.mrf.mxu0
      %v424 = vpop.f32.mrf.mxu0
      %v425 = vadd.f32 0.0, %v424
      %v426 = vpop.f32.mrf.mxu0
      %427 = vmatprep.mubr.bf16.mxu0 0
      %428 = vmatmul.mubr.bf16.gmra.mxu0 %v314
      %v429 = vpop.f32.mrf.mxu0
      %v430 = vadd.f32 0.0, %v429
      %v431 = vpop.f32.mrf.mxu0
      %v432 = vpop.f32.mrf.mxu0
      %v433 = vadd.f32 0.0, %v432
      %v434 = vpop.f32.mrf.mxu0
      %435 = vmatprep.mubr.bf16.mxu0 0
      %436 = vmatmul.mubr.bf16.gmra.mxu0 %v317
      %v437 = vpop.f32.mrf.mxu0
      %v438 = vadd.f32 0.0, %v437
      %v439 = vpop.f32.mrf.mxu0
      %v440 = vpop.f32.mrf.mxu0
      %v441 = vpop.f32.mrf.mxu0
      %442 = vdwg.mxu0
      %v443 = vpack.c.b16 %v271, %v271
      %v465 = vunpack.c.l.b16 %v219
      %v466 = vunpack.c.l.b16 %v220
      %v467 = vunpack.c.l.b16 %v221
      %v468 = vunpack.c.l.b16 %v222
      %v469 = vunpack.c.l.b16 %v223
      %v470 = vunpack.c.l.b16 %v224
      %v471 = vunpack.c.l.b16 %v225
      %v472 = vunpack.c.l.b16 %v226
      %v473 = vunpack.c.l.b16 %v227
      %v474 = vunpack.c.l.b16 %v228
      %v475 = vunpack.c.l.b16 %v229
      %v476 = vunpack.c.l.b16 %v230
      %v477 = vunpack.c.l.b16 %v231
      %v478 = vunpack.c.l.b16 %v232
      %v479 = vunpack.c.l.b16 %v233
      %v480 = vunpack.c.l.b16 %v234
      %v481 = vpack.c.b16 %v466, %v465
      %v482 = vpack.c.b16 %v468, %v467
      %v483 = vpack.c.b16 %v470, %v469
      %v484 = vpack.c.b16 %v472, %v471
      %v485 = vpack.c.b16 %v474, %v473
      %v486 = vpack.c.b16 %v476, %v475
      %v487 = vpack.c.b16 %v478, %v477
      %v488 = vpack.c.b16 %v480, %v479
      %497 = vmatprep.subr.bf16.mxu0 0
      %498 = vmatpush1.bf16.msra.mxu0 %v488
      %499 = vmatprep.subr.bf16.mxu0 0
      %500 = vmatpush1.bf16.msra.mxu0 %v487
      %501 = vmatprep.subr.bf16.mxu0 0
      %502 = vmatpush1.bf16.msra.mxu0 %v486
      %503 = vmatprep.subr.bf16.mxu0 0
      %504 = vmatpush1.bf16.msra.mxu0 %v485
      %505 = vmatprep.subr.bf16.mxu0 0
      %506 = vmatpush1.bf16.msra.mxu0 %v484
      %507 = vmatprep.subr.bf16.mxu0 0
      %508 = vmatpush1.bf16.msra.mxu0 %v483
      %509 = vmatprep.subr.bf16.mxu0 0
      %510 = vmatpush1.bf16.msra.mxu0 %v482
      %511 = vmatprep.subr.bf16.mxu0 0
      %512 = vmatpush1.bf16.msra.mxu0 %v481
      %513 = vmatprep.subr.bf16.mxu0 0
      %514 = vmatpush2.bf16.msra.mxu0 0
      %515 = vmatprep.subr.bf16.mxu0 0
      %516 = vmatpush2.bf16.msra.mxu0 0
      %517 = vmatprep.subr.bf16.mxu0 0
      %518 = vmatpush2.bf16.msra.mxu0 0
      %519 = vmatprep.subr.bf16.mxu0 0
      %520 = vmatpush2.bf16.msra.mxu0 0
      %521 = vmatprep.subr.bf16.mxu0 0
      %522 = vmatpush2.bf16.msra.mxu0 0
      %523 = vmatprep.subr.bf16.mxu0 0
      %524 = vmatpush2.bf16.msra.mxu0 0
      %525 = vmatprep.subr.bf16.mxu0 0
      %526 = vmatpush2.bf16.msra.mxu0 0
      %527 = vmatprep.subr.bf16.mxu0 0
      %528 = vmatpush2.bf16.msra.mxu0 0
      %529 = vmatprep.mubr.bf16.mxu0 0
      %530 = vmatmul.mubr.bf16.gmra.mxu0 %v273
      %v531 = vpop.f32.mrf.mxu0
      %v532 = vadd.f32 %v406, %v531
      %v533 = vpop.f32.mrf.mxu0
      %v534 = vpop.f32.mrf.mxu0
      %v535 = vadd.f32 %v409, %v534
      %v536 = vpop.f32.mrf.mxu0
      %537 = vmatprep.mubr.bf16.mxu0 0
      %538 = vmatmul.mubr.bf16.gmra.mxu0 %v274
      %v539 = vpop.f32.mrf.mxu0
      %v540 = vadd.f32 %v414, %v539
      %v541 = vpop.f32.mrf.mxu0
      %v542 = vpop.f32.mrf.mxu0
      %v543 = vadd.f32 %v417, %v542
      %v544 = vpop.f32.mrf.mxu0
      %545 = vmatprep.mubr.bf16.mxu0 0
      %546 = vmatmul.mubr.bf16.gmra.mxu0 %v275
      %v547 = vpop.f32.mrf.mxu0
      %v548 = vadd.f32 %v422, %v547
      %v549 = vpop.f32.mrf.mxu0
      %v550 = vpop.f32.mrf.mxu0
      %v551 = vadd.f32 %v425, %v550
      %v552 = vpop.f32.mrf.mxu0
      %553 = vmatprep.mubr.bf16.mxu0 0
      %554 = vmatmul.mubr.bf16.gmra.mxu0 %v276
      %v555 = vpop.f32.mrf.mxu0
      %v556 = vadd.f32 %v430, %v555
      %v557 = vpop.f32.mrf.mxu0
      %v558 = vpop.f32.mrf.mxu0
      %v559 = vadd.f32 %v433, %v558
      %v560 = vpop.f32.mrf.mxu0
      %561 = vmatprep.mubr.bf16.mxu0 0
      %562 = vmatmul.mubr.bf16.gmra.mxu0 %v443
      %v563 = vpop.f32.mrf.mxu0
      %v564 = vadd.f32 %v438, %v563
      %v565 = vpop.f32.mrf.mxu0
      %v566 = vpop.f32.mrf.mxu0
      %v567 = vpop.f32.mrf.mxu0
      %568 = vdwg.mxu0
      %v569 = vld [vmem:[%s199 + $0x4] sm:$0xf]
      %v570 = vld [vmem:[%s199 + $0x8] sm:$0xf]
      %v571 = vld [vmem:[%s199 + $0xc] sm:$0xf]
      %v572 = vld [vmem:[%s199 + $0x10] sm:$0xf]
      %v573 = vld [vmem:[%s199 + $0x14] sm:$0xf]
      %v574 = vld [vmem:[%s199 + $0x18] sm:$0xf]
      %v575 = vld [vmem:[%s199 + $0x1c] sm:$0xf]
      %v576 = vld [vmem:[%s199 + $0x20] sm:$0xf]
      %v577 = vld [vmem:[%s199 + $0x24] sm:$0xf]
      %v578 = vld [vmem:[%s199 + $0x28] sm:$0x1]
      %s579 = scalar_lea.vmem %s1, 128
      %v580 = vld [vmem:[%s579] sm:$0xf]
      %v581 = vld [vmem:[%s579 + $0x4] sm:$0xf]
      %v582 = vld [vmem:[%s579 + $0x8] sm:$0xf]
      %v583 = vld [vmem:[%s579 + $0xc] sm:$0xf]
      %v584 = vld [vmem:[%s579 + $0x10] sm:$0xf]
      %v585 = vld [vmem:[%s579 + $0x14] sm:$0xf]
      %v586 = vld [vmem:[%s579 + $0x18] sm:$0xf]
      %v587 = vld [vmem:[%s579 + $0x1c] sm:$0xf]
      %v588 = vld [vmem:[%s579 + $0x20] sm:$0xf]
      %v589 = vld [vmem:[%s579 + $0x24] sm:$0xf]
      %v590 = vld [vmem:[%s579 + $0x28] sm:$0xf]
      %v591 = vld [vmem:[%s579 + $0x2c] sm:$0xf]
      %v592 = vld [vmem:[%s579 + $0x30] sm:$0xf]
      %v593 = vld [vmem:[%s579 + $0x34] sm:$0xf]
      %v594 = vld [vmem:[%s579 + $0x38] sm:$0xf]
      %v595 = vld [vmem:[%s579 + $0x3c] sm:$0xf]
      %v606 = vunpack.c.l.b16 %v569
      %v607 = vunpack.c.l.b16 %v570
      %v608 = vunpack.c.l.b16 %v571
      %v609 = vunpack.c.l.b16 %v572
      %v610 = vunpack.c.l.b16 %v573
      %v611 = vunpack.c.l.b16 %v574
      %v612 = vunpack.c.l.b16 %v575
      %v613 = vunpack.c.l.b16 %v576
      %v614 = vunpack.c.l.b16 %v577
      %v615 = vunpack.c.l.b16 %v578
      %v616 = vpack.c.b16 %v607, %v606
      %v617 = vpack.c.b16 %v609, %v608
      %v618 = vpack.c.b16 %v611, %v610
      %v619 = vpack.c.b16 %v613, %v612
      %v620 = vpack.c.b16 %v615, %v614
      %v622 = vshrl.u32 %v616, 16
      %v624 = vshll.u32 %v616, 16
      %v626 = vrot.slane %v624, 1
      %v627 = vor.u32 %v622, %v626
      %v629 = vshll.u32 %v617, 16
      %v631 = vrot.slane %v629, 1
      %v632 = vsel %vm278, %v627, %v631
      %v633 = vshrl.u32 %v617, 16
      %v635 = vor.u32 %v633, %v631
      %v637 = vshll.u32 %v618, 16
      %v639 = vrot.slane %v637, 1
      %v640 = vsel %vm278, %v635, %v639
      %v641 = vshrl.u32 %v618, 16
      %v643 = vor.u32 %v641, %v639
      %v645 = vshll.u32 %v619, 16
      %v647 = vrot.slane %v645, 1
      %v648 = vsel %vm278, %v643, %v647
      %v649 = vshrl.u32 %v619, 16
      %v651 = vor.u32 %v649, %v647
      %v653 = vshll.u32 %v620, 16
      %v655 = vrot.slane %v653, 1
      %v656 = vsel %vm278, %v651, %v655
      %v657 = vshrl.u32 %v620, 16
      %v659 = vor.u32 %v657, %v655
      %v681 = vunpack.c.l.b16 %v580
      %v682 = vunpack.c.l.b16 %v581
      %v683 = vunpack.c.l.b16 %v582
      %v684 = vunpack.c.l.b16 %v583
      %v685 = vunpack.c.l.b16 %v584
      %v686 = vunpack.c.l.b16 %v585
      %v687 = vunpack.c.l.b16 %v586
      %v688 = vunpack.c.l.b16 %v587
      %v689 = vunpack.c.l.b16 %v588
      %v690 = vunpack.c.l.b16 %v589
      %v691 = vunpack.c.l.b16 %v590
      %v692 = vunpack.c.l.b16 %v591
      %v693 = vunpack.c.l.b16 %v592
      %v694 = vunpack.c.l.b16 %v593
      %v695 = vunpack.c.l.b16 %v594
      %v696 = vunpack.c.l.b16 %v595
      %v697 = vpack.c.b16 %v682, %v681
      %v698 = vpack.c.b16 %v684, %v683
      %v699 = vpack.c.b16 %v686, %v685
      %v700 = vpack.c.b16 %v688, %v687
      %v701 = vpack.c.b16 %v690, %v689
      %v702 = vpack.c.b16 %v692, %v691
      %v703 = vpack.c.b16 %v694, %v693
      %v704 = vpack.c.b16 %v696, %v695
      %713 = vmatprep.subr.bf16.mxu0 0
      %714 = vmatpush1.bf16.msra.mxu0 %v704
      %715 = vmatprep.subr.bf16.mxu0 0
      %716 = vmatpush1.bf16.msra.mxu0 %v703
      %717 = vmatprep.subr.bf16.mxu0 0
      %718 = vmatpush1.bf16.msra.mxu0 %v702
      %719 = vmatprep.subr.bf16.mxu0 0
      %720 = vmatpush1.bf16.msra.mxu0 %v701
      %721 = vmatprep.subr.bf16.mxu0 0
      %722 = vmatpush1.bf16.msra.mxu0 %v700
      %723 = vmatprep.subr.bf16.mxu0 0
      %724 = vmatpush1.bf16.msra.mxu0 %v699
      %725 = vmatprep.subr.bf16.mxu0 0
      %726 = vmatpush1.bf16.msra.mxu0 %v698
      %727 = vmatprep.subr.bf16.mxu0 0
      %728 = vmatpush1.bf16.msra.mxu0 %v697
      %729 = vmatprep.subr.bf16.mxu0 0
      %730 = vmatpush2.bf16.msra.mxu0 0
      %731 = vmatprep.subr.bf16.mxu0 0
      %732 = vmatpush2.bf16.msra.mxu0 0
      %733 = vmatprep.subr.bf16.mxu0 0
      %734 = vmatpush2.bf16.msra.mxu0 0
      %735 = vmatprep.subr.bf16.mxu0 0
      %736 = vmatpush2.bf16.msra.mxu0 0
      %737 = vmatprep.subr.bf16.mxu0 0
      %738 = vmatpush2.bf16.msra.mxu0 0
      %739 = vmatprep.subr.bf16.mxu0 0
      %740 = vmatpush2.bf16.msra.mxu0 0
      %741 = vmatprep.subr.bf16.mxu0 0
      %742 = vmatpush2.bf16.msra.mxu0 0
      %743 = vmatprep.subr.bf16.mxu0 0
      %744 = vmatpush2.bf16.msra.mxu0 0
      %745 = vmatprep.mubr.bf16.mxu0 0
      %746 = vmatmul.mubr.bf16.gmra.mxu0 %v632
      %v747 = vpop.f32.mrf.mxu0
      %v748 = vadd.f32 0.0, %v747
      %v749 = vpop.f32.mrf.mxu0
      %v750 = vpop.f32.mrf.mxu0
      %v751 = vadd.f32 0.0, %v750
      %v752 = vpop.f32.mrf.mxu0
      %753 = vmatprep.mubr.bf16.mxu0 0
      %754 = vmatmul.mubr.bf16.gmra.mxu0 %v640
      %v755 = vpop.f32.mrf.mxu0
      %v756 = vadd.f32 0.0, %v755
      %v757 = vpop.f32.mrf.mxu0
      %v758 = vpop.f32.mrf.mxu0
      %v759 = vadd.f32 0.0, %v758
      %v760 = vpop.f32.mrf.mxu0
      %761 = vmatprep.mubr.bf16.mxu0 0
      %762 = vmatmul.mubr.bf16.gmra.mxu0 %v648
      %v763 = vpop.f32.mrf.mxu0
      %v764 = vadd.f32 0.0, %v763
      %v765 = vpop.f32.mrf.mxu0
      %v766 = vpop.f32.mrf.mxu0
      %v767 = vadd.f32 0.0, %v766
      %v768 = vpop.f32.mrf.mxu0
      %769 = vmatprep.mubr.bf16.mxu0 0
      %770 = vmatmul.mubr.bf16.gmra.mxu0 %v656
      %v771 = vpop.f32.mrf.mxu0
      %v772 = vadd.f32 0.0, %v771
      %v773 = vpop.f32.mrf.mxu0
      %v774 = vpop.f32.mrf.mxu0
      %v775 = vadd.f32 0.0, %v774
      %v776 = vpop.f32.mrf.mxu0
      %777 = vmatprep.mubr.bf16.mxu0 0
      %778 = vmatmul.mubr.bf16.gmra.mxu0 %v659
      %v779 = vpop.f32.mrf.mxu0
      %v780 = vadd.f32 0.0, %v779
      %v781 = vpop.f32.mrf.mxu0
      %v782 = vpop.f32.mrf.mxu0
      %v783 = vpop.f32.mrf.mxu0
      %784 = vdwg.mxu0
      %v785 = vadd.f32 %v532, %v748
      %v786 = vadd.f32 %v535, %v751
      %v787 = vadd.f32 %v540, %v756
      %v788 = vadd.f32 %v543, %v759
      %v789 = vadd.f32 %v548, %v764
      %v790 = vadd.f32 %v551, %v767
      %v791 = vadd.f32 %v556, %v772
      %v792 = vadd.f32 %v559, %v775
      %v793 = vadd.f32 %v564, %v780
      %v794 = vld [vmem:[%s199 + $0x4] sm:$0xe]
      %s795 = scalar_lea.vmem %s1, 192
      %v796 = vld [vmem:[%s795] sm:$0xf]
      %v797 = vld [vmem:[%s795 + $0x4] sm:$0xf]
      %v798 = vld [vmem:[%s795 + $0x8] sm:$0xf]
      %v799 = vld [vmem:[%s795 + $0xc] sm:$0xf]
      %v800 = vld [vmem:[%s795 + $0x10] sm:$0xf]
      %v801 = vld [vmem:[%s795 + $0x14] sm:$0xf]
      %v802 = vld [vmem:[%s795 + $0x18] sm:$0xf]
      %v803 = vld [vmem:[%s795 + $0x1c] sm:$0xf]
      %v804 = vld [vmem:[%s795 + $0x20] sm:$0xf]
      %v805 = vld [vmem:[%s795 + $0x24] sm:$0xf]
      %v806 = vld [vmem:[%s795 + $0x28] sm:$0xf]
      %v807 = vld [vmem:[%s795 + $0x2c] sm:$0xf]
      %v808 = vld [vmem:[%s795 + $0x30] sm:$0xf]
      %v809 = vld [vmem:[%s795 + $0x34] sm:$0xf]
      %v810 = vld [vmem:[%s795 + $0x38] sm:$0xf]
      %v811 = vld [vmem:[%s795 + $0x3c] sm:$0xf]
      %v813 = vunpack.c.l.b16 %v794
      %v814 = vpack.c.b16 %v607, %v813
      %vm815 = vcmask 1046528
      %v816 = vrot.slane %v814, 1
      %v817 = vrot.slane %v617, 1
      %v818 = vsel %vm815, %v816, %v817
      %v819 = vrot.slane %v618, 1
      %v820 = vsel %vm815, %v817, %v819
      %v821 = vrot.slane %v619, 1
      %v822 = vsel %vm815, %v819, %v821
      %v823 = vrot.slane %v620, 1
      %v824 = vsel %vm815, %v821, %v823
      %v846 = vunpack.c.l.b16 %v796
      %v847 = vunpack.c.l.b16 %v797
      %v848 = vunpack.c.l.b16 %v798
      %v849 = vunpack.c.l.b16 %v799
      %v850 = vunpack.c.l.b16 %v800
      %v851 = vunpack.c.l.b16 %v801
      %v852 = vunpack.c.l.b16 %v802
      %v853 = vunpack.c.l.b16 %v803
      %v854 = vunpack.c.l.b16 %v804
      %v855 = vunpack.c.l.b16 %v805
      %v856 = vunpack.c.l.b16 %v806
      %v857 = vunpack.c.l.b16 %v807
      %v858 = vunpack.c.l.b16 %v808
      %v859 = vunpack.c.l.b16 %v809
      %v860 = vunpack.c.l.b16 %v810
      %v861 = vunpack.c.l.b16 %v811
      %v862 = vpack.c.b16 %v847, %v846
      %v863 = vpack.c.b16 %v849, %v848
      %v864 = vpack.c.b16 %v851, %v850
      %v865 = vpack.c.b16 %v853, %v852
      %v866 = vpack.c.b16 %v855, %v854
      %v867 = vpack.c.b16 %v857, %v856
      %v868 = vpack.c.b16 %v859, %v858
      %v869 = vpack.c.b16 %v861, %v860
      %878 = vmatprep.subr.bf16.mxu0 0
      %879 = vmatpush1.bf16.msra.mxu0 %v869
      %880 = vmatprep.subr.bf16.mxu0 0
      %881 = vmatpush1.bf16.msra.mxu0 %v868
      %882 = vmatprep.subr.bf16.mxu0 0
      %883 = vmatpush1.bf16.msra.mxu0 %v867
      %884 = vmatprep.subr.bf16.mxu0 0
      %885 = vmatpush1.bf16.msra.mxu0 %v866
      %886 = vmatprep.subr.bf16.mxu0 0
      %887 = vmatpush1.bf16.msra.mxu0 %v865
      %888 = vmatprep.subr.bf16.mxu0 0
      %889 = vmatpush1.bf16.msra.mxu0 %v864
      %890 = vmatprep.subr.bf16.mxu0 0
      %891 = vmatpush1.bf16.msra.mxu0 %v863
      %892 = vmatprep.subr.bf16.mxu0 0
      %893 = vmatpush1.bf16.msra.mxu0 %v862
      %894 = vmatprep.subr.bf16.mxu0 0
      %895 = vmatpush2.bf16.msra.mxu0 0
      %896 = vmatprep.subr.bf16.mxu0 0
      %897 = vmatpush2.bf16.msra.mxu0 0
      %898 = vmatprep.subr.bf16.mxu0 0
      %899 = vmatpush2.bf16.msra.mxu0 0
      %900 = vmatprep.subr.bf16.mxu0 0
      %901 = vmatpush2.bf16.msra.mxu0 0
      %902 = vmatprep.subr.bf16.mxu0 0
      %903 = vmatpush2.bf16.msra.mxu0 0
      %904 = vmatprep.subr.bf16.mxu0 0
      %905 = vmatpush2.bf16.msra.mxu0 0
      %906 = vmatprep.subr.bf16.mxu0 0
      %907 = vmatpush2.bf16.msra.mxu0 0
      %908 = vmatprep.subr.bf16.mxu0 0
      %909 = vmatpush2.bf16.msra.mxu0 0
      %910 = vmatprep.mubr.bf16.mxu0 0
      %911 = vmatmul.mubr.bf16.gmra.mxu0 %v818
      %v912 = vpop.f32.mrf.mxu0
      %v913 = vadd.f32 0.0, %v912
      %v914 = vpop.f32.mrf.mxu0
      %v915 = vpop.f32.mrf.mxu0
      %v916 = vadd.f32 0.0, %v915
      %v917 = vpop.f32.mrf.mxu0
      %918 = vmatprep.mubr.bf16.mxu0 0
      %919 = vmatmul.mubr.bf16.gmra.mxu0 %v820
      %v920 = vpop.f32.mrf.mxu0
      %v921 = vadd.f32 0.0, %v920
      %v922 = vpop.f32.mrf.mxu0
      %v923 = vpop.f32.mrf.mxu0
      %v924 = vadd.f32 0.0, %v923
      %v925 = vpop.f32.mrf.mxu0
      %926 = vmatprep.mubr.bf16.mxu0 0
      %927 = vmatmul.mubr.bf16.gmra.mxu0 %v822
      %v928 = vpop.f32.mrf.mxu0
      %v929 = vadd.f32 0.0, %v928
      %v930 = vpop.f32.mrf.mxu0
      %v931 = vpop.f32.mrf.mxu0
      %v932 = vadd.f32 0.0, %v931
      %v933 = vpop.f32.mrf.mxu0
      %934 = vmatprep.mubr.bf16.mxu0 0
      %935 = vmatmul.mubr.bf16.gmra.mxu0 %v824
      %v936 = vpop.f32.mrf.mxu0
      %v937 = vadd.f32 0.0, %v936
      %v938 = vpop.f32.mrf.mxu0
      %v939 = vpop.f32.mrf.mxu0
      %v940 = vadd.f32 0.0, %v939
      %v941 = vpop.f32.mrf.mxu0
      %942 = vmatprep.mubr.bf16.mxu0 0
      %943 = vmatmul.mubr.bf16.gmra.mxu0 %v823
      %v944 = vpop.f32.mrf.mxu0
      %v945 = vadd.f32 0.0, %v944
      %v946 = vpop.f32.mrf.mxu0
      %v947 = vpop.f32.mrf.mxu0
      %v948 = vpop.f32.mrf.mxu0
      %949 = vdwg.mxu0
      %v950 = vadd.f32 %v785, %v913
      %v951 = vadd.f32 %v786, %v916
      %v952 = vadd.f32 %v787, %v921
      %v953 = vadd.f32 %v788, %v924
      %v954 = vadd.f32 %v789, %v929
      %v955 = vadd.f32 %v790, %v932
      %v956 = vadd.f32 %v791, %v937
      %v957 = vadd.f32 %v792, %v940
      %v958 = vadd.f32 %v793, %v945
      %v959 = vpack.c.bf16 %v951, %v950
      %v960 = vpack.c.bf16 %v953, %v952
      %v961 = vpack.c.bf16 %v955, %v954
      %v962 = vpack.c.bf16 %v957, %v956
      %v963 = vpack.c.bf16 %v958, %v958
      %v969 = vunpack.c.l.b16 %v959
      %v970 = vunpack.c.h.b16 %v959
      %v971 = vunpack.c.l.b16 %v960
      %v972 = vunpack.c.h.b16 %v960
      %v973 = vunpack.c.l.b16 %v961
      %v974 = vunpack.c.h.b16 %v961
      %v975 = vunpack.c.l.b16 %v962
      %v976 = vunpack.c.h.b16 %v962
      %v977 = vunpack.c.l.b16 %v963
      %v978 = vpack.c.b16 %v969, %v969
      %v979 = vpack.c.b16 %v970, %v970
      %v980 = vpack.c.b16 %v971, %v971
      %v981 = vpack.c.b16 %v972, %v972
      %v982 = vpack.c.b16 %v973, %v973
      %v983 = vpack.c.b16 %v974, %v974
      %v984 = vpack.c.b16 %v975, %v975
      %v985 = vpack.c.b16 %v976, %v976
      %v986 = vpack.c.b16 %v977, %v977
      %996 = vst [vmem:[%s204] sm:$0xf] %v978
      %997 = vst [vmem:[%s204 + $0x4] sm:$0xf] %v979
      %998 = vst [vmem:[%s204 + $0x8] sm:$0xf] %v980
      %999 = vst [vmem:[%s204 + $0xc] sm:$0xf] %v981
      %1000 = vst [vmem:[%s204 + $0x10] sm:$0xf] %v982
      %1001 = vst [vmem:[%s204 + $0x14] sm:$0xf] %v983
      %1002 = vst [vmem:[%s204 + $0x18] sm:$0xf] %v984
      %1003 = vst [vmem:[%s204 + $0x1c] sm:$0xf] %v985
      %1004 = vst [vmem:[%s204 + $0x20] sm:$0xf] %v986
      %v1005 = vld [vmem:[%s2] sm:$0xff]
      %v1006 = vld [vmem:[%s2 + $0x8] sm:$0xff]
      %v1007 = vld [vmem:[%s2 + $0x10] sm:$0xff]
      %v1008 = vld [vmem:[%s2 + $0x18] sm:$0xff]
      %v1009 = vld [vmem:[%s2 + $0x20] sm:$0xff]
      %v1010 = vld [vmem:[%s2 + $0x28] sm:$0xff]
      %v1011 = vld [vmem:[%s2 + $0x30] sm:$0xff]
      %v1012 = vld [vmem:[%s2 + $0x38] sm:$0xff]
      %v1013 = vld [vmem:[%s2 + $0x40] sm:$0xff]
      %1015 = vset.pattern.permute.xlu0 0
      %1016 = vperm.xlu0 %1015, %v1005
      %v1017 = vpop.permute.xlu0 %1016
      %1020 = vset.pattern.permute.xlu0 0
      %1021 = vperm.xlu0 %1020, %v1006
      %v1022 = vpop.permute.xlu0 %1021
      %1025 = vset.pattern.permute.xlu0 0
      %1026 = vperm.xlu0 %1025, %v1007
      %v1027 = vpop.permute.xlu0 %1026
      %1030 = vset.pattern.permute.xlu0 0
      %1031 = vperm.xlu0 %1030, %v1008
      %v1032 = vpop.permute.xlu0 %1031
      %1035 = vset.pattern.permute.xlu0 0
      %1036 = vperm.xlu0 %1035, %v1009
      %v1037 = vpop.permute.xlu0 %1036
      %1040 = vset.pattern.permute.xlu0 0
      %1041 = vperm.xlu0 %1040, %v1010
      %v1042 = vpop.permute.xlu0 %1041
      %1045 = vset.pattern.permute.xlu0 0
      %1046 = vperm.xlu0 %1045, %v1011
      %v1047 = vpop.permute.xlu0 %1046
      %1050 = vset.pattern.permute.xlu0 0
      %1051 = vperm.xlu0 %1050, %v1012
      %v1052 = vpop.permute.xlu0 %1051
      %1055 = vset.pattern.permute.xlu0 0
      %1056 = vperm.xlu0 %1055, %v1013
      %v1057 = vpop.permute.xlu0 %1056
      %v1059 = vmul.f32 %v950, %v1017
      %v1060 = vmul.f32 %v951, %v1022
      %v1061 = vmul.f32 %v952, %v1027
      %v1062 = vmul.f32 %v953, %v1032
      %v1063 = vmul.f32 %v954, %v1037
      %v1064 = vmul.f32 %v955, %v1042
      %v1065 = vmul.f32 %v956, %v1047
      %v1066 = vmul.f32 %v957, %v1052
      %v1067 = vmul.f32 %v958, %v1057
      %v1068 = vadd.f32 %v1059, %v1060
      %v1069 = vadd.f32 %v1068, %v1061
      %v1070 = vadd.f32 %v1069, %v1062
      %v1071 = vadd.f32 %v1070, %v1063
      %v1072 = vadd.f32 %v1071, %v1064
      %v1073 = vadd.f32 %v1072, %v1065
      %v1074 = vadd.f32 %v1073, %v1066
      %v1075 = vadd.f32 %v1074, %v1067
      %v1076 = vrot.slane %v1075, 4
      %v1077 = vadd.f32 %v1075, %v1076
      %v1078 = vrot.slane %v1077, 2
      %v1079 = vadd.f32 %v1077, %v1078
      %v1080 = vrot.slane %v1079, 1
      %v1081 = vadd.f32 %v1079, %v1080
      %v1082 = vmul.f32 %v1059, %v950
      %v1083 = vmul.f32 %v1060, %v951
      %v1084 = vmul.f32 %v1061, %v952
      %v1085 = vmul.f32 %v1062, %v953
      %v1086 = vmul.f32 %v1063, %v954
      %v1087 = vmul.f32 %v1064, %v955
      %v1088 = vmul.f32 %v1065, %v956
      %v1089 = vmul.f32 %v1066, %v957
      %v1090 = vmul.f32 %v1067, %v958
      %v1091 = vadd.f32 %v1082, %v1083
      %v1092 = vadd.f32 %v1091, %v1084
      %v1093 = vadd.f32 %v1092, %v1085
      %v1094 = vadd.f32 %v1093, %v1086
      %v1095 = vadd.f32 %v1094, %v1087
      %v1096 = vadd.f32 %v1095, %v1088
      %v1097 = vadd.f32 %v1096, %v1089
      %v1098 = vadd.f32 %v1097, %v1090
      %v1099 = vrot.slane %v1098, 4
      %v1100 = vadd.f32 %v1098, %v1099
      %v1101 = vrot.slane %v1100, 2
      %v1102 = vadd.f32 %v1100, %v1101
      %v1103 = vrot.slane %v1102, 1
      %v1104 = vadd.f32 %v1102, %v1103
      %vm1105 = vcmask 1040384
      %v1106 = vsel %vm1105, %v1081, %v1104
      %1107 = vst [vmem:[%s208] sm:$0x3] %v1106
      %p1108 = scmp.lt.s32.totalorder %s16, 1
      %s1109 = scalar_select %p1108, %s16, 1
      %s1110 = smul.addr %s1109, 9
      %s1111 = smul.addr %s1110, 4
      %s1112 = scalar_lea.vmem %s3, %s1111
      %p1113 = scmp.lt.s32.totalorder %s16, 1
      %s1114 = scalar_select %p1113, %s16, 1
      %s1115 = smul.addr %s1114, 2
      %s1116 = scalar_lea.vmem %s4, %s1115
      // Predicated region
      $region33: #{dcgan_discriminator_forward.6} parent=31 // pred_check
        %p1117 = pneg %p102
      $region34: #{dcgan_discriminator_forward.6} parent=31 // pred_check_branch
        %1119 = sbr.rel (%p1117) target = $region36
      $region35: #{dcgan_discriminator_forward.6} parent=31 // pred_region
        _
      $region36: #{dcgan_discriminator_forward.6} parent=31 // pred_fallthru
        _
      // Predicated region
      $region37: #{dcgan_discriminator_forward.6} parent=31 // pred_check
        %p1120 = pneg %p128
      $region38: #{dcgan_discriminator_forward.6} parent=31 // pred_check_branch
        %1122 = sbr.rel (%p1120) target = $region40
      $region39: #{dcgan_discriminator_forward.6} parent=31 // pred_region
        _
      $region40: #{dcgan_discriminator_forward.6} parent=31 // pred_fallthru
        _
    $region32: #{dcgan_discriminator_forward.6} parent=5 // pred_fallthru
      _
    %p1123 = scmp.le.s32.totalorder 2, %s11
    // Predicated region
    $region41: #{dcgan_discriminator_forward.6} parent=5 // pred_check
      %p1124 = pneg %p1123
    $region42: #{dcgan_discriminator_forward.6} parent=5 // pred_check_branch
      %1126 = sbr.rel (%p1124) target = $region44
    $region43: #{dcgan_discriminator_forward.6} parent=5 // pred_region
      %s1127 = ssub.s32 %s11, 2
      // Predicated region
      $region45: #{dcgan_discriminator_forward.6} parent=43 // pred_check
        %p1128 = pneg %p108
      $region46: #{dcgan_discriminator_forward.6} parent=43 // pred_check_branch
        %1130 = sbr.rel (%p1128) target = $region48
      $region47: #{dcgan_discriminator_forward.6} parent=43 // pred_region
        %p1131 = scmp.lt.s32.totalorder %s17, 1
        %s1132 = scalar_select %p1131, %s17, 1
        %s1133 = smul.addr %s1132, 9
        %s1134 = smul.addr %s1133, 4
        %s1135 = scalar_lea.vmem %s3, %s1134
      $region48: #{dcgan_discriminator_forward.6} parent=43 // pred_fallthru
        _
      // Predicated region
      $region49: #{dcgan_discriminator_forward.6} parent=43 // pred_check
        %p1136 = pneg %p134
      $region50: #{dcgan_discriminator_forward.6} parent=43 // pred_check_branch
        %1138 = sbr.rel (%p1136) target = $region52
      $region51: #{dcgan_discriminator_forward.6} parent=43 // pred_region
        %p1139 = scmp.lt.s32.totalorder %s17, 1
        %s1140 = scalar_select %p1139, %s17, 1
        %s1141 = smul.addr %s1140, 2
        %s1142 = scalar_lea.vmem %s4, %s1141
      $region52: #{dcgan_discriminator_forward.6} parent=43 // pred_fallthru
        _
    $region44: #{dcgan_discriminator_forward.6} parent=5 // pred_fallthru
      _
  $region6: #{dcgan_discriminator_forward.6} parent=0 // loop_footer
    %s15 = sadd.s32 1, %s11
  $region7: #{dcgan_discriminator_forward.6} parent=0 // loop_footer_branch
    %10 = sbr.rel target = $region3
  $region8: #{dcgan_discriminator_forward.6} parent=0 // loop_exit
    _

// kernel: dcgan_discriminator_forward.7
$region0: #{dcgan_discriminator_forward.7}
  #allocation0 [shape = 'u32[]', space=smem, size = 0x4, offset = 0x4, fixed_abs, tag = 'smem constant byte address 0x4 - core index']
  #allocation1 [shape = 'u32[144,128]{1,0:T(1,128)}', space=vmem, size = 0x12000, scoped, tag = 'internal scratch']
  %s0 = inlined_call_operand.vmem [shape: bf16[2,32,128], index: 0, kind: input, shape index: {}]
  %s1 = inlined_call_operand.vmem [shape: bf16[4,128,128], index: 1, kind: input, shape index: {}]
  %s2 = inlined_call_operand.vmem [shape: f32[20,1], index: 2, kind: input, shape index: {}]
  %s3 = inlined_call_operand.vmem [shape: bf16[2,20,128], index: 3, kind: output, shape index: {0}]
  %s4 = inlined_call_operand.vmem [shape: f32[2,2,128], index: 4, kind: output, shape index: {1}]
  %5 = xla_tuple %s3, %s4
  %s6 = sld [smem:[#allocation0]]
  $region53: #{dcgan_discriminator_forward.7} parent=0
    _
  %s8 = ssub.s32 1, %s6
  %s9 = scalar_select 0, %s8, %s6
  loop: start=0, step=1, limit=4
  $region2: #{dcgan_discriminator_forward.7} parent=0 // loop_pre_header
    _
  $region3: #{dcgan_discriminator_forward.7} parent=0 // loop_header
    %s11 = sphi 0, %s15
    %p12 = scmp.ge.s32.totalorder %s11, 4
    %s21 = sphi 0, %s23
    %s24 = sphi 0, %s21
    %s25 = sphi 0, %s24
    %s41 = sphi 0, %s25
    %s45 = sphi 0, %s45
    %s47 = sphi 0, %s45
    %s48 = sphi 0, %s47
    %s62 = sphi 0, %s48
    %s66 = sphi 0, %s66
    %s68 = sphi 0, %s66
    %s69 = sphi 0, %s68
    %s83 = sphi 0, %s69
    %s89 = sphi 0, %s91
    %s92 = sphi 0, %s89
    %s93 = sphi 0, %s92
    %s109 = sphi 0, %s93
    %s115 = sphi 0, %s117
    %s118 = sphi 0, %s115
    %s119 = sphi 0, %s118
    %s135 = sphi 0, %s119
  $region4: #{dcgan_discriminator_forward.7} parent=0 // loop_header_branch
    %14 = sbr.rel (%p12) target = $region8
  $region5: #{dcgan_discriminator_forward.7} parent=0 // loop_body
    %s16 = ssub.s32 %s11, 1
    %s17 = ssub.s32 %s11, 2
    %s18 = sadd.s32 %s11, 1
    %s19 = ssub.s32 %s11, %s18
    %p20 = scmp.eq.s32.totalorder %s19, 0
    %s22 = sadd.s32 %s21, 1
    %s23 = scalar_select %p20, %s21, %s22
    %p26 = pneg %p20
    %p27 = scmp.eq.s32.totalorder %s11, 1
    %p28 = por %p26, %p27
    %p29 = scmp.ne.s32.totalorder %s21, %s24
    %p30 = scmp.eq.s32.totalorder %s11, 0
    %p31 = por %p29, %p30
    %p32 = scmp.ne.s32.totalorder %s21, %s24
    %p33 = scmp.eq.s32.totalorder %s16, 1
    %p34 = por %p32, %p33
    %p35 = scmp.ne.s32.totalorder %s24, %s25
    %p36 = scmp.eq.s32.totalorder %s16, 0
    %p37 = por %p35, %p36
    %p38 = scmp.ne.s32.totalorder %s24, %s25
    %p39 = scmp.eq.s32.totalorder %s17, 1
    %p40 = por %p38, %p39
    %p42 = scmp.ne.s32.totalorder %s25, %s41
    %p43 = scmp.eq.s32.totalorder %s17, 0
    %p44 = por %p42, %p43
    %s46 = sadd.s32 %s45, 1
    %p49 = scmp.eq.s32.totalorder %s11, 1
    %p50 = scmp.ne.s32.totalorder %s45, %s47
    %p51 = scmp.eq.s32.totalorder %s11, 0
    %p52 = por %p50, %p51
    %p53 = scmp.ne.s32.totalorder %s45, %s47
    %p54 = scmp.eq.s32.totalorder %s16, 1
    %p55 = por %p53, %p54
    %p56 = scmp.ne.s32.totalorder %s47, %s48
    %p57 = scmp.eq.s32.totalorder %s16, 0
    %p58 = por %p56, %p57
    %p59 = scmp.ne.s32.totalorder %s47, %s48
    %p60 = scmp.eq.s32.totalorder %s17, 1
    %p61 = por %p59, %p60
    %p63 = scmp.ne.s32.totalorder %s48, %s62
    %p64 = scmp.eq.s32.totalorder %s17, 0
    %p65 = por %p63, %p64
    %s67 = sadd.s32 %s66, 1
    %p70 = scmp.eq.s32.totalorder %s11, 1
    %p71 = scmp.ne.s32.totalorder %s66, %s68
    %p72 = scmp.eq.s32.totalorder %s11, 0
    %p73 = por %p71, %p72
    %p74 = scmp.ne.s32.totalorder %s66, %s68
    %p75 = scmp.eq.s32.totalorder %s16, 1
    %p76 = por %p74, %p75
    %p77 = scmp.ne.s32.totalorder %s68, %s69
    %p78 = scmp.eq.s32.totalorder %s16, 0
    %p79 = por %p77, %p78
    %p80 = scmp.ne.s32.totalorder %s68, %s69
    %p81 = scmp.eq.s32.totalorder %s17, 1
    %p82 = por %p80, %p81
    %p84 = scmp.ne.s32.totalorder %s69, %s83
    %p85 = scmp.eq.s32.totalorder %s17, 0
    %p86 = por %p84, %p85
    %s87 = ssub.s32 %s11, %s18
    %p88 = scmp.eq.s32.totalorder %s87, 0
    %s90 = sadd.s32 %s89, 1
    %s91 = scalar_select %p88, %s89, %s90
    %p94 = pneg %p88
    %p95 = scmp.eq.s32.totalorder %s11, 1
    %p96 = por %p94, %p95
    %p97 = scmp.ne.s32.totalorder %s89, %s92
    %p98 = scmp.eq.s32.totalorder %s11, 0
    %p99 = por %p97, %p98
    %p100 = scmp.ne.s32.totalorder %s89, %s92
    %p101 = scmp.eq.s32.totalorder %s16, 1
    %p102 = por %p100, %p101
    %p103 = scmp.ne.s32.totalorder %s92, %s93
    %p104 = scmp.eq.s32.totalorder %s16, 0
    %p105 = por %p103, %p104
    %p106 = scmp.ne.s32.totalorder %s92, %s93
    %p107 = scmp.eq.s32.totalorder %s17, 1
    %p108 = por %p106, %p107
    %p110 = scmp.ne.s32.totalorder %s93, %s109
    %p111 = scmp.eq.s32.totalorder %s17, 0
    %p112 = por %p110, %p111
    %s113 = ssub.s32 %s11, %s18
    %p114 = scmp.eq.s32.totalorder %s113, 0
    %s116 = sadd.s32 %s115, 1
    %s117 = scalar_select %p114, %s115, %s116
    %p120 = pneg %p114
    %p121 = scmp.eq.s32.totalorder %s11, 1
    %p122 = por %p120, %p121
    %p123 = scmp.ne.s32.totalorder %s115, %s118
    %p124 = scmp.eq.s32.totalorder %s11, 0
    %p125 = por %p123, %p124
    %p126 = scmp.ne.s32.totalorder %s115, %s118
    %p127 = scmp.eq.s32.totalorder %s16, 1
    %p128 = por %p126, %p127
    %p129 = scmp.ne.s32.totalorder %s118, %s119
    %p130 = scmp.eq.s32.totalorder %s16, 0
    %p131 = por %p129, %p130
    %p132 = scmp.ne.s32.totalorder %s118, %s119
    %p133 = scmp.eq.s32.totalorder %s17, 1
    %p134 = por %p132, %p133
    %p136 = scmp.ne.s32.totalorder %s119, %s135
    %p137 = scmp.eq.s32.totalorder %s17, 0
    %p138 = por %p136, %p137
    %p139 = scmp.le.s32.totalorder 1, %s11
    %p140 = scmp.lt.s32.totalorder %s11, 3
    %p141 = pnand %p139, %p140
    %p142 = pneg %p141
    // Predicated region
    $region9: #{dcgan_discriminator_forward.7} parent=5 // pred_check
      _
    $region10: #{dcgan_discriminator_forward.7} parent=5 // pred_check_branch
      %144 = sbr.rel (%p141) target = $region12
    $region11: #{dcgan_discriminator_forward.7} parent=5 // pred_region
      %s145 = ssub.s32 %s11, 1
      // Predicated region
      $region13: #{dcgan_discriminator_forward.7} parent=11 // pred_check
        %p146 = pneg %p58
      $region14: #{dcgan_discriminator_forward.7} parent=11 // pred_check_branch
        %148 = sbr.rel (%p146) target = $region16
      $region15: #{dcgan_discriminator_forward.7} parent=11 // pred_region
        _
      $region16: #{dcgan_discriminator_forward.7} parent=11 // pred_fallthru
        _
      // Predicated region
      $region17: #{dcgan_discriminator_forward.7} parent=11 // pred_check
        %p149 = pneg %p79
      $region18: #{dcgan_discriminator_forward.7} parent=11 // pred_check_branch
        %151 = sbr.rel (%p149) target = $region20
      $region19: #{dcgan_discriminator_forward.7} parent=11 // pred_region
        _
      $region20: #{dcgan_discriminator_forward.7} parent=11 // pred_fallthru
        _
    $region12: #{dcgan_discriminator_forward.7} parent=5 // pred_fallthru
      _
    %p152 = scmp.lt.s32.totalorder %s11, 2
    // Predicated region
    $region21: #{dcgan_discriminator_forward.7} parent=5 // pred_check
      %p153 = pneg %p152
    $region22: #{dcgan_discriminator_forward.7} parent=5 // pred_check_branch
      %155 = sbr.rel (%p153) target = $region24
    $region23: #{dcgan_discriminator_forward.7} parent=5 // pred_region
      // Predicated region
      $region25: #{dcgan_discriminator_forward.7} parent=23 // pred_check
        %p156 = pneg %p31
      $region26: #{dcgan_discriminator_forward.7} parent=23 // pred_check_branch
        %158 = sbr.rel (%p156) target = $region28
      $region27: #{dcgan_discriminator_forward.7} parent=23 // pred_region
        %p159 = scmp.lt.s32.totalorder %s11, 1
        %s160 = scalar_select %p159, %s11, 1
        %s161 = smul.addr %s160, 4
        %s162 = smul.addr %s161, 4
        %s163 = scalar_lea.vmem %s0, %s162
      $region28: #{dcgan_discriminator_forward.7} parent=23 // pred_fallthru
        _
    $region24: #{dcgan_discriminator_forward.7} parent=5 // pred_fallthru
      _
    %p164 = scmp.le.s32.totalorder 1, %s11
    %p165 = scmp.lt.s32.totalorder %s11, 3
    %p166 = pnand %p164, %p165
    %p167 = pneg %p166
    // Predicated region
    $region29: #{dcgan_discriminator_forward.7} parent=5 // pred_check
      _
    $region30: #{dcgan_discriminator_forward.7} parent=5 // pred_check_branch
      %169 = sbr.rel (%p166) target = $region32
    $region31: #{dcgan_discriminator_forward.7} parent=5 // pred_region
      %s170 = ssub.s32 %s11, 1
      %p171 = scmp.lt.s32.totalorder %s16, 1
      %s172 = scalar_select %p171, %s16, 1
      %s173 = smul.addr %s172, 4
      %s174 = smul.addr %s173, 4
      %s175 = scalar_lea.vmem %s0, %s174
      %p176 = pneg %p37
      %p177 = pneg %p34
      %p178 = pneg %p58
      %p179 = pneg %p55
      %p180 = pneg %p79
      %p181 = pneg %p76
      %p182 = pneg %p105
      %p183 = pneg %p102
      %p184 = scmp.lt.s32.totalorder %s16, 1
      %s185 = scalar_select %p184, %s16, 1
      %s186 = smul.addr %s185, 3
      %s187 = smul.addr %s186, 4
      %s188 = scalar_lea.vmem %s3, %s187
      %p189 = pneg %p131
      %p190 = pneg %p128
      %p191 = scmp.lt.s32.totalorder %s16, 1
      %s192 = scalar_select %p191, %s16, 1
      %s193 = smul.addr %s192, 2
      %s194 = scalar_lea.vmem %s4, %s193
      %p195 = scmp.lt.s32.totalorder %s16, 1
      %s196 = scalar_select %p195, %s16, 1
      %s197 = smul.addr %s196, 4
      %s198 = smul.addr %s197, 4
      %s199 = scalar_lea.vmem %s0, %s198
      %p200 = scmp.lt.s32.totalorder %s16, 1
      %s201 = scalar_select %p200, %s16, 1
      %s202 = smul.addr %s201, 3
      %s203 = smul.addr %s202, 4
      %s204 = scalar_lea.vmem %s3, %s203
      %p205 = scmp.lt.s32.totalorder %s16, 1
      %s206 = scalar_select %p205, %s16, 1
      %s207 = smul.addr %s206, 2
      %s208 = scalar_lea.vmem %s4, %s207
      %v210 = vld [vmem:[%s199] sm:$0xf]
      %v211 = vld [vmem:[%s199 + $0x4] sm:$0xf]
      %v212 = vld [vmem:[%s199 + $0x8] sm:$0x3]
      %v213 = vld [vmem:[%s1] sm:$0xf]
      %v214 = vld [vmem:[%s1 + $0x4] sm:$0xf]
      %v215 = vld [vmem:[%s1 + $0x8] sm:$0xf]
      %v216 = vld [vmem:[%s1 + $0xc] sm:$0xf]
      %v217 = vld [vmem:[%s1 + $0x10] sm:$0xf]
      %v218 = vld [vmem:[%s1 + $0x14] sm:$0xf]
      %v219 = vld [vmem:[%s1 + $0x18] sm:$0xf]
      %v220 = vld [vmem:[%s1 + $0x1c] sm:$0xf]
      %v221 = vld [vmem:[%s1 + $0x20] sm:$0xf]
      %v222 = vld [vmem:[%s1 + $0x24] sm:$0xf]
      %v223 = vld [vmem:[%s1 + $0x28] sm:$0xf]
      %v224 = vld [vmem:[%s1 + $0x2c] sm:$0xf]
      %v225 = vld [vmem:[%s1 + $0x30] sm:$0xf]
      %v226 = vld [vmem:[%s1 + $0x34] sm:$0xf]
      %v227 = vld [vmem:[%s1 + $0x38] sm:$0xf]
      %v228 = vld [vmem:[%s1 + $0x3c] sm:$0xf]
      %v229 = vld [vmem:[%s199 + $0x8] sm:$0x7]
      %s230 = scalar_lea.vmem %s1, 64
      %v231 = vld [vmem:[%s230] sm:$0xf]
      %v232 = vld [vmem:[%s230 + $0x4] sm:$0xf]
      %v233 = vld [vmem:[%s230 + $0x8] sm:$0xf]
      %v234 = vld [vmem:[%s230 + $0xc] sm:$0xf]
      %v235 = vld [vmem:[%s230 + $0x10] sm:$0xf]
      %v236 = vld [vmem:[%s230 + $0x14] sm:$0xf]
      %v237 = vld [vmem:[%s230 + $0x18] sm:$0xf]
      %v238 = vld [vmem:[%s230 + $0x1c] sm:$0xf]
      %v239 = vld [vmem:[%s230 + $0x20] sm:$0xf]
      %v240 = vld [vmem:[%s230 + $0x24] sm:$0xf]
      %v241 = vld [vmem:[%s230 + $0x28] sm:$0xf]
      %v242 = vld [vmem:[%s230 + $0x2c] sm:$0xf]
      %v243 = vld [vmem:[%s230 + $0x30] sm:$0xf]
      %v244 = vld [vmem:[%s230 + $0x34] sm:$0xf]
      %v245 = vld [vmem:[%s230 + $0x38] sm:$0xf]
      %v246 = vld [vmem:[%s230 + $0x3c] sm:$0xf]
      %v250 = vunpack.c.l.b16 %v210
      %v251 = vunpack.c.l.b16 %v211
      %v252 = vunpack.c.l.b16 %v229
      %v253 = vpack.c.b16 %v251, %v250
      %v254 = vpack.c.b16 %v252, %v252
      %vm255 = vsmask.f32 7424
      %v257 = vshrl.u32 %v253, 16
      %v259 = vshll.u32 %v253, 16
      %v261 = vrot.slane %v259, 1
      %v262 = vor.u32 %v257, %v261
      %v264 = vshll.u32 %v254, 16
      %v266 = vrot.slane %v264, 1
      %v267 = vsel %vm255, %v262, %v266
      %v268 = vshrl.u32 %v254, 16
      %v270 = vor.u32 %v268, %v266
      %v289 = vunpack.c.l.b16 %v231
      %v290 = vunpack.c.l.b16 %v232
      %v291 = vunpack.c.l.b16 %v233
      %v292 = vunpack.c.l.b16 %v234
      %v293 = vunpack.c.l.b16 %v235
      %v294 = vunpack.c.l.b16 %v236
      %v295 = vunpack.c.l.b16 %v237
      %v296 = vunpack.c.l.b16 %v238
      %v297 = vunpack.c.l.b16 %v239
      %v298 = vunpack.c.l.b16 %v240
      %v299 = vunpack.c.l.b16 %v241
      %v300 = vunpack.c.l.b16 %v242
      %v301 = vunpack.c.l.b16 %v243
      %v302 = vunpack.c.l.b16 %v244
      %v303 = vunpack.c.l.b16 %v245
      %v304 = vunpack.c.l.b16 %v246
      %v305 = vpack.c.b16 %v290, %v289
      %v306 = vpack.c.b16 %v292, %v291
      %v307 = vpack.c.b16 %v294, %v293
      %v308 = vpack.c.b16 %v296, %v295
      %v309 = vpack.c.b16 %v298, %v297
      %v310 = vpack.c.b16 %v300, %v299
      %v311 = vpack.c.b16 %v302, %v301
      %v312 = vpack.c.b16 %v304, %v303
      %321 = vmatprep.subr.bf16.mxu0 0
      %322 = vmatpush1.bf16.msra.mxu0 %v312
      %323 = vmatprep.subr.bf16.mxu0 0
      %324 = vmatpush1.bf16.msra.mxu0 %v311
      %325 = vmatprep.subr.bf16.mxu0 0
      %326 = vmatpush1.bf16.msra.mxu0 %v310
      %327 = vmatprep.subr.bf16.mxu0 0
      %328 = vmatpush1.bf16.msra.mxu0 %v309
      %329 = vmatprep.subr.bf16.mxu0 0
      %330 = vmatpush1.bf16.msra.mxu0 %v308
      %331 = vmatprep.subr.bf16.mxu0 0
      %332 = vmatpush1.bf16.msra.mxu0 %v307
      %333 = vmatprep.subr.bf16.mxu0 0
      %334 = vmatpush1.bf16.msra.mxu0 %v306
      %335 = vmatprep.subr.bf16.mxu0 0
      %336 = vmatpush1.bf16.msra.mxu0 %v305
      %337 = vmatprep.subr.bf16.mxu0 0
      %338 = vmatpush2.bf16.msra.mxu0 0
      %339 = vmatprep.subr.bf16.mxu0 0
      %340 = vmatpush2.bf16.msra.mxu0 0
      %341 = vmatprep.subr.bf16.mxu0 0
      %342 = vmatpush2.bf16.msra.mxu0 0
      %343 = vmatprep.subr.bf16.mxu0 0
      %344 = vmatpush2.bf16.msra.mxu0 0
      %345 = vmatprep.subr.bf16.mxu0 0
      %346 = vmatpush2.bf16.msra.mxu0 0
      %347 = vmatprep.subr.bf16.mxu0 0
      %348 = vmatpush2.bf16.msra.mxu0 0
      %349 = vmatprep.subr.bf16.mxu0 0
      %350 = vmatpush2.bf16.msra.mxu0 0
      %351 = vmatprep.subr.bf16.mxu0 0
      %352 = vmatpush2.bf16.msra.mxu0 0
      %353 = vmatprep.mubr.bf16.mxu0 0
      %354 = vmatmul.mubr.bf16.gmra.mxu0 %v267
      %v355 = vpop.f32.mrf.mxu0
      %v356 = vadd.f32 0.0, %v355
      %v357 = vpop.f32.mrf.mxu0
      %v358 = vpop.f32.mrf.mxu0
      %v359 = vadd.f32 0.0, %v358
      %v360 = vpop.f32.mrf.mxu0
      %361 = vmatprep.mubr.bf16.mxu0 0
      %362 = vmatmul.mubr.bf16.gmra.mxu0 %v270
      %v363 = vpop.f32.mrf.mxu0
      %v364 = vadd.f32 0.0, %v363
      %v365 = vpop.f32.mrf.mxu0
      %v366 = vpop.f32.mrf.mxu0
      %v367 = vpop.f32.mrf.mxu0
      %368 = vdwg.mxu0
      %v370 = vunpack.c.l.b16 %v212
      %v371 = vpack.c.b16 %v370, %v370
      %v390 = vunpack.c.l.b16 %v213
      %v391 = vunpack.c.l.b16 %v214
      %v392 = vunpack.c.l.b16 %v215
      %v393 = vunpack.c.l.b16 %v216
      %v394 = vunpack.c.l.b16 %v217
      %v395 = vunpack.c.l.b16 %v218
      %v396 = vunpack.c.l.b16 %v219
      %v397 = vunpack.c.l.b16 %v220
      %v398 = vunpack.c.l.b16 %v221
      %v399 = vunpack.c.l.b16 %v222
      %v400 = vunpack.c.l.b16 %v223
      %v401 = vunpack.c.l.b16 %v224
      %v402 = vunpack.c.l.b16 %v225
      %v403 = vunpack.c.l.b16 %v226
      %v404 = vunpack.c.l.b16 %v227
      %v405 = vunpack.c.l.b16 %v228
      %v406 = vpack.c.b16 %v391, %v390
      %v407 = vpack.c.b16 %v393, %v392
      %v408 = vpack.c.b16 %v395, %v394
      %v409 = vpack.c.b16 %v397, %v396
      %v410 = vpack.c.b16 %v399, %v398
      %v411 = vpack.c.b16 %v401, %v400
      %v412 = vpack.c.b16 %v403, %v402
      %v413 = vpack.c.b16 %v405, %v404
      %422 = vmatprep.subr.bf16.mxu0 0
      %423 = vmatpush1.bf16.msra.mxu0 %v413
      %424 = vmatprep.subr.bf16.mxu0 0
      %425 = vmatpush1.bf16.msra.mxu0 %v412
      %426 = vmatprep.subr.bf16.mxu0 0
      %427 = vmatpush1.bf16.msra.mxu0 %v411
      %428 = vmatprep.subr.bf16.mxu0 0
      %429 = vmatpush1.bf16.msra.mxu0 %v410
      %430 = vmatprep.subr.bf16.mxu0 0
      %431 = vmatpush1.bf16.msra.mxu0 %v409
      %432 = vmatprep.subr.bf16.mxu0 0
      %433 = vmatpush1.bf16.msra.mxu0 %v408
      %434 = vmatprep.subr.bf16.mxu0 0
      %435 = vmatpush1.bf16.msra.mxu0 %v407
      %436 = vmatprep.subr.bf16.mxu0 0
      %437 = vmatpush1.bf16.msra.mxu0 %v406
      %438 = vmatprep.subr.bf16.mxu0 0
      %439 = vmatpush2.bf16.msra.mxu0 0
      %440 = vmatprep.subr.bf16.mxu0 0
      %441 = vmatpush2.bf16.msra.mxu0 0
      %442 = vmatprep.subr.bf16.mxu0 0
      %443 = vmatpush2.bf16.msra.mxu0 0
      %444 = vmatprep.subr.bf16.mxu0 0
      %445 = vmatpush2.bf16.msra.mxu0 0
      %446 = vmatprep.subr.bf16.mxu0 0
      %447 = vmatpush2.bf16.msra.mxu0 0
      %448 = vmatprep.subr.bf16.mxu0 0
      %449 = vmatpush2.bf16.msra.mxu0 0
      %450 = vmatprep.subr.bf16.mxu0 0
      %451 = vmatpush2.bf16.msra.mxu0 0
      %452 = vmatprep.subr.bf16.mxu0 0
      %453 = vmatpush2.bf16.msra.mxu0 0
      %454 = vmatprep.mubr.bf16.mxu0 0
      %455 = vmatmul.mubr.bf16.gmra.mxu0 %v253
      %v456 = vpop.f32.mrf.mxu0
      %v457 = vadd.f32 %v356, %v456
      %v458 = vpop.f32.mrf.mxu0
      %v459 = vpop.f32.mrf.mxu0
      %v460 = vadd.f32 %v359, %v459
      %v461 = vpop.f32.mrf.mxu0
      %462 = vmatprep.mubr.bf16.mxu0 0
      %463 = vmatmul.mubr.bf16.gmra.mxu0 %v371
      %v464 = vpop.f32.mrf.mxu0
      %v465 = vadd.f32 %v364, %v464
      %v466 = vpop.f32.mrf.mxu0
      %v467 = vpop.f32.mrf.mxu0
      %v468 = vpop.f32.mrf.mxu0
      %469 = vdwg.mxu0
      %v470 = vld [vmem:[%s199] sm:$0xc]
      %v471 = vld [vmem:[%s199 + $0x4] sm:$0xf]
      %v472 = vld [vmem:[%s199 + $0x8] sm:$0xf]
      %v473 = vld [vmem:[%s199 + $0xc] sm:$0x1]
      %s474 = scalar_lea.vmem %s1, 128
      %v475 = vld [vmem:[%s474] sm:$0xf]
      %v476 = vld [vmem:[%s474 + $0x4] sm:$0xf]
      %v477 = vld [vmem:[%s474 + $0x8] sm:$0xf]
      %v478 = vld [vmem:[%s474 + $0xc] sm:$0xf]
      %v479 = vld [vmem:[%s474 + $0x10] sm:$0xf]
      %v480 = vld [vmem:[%s474 + $0x14] sm:$0xf]
      %v481 = vld [vmem:[%s474 + $0x18] sm:$0xf]
      %v482 = vld [vmem:[%s474 + $0x1c] sm:$0xf]
      %v483 = vld [vmem:[%s474 + $0x20] sm:$0xf]
      %v484 = vld [vmem:[%s474 + $0x24] sm:$0xf]
      %v485 = vld [vmem:[%s474 + $0x28] sm:$0xf]
      %v486 = vld [vmem:[%s474 + $0x2c] sm:$0xf]
      %v487 = vld [vmem:[%s474 + $0x30] sm:$0xf]
      %v488 = vld [vmem:[%s474 + $0x34] sm:$0xf]
      %v489 = vld [vmem:[%s474 + $0x38] sm:$0xf]
      %v490 = vld [vmem:[%s474 + $0x3c] sm:$0xf]
      %v495 = vunpack.c.l.b16 %v470
      %v496 = vunpack.c.l.b16 %v471
      %v497 = vunpack.c.l.b16 %v472
      %v498 = vunpack.c.l.b16 %v473
      %v499 = vpack.c.b16 %v496, %v495
      %v500 = vpack.c.b16 %v498, %v497
      %vm501 = vsmask.f32 5376
      %v503 = vshrl.u32 %v499, 16
      %v505 = vrot.slane %v503, 2
      %v506 = vshll.u32 %v499, 16
      %v508 = vrot.slane %v506, 3
      %v509 = vor.u32 %v505, %v508
      %v511 = vshrl.u32 %v500, 16
      %v513 = vrot.slane %v511, 2
      %v514 = vshll.u32 %v500, 16
      %v516 = vrot.slane %v514, 3
      %v517 = vor.u32 %v513, %v516
      %v518 = vsel %vm501, %v509, %v517
      %v537 = vunpack.c.l.b16 %v475
      %v538 = vunpack.c.l.b16 %v476
      %v539 = vunpack.c.l.b16 %v477
      %v540 = vunpack.c.l.b16 %v478
      %v541 = vunpack.c.l.b16 %v479
      %v542 = vunpack.c.l.b16 %v480
      %v543 = vunpack.c.l.b16 %v481
      %v544 = vunpack.c.l.b16 %v482
      %v545 = vunpack.c.l.b16 %v483
      %v546 = vunpack.c.l.b16 %v484
      %v547 = vunpack.c.l.b16 %v485
      %v548 = vunpack.c.l.b16 %v486
      %v549 = vunpack.c.l.b16 %v487
      %v550 = vunpack.c.l.b16 %v488
      %v551 = vunpack.c.l.b16 %v489
      %v552 = vunpack.c.l.b16 %v490
      %v553 = vpack.c.b16 %v538, %v537
      %v554 = vpack.c.b16 %v540, %v539
      %v555 = vpack.c.b16 %v542, %v541
      %v556 = vpack.c.b16 %v544, %v543
      %v557 = vpack.c.b16 %v546, %v545
      %v558 = vpack.c.b16 %v548, %v547
      %v559 = vpack.c.b16 %v550, %v549
      %v560 = vpack.c.b16 %v552, %v551
      %569 = vmatprep.subr.bf16.mxu0 0
      %570 = vmatpush1.bf16.msra.mxu0 %v560
      %571 = vmatprep.subr.bf16.mxu0 0
      %572 = vmatpush1.bf16.msra.mxu0 %v559
      %573 = vmatprep.subr.bf16.mxu0 0
      %574 = vmatpush1.bf16.msra.mxu0 %v558
      %575 = vmatprep.subr.bf16.mxu0 0
      %576 = vmatpush1.bf16.msra.mxu0 %v557
      %577 = vmatprep.subr.bf16.mxu0 0
      %578 = vmatpush1.bf16.msra.mxu0 %v556
      %579 = vmatprep.subr.bf16.mxu0 0
      %580 = vmatpush1.bf16.msra.mxu0 %v555
      %581 = vmatprep.subr.bf16.mxu0 0
      %582 = vmatpush1.bf16.msra.mxu0 %v554
      %583 = vmatprep.subr.bf16.mxu0 0
      %584 = vmatpush1.bf16.msra.mxu0 %v553
      %585 = vmatprep.subr.bf16.mxu0 0
      %586 = vmatpush2.bf16.msra.mxu0 0
      %587 = vmatprep.subr.bf16.mxu0 0
      %588 = vmatpush2.bf16.msra.mxu0 0
      %589 = vmatprep.subr.bf16.mxu0 0
      %590 = vmatpush2.bf16.msra.mxu0 0
      %591 = vmatprep.subr.bf16.mxu0 0
      %592 = vmatpush2.bf16.msra.mxu0 0
      %593 = vmatprep.subr.bf16.mxu0 0
      %594 = vmatpush2.bf16.msra.mxu0 0
      %595 = vmatprep.subr.bf16.mxu0 0
      %596 = vmatpush2.bf16.msra.mxu0 0
      %597 = vmatprep.subr.bf16.mxu0 0
      %598 = vmatpush2.bf16.msra.mxu0 0
      %599 = vmatprep.subr.bf16.mxu0 0
      %600 = vmatpush2.bf16.msra.mxu0 0
      %601 = vmatprep.mubr.bf16.mxu0 0
      %602 = vmatmul.mubr.bf16.gmra.mxu0 %v518
      %v603 = vpop.f32.mrf.mxu0
      %v604 = vadd.f32 0.0, %v603
      %v605 = vpop.f32.mrf.mxu0
      %v606 = vpop.f32.mrf.mxu0
      %v607 = vadd.f32 0.0, %v606
      %v608 = vpop.f32.mrf.mxu0
      %609 = vmatprep.mubr.bf16.mxu0 0
      %610 = vmatmul.mubr.bf16.gmra.mxu0 %v517
      %v611 = vpop.f32.mrf.mxu0
      %v612 = vadd.f32 0.0, %v611
      %v613 = vpop.f32.mrf.mxu0
      %v614 = vpop.f32.mrf.mxu0
      %v615 = vpop.f32.mrf.mxu0
      %616 = vdwg.mxu0
      %v617 = vadd.f32 %v457, %v604
      %v618 = vadd.f32 %v460, %v607
      %v619 = vadd.f32 %v465, %v612
      %v620 = vld [vmem:[%s199] sm:$0x8]
      %s621 = scalar_lea.vmem %s1, 192
      %v622 = vld [vmem:[%s621] sm:$0xf]
      %v623 = vld [vmem:[%s621 + $0x4] sm:$0xf]
      %v624 = vld [vmem:[%s621 + $0x8] sm:$0xf]
      %v625 = vld [vmem:[%s621 + $0xc] sm:$0xf]
      %v626 = vld [vmem:[%s621 + $0x10] sm:$0xf]
      %v627 = vld [vmem:[%s621 + $0x14] sm:$0xf]
      %v628 = vld [vmem:[%s621 + $0x18] sm:$0xf]
      %v629 = vld [vmem:[%s621 + $0x1c] sm:$0xf]
      %v630 = vld [vmem:[%s621 + $0x20] sm:$0xf]
      %v631 = vld [vmem:[%s621 + $0x24] sm:$0xf]
      %v632 = vld [vmem:[%s621 + $0x28] sm:$0xf]
      %v633 = vld [vmem:[%s621 + $0x2c] sm:$0xf]
      %v634 = vld [vmem:[%s621 + $0x30] sm:$0xf]
      %v635 = vld [vmem:[%s621 + $0x34] sm:$0xf]
      %v636 = vld [vmem:[%s621 + $0x38] sm:$0xf]
      %v637 = vld [vmem:[%s621 + $0x3c] sm:$0xf]
      %v639 = vunpack.c.l.b16 %v620
      %v640 = vpack.c.b16 %v496, %v639
      %vm641 = vcmask 1044480
      %v642 = vrot.slane %v640, 3
      %v643 = vrot.slane %v500, 3
      %v644 = vsel %vm641, %v642, %v643
      %v663 = vunpack.c.l.b16 %v622
      %v664 = vunpack.c.l.b16 %v623
      %v665 = vunpack.c.l.b16 %v624
      %v666 = vunpack.c.l.b16 %v625
      %v667 = vunpack.c.l.b16 %v626
      %v668 = vunpack.c.l.b16 %v627
      %v669 = vunpack.c.l.b16 %v628
      %v670 = vunpack.c.l.b16 %v629
      %v671 = vunpack.c.l.b16 %v630
      %v672 = vunpack.c.l.b16 %v631
      %v673 = vunpack.c.l.b16 %v632
      %v674 = vunpack.c.l.b16 %v633
      %v675 = vunpack.c.l.b16 %v634
      %v676 = vunpack.c.l.b16 %v635
      %v677 = vunpack.c.l.b16 %v636
      %v678 = vunpack.c.l.b16 %v637
      %v679 = vpack.c.b16 %v664, %v663
      %v680 = vpack.c.b16 %v666, %v665
      %v681 = vpack.c.b16 %v668, %v667
      %v682 = vpack.c.b16 %v670, %v669
      %v683 = vpack.c.b16 %v672, %v671
      %v684 = vpack.c.b16 %v674, %v673
      %v685 = vpack.c.b16 %v676, %v675
      %v686 = vpack.c.b16 %v678, %v677
      %695 = vmatprep.subr.bf16.mxu0 0
      %696 = vmatpush1.bf16.msra.mxu0 %v686
      %697 = vmatprep.subr.bf16.mxu0 0
      %698 = vmatpush1.bf16.msra.mxu0 %v685
      %699 = vmatprep.subr.bf16.mxu0 0
      %700 = vmatpush1.bf16.msra.mxu0 %v684
      %701 = vmatprep.subr.bf16.mxu0 0
      %702 = vmatpush1.bf16.msra.mxu0 %v683
      %703 = vmatprep.subr.bf16.mxu0 0
      %704 = vmatpush1.bf16.msra.mxu0 %v682
      %705 = vmatprep.subr.bf16.mxu0 0
      %706 = vmatpush1.bf16.msra.mxu0 %v681
      %707 = vmatprep.subr.bf16.mxu0 0
      %708 = vmatpush1.bf16.msra.mxu0 %v680
      %709 = vmatprep.subr.bf16.mxu0 0
      %710 = vmatpush1.bf16.msra.mxu0 %v679
      %711 = vmatprep.subr.bf16.mxu0 0
      %712 = vmatpush2.bf16.msra.mxu0 0
      %713 = vmatprep.subr.bf16.mxu0 0
      %714 = vmatpush2.bf16.msra.mxu0 0
      %715 = vmatprep.subr.bf16.mxu0 0
      %716 = vmatpush2.bf16.msra.mxu0 0
      %717 = vmatprep.subr.bf16.mxu0 0
      %718 = vmatpush2.bf16.msra.mxu0 0
      %719 = vmatprep.subr.bf16.mxu0 0
      %720 = vmatpush2.bf16.msra.mxu0 0
      %721 = vmatprep.subr.bf16.mxu0 0
      %722 = vmatpush2.bf16.msra.mxu0 0
      %723 = vmatprep.subr.bf16.mxu0 0
      %724 = vmatpush2.bf16.msra.mxu0 0
      %725 = vmatprep.subr.bf16.mxu0 0
      %726 = vmatpush2.bf16.msra.mxu0 0
      %727 = vmatprep.mubr.bf16.mxu0 0
      %728 = vmatmul.mubr.bf16.gmra.mxu0 %v644
      %v729 = vpop.f32.mrf.mxu0
      %v730 = vadd.f32 0.0, %v729
      %v731 = vpop.f32.mrf.mxu0
      %v732 = vpop.f32.mrf.mxu0
      %v733 = vadd.f32 0.0, %v732
      %v734 = vpop.f32.mrf.mxu0
      %735 = vmatprep.mubr.bf16.mxu0 0
      %736 = vmatmul.mubr.bf16.gmra.mxu0 %v643
      %v737 = vpop.f32.mrf.mxu0
      %v738 = vadd.f32 0.0, %v737
      %v739 = vpop.f32.mrf.mxu0
      %v740 = vpop.f32.mrf.mxu0
      %v741 = vpop.f32.mrf.mxu0
      %742 = vdwg.mxu0
      %v743 = vadd.f32 %v617, %v730
      %v744 = vadd.f32 %v618, %v733
      %v745 = vadd.f32 %v619, %v738
      %v746 = vpack.c.bf16 %v744, %v743
      %v747 = vpack.c.bf16 %v745, %v745
      %v750 = vunpack.c.l.b16 %v746
      %v751 = vunpack.c.h.b16 %v746
      %v752 = vunpack.c.l.b16 %v747
      %v753 = vpack.c.b16 %v750, %v750
      %v754 = vpack.c.b16 %v751, %v751
      %v755 = vpack.c.b16 %v752, %v752
      %759 = vst [vmem:[%s204] sm:$0xf] %v753
      %760 = vst [vmem:[%s204 + $0x4] sm:$0xf] %v754
      %761 = vst [vmem:[%s204 + $0x8] sm:$0x3] %v755
      %v762 = vld [vmem:[%s2] sm:$0xff]
      %v763 = vld [vmem:[%s2 + $0x8] sm:$0xff]
      %v764 = vld [vmem:[%s2 + $0x10] sm:$0xf]
      %766 = vset.pattern.permute.xlu0 0
      %767 = vperm.xlu0 %766, %v762
      %v768 = vpop.permute.xlu0 %767
      %771 = vset.pattern.permute.xlu0 0
      %772 = vperm.xlu0 %771, %v763
      %v773 = vpop.permute.xlu0 %772
      %776 = vset.pattern.permute.xlu0 0
      %777 = vperm.xlu0 %776, %v764
      %v778 = vpop.permute.xlu0 %777
      %v780 = vmul.f32 %v743, %v768
      %v781 = vmul.f32 %v744, %v773
      %v782 = vmul.f32 %v745, %v778
      %v783 = vadd.f32 %v780, %v781
      %vm784 = vcmask 1043456
      %v785 = vsel %vm784, %v782, 0.0
      %v786 = vadd.f32 %v783, %v785
      %v787 = vrot.slane %v786, 4
      %v788 = vadd.f32 %v786, %v787
      %v789 = vrot.slane %v788, 2
      %v790 = vadd.f32 %v788, %v789
      %v791 = vrot.slane %v790, 1
      %v792 = vadd.f32 %v790, %v791
      %v793 = vmul.f32 %v780, %v743
      %v794 = vmul.f32 %v781, %v744
      %v795 = vmul.f32 %v782, %v745
      %v796 = vadd.f32 %v793, %v794
      %v797 = vsel %vm784, %v795, 0.0
      %v798 = vadd.f32 %v796, %v797
      %v799 = vrot.slane %v798, 4
      %v800 = vadd.f32 %v798, %v799
      %v801 = vrot.slane %v800, 2
      %v802 = vadd.f32 %v800, %v801
      %v803 = vrot.slane %v802, 1
      %v804 = vadd.f32 %v802, %v803
      %vm805 = vcmask 1040384
      %v806 = vsel %vm805, %v792, %v804
      %807 = vst [vmem:[%s208] sm:$0x3] %v806
      %p808 = scmp.lt.s32.totalorder %s16, 1
      %s809 = scalar_select %p808, %s16, 1
      %s810 = smul.addr %s809, 3
      %s811 = smul.addr %s810, 4
      %s812 = scalar_lea.vmem %s3, %s811
      %p813 = scmp.lt.s32.totalorder %s16, 1
      %s814 = scalar_select %p813, %s16, 1
      %s815 = smul.addr %s814, 2
      %s816 = scalar_lea.vmem %s4, %s815
      // Predicated region
      $region33: #{dcgan_discriminator_forward.7} parent=31 // pred_check
        %p817 = pneg %p102
      $region34: #{dcgan_discriminator_forward.7} parent=31 // pred_check_branch
        %819 = sbr.rel (%p817) target = $region36
      $region35: #{dcgan_discriminator_forward.7} parent=31 // pred_region
        _
      $region36: #{dcgan_discriminator_forward.7} parent=31 // pred_fallthru
        _
      // Predicated region
      $region37: #{dcgan_discriminator_forward.7} parent=31 // pred_check
        %p820 = pneg %p128
      $region38: #{dcgan_discriminator_forward.7} parent=31 // pred_check_branch
        %822 = sbr.rel (%p820) target = $region40
      $region39: #{dcgan_discriminator_forward.7} parent=31 // pred_region
        _
      $region40: #{dcgan_discriminator_forward.7} parent=31 // pred_fallthru
        _
    $region32: #{dcgan_discriminator_forward.7} parent=5 // pred_fallthru
      _
    %p823 = scmp.le.s32.totalorder 2, %s11
    // Predicated region
    $region41: #{dcgan_discriminator_forward.7} parent=5 // pred_check
      %p824 = pneg %p823
    $region42: #{dcgan_discriminator_forward.7} parent=5 // pred_check_branch
      %826 = sbr.rel (%p824) target = $region44
    $region43: #{dcgan_discriminator_forward.7} parent=5 // pred_region
      %s827 = ssub.s32 %s11, 2
      // Predicated region
      $region45: #{dcgan_discriminator_forward.7} parent=43 // pred_check
        %p828 = pneg %p108
      $region46: #{dcgan_discriminator_forward.7} parent=43 // pred_check_branch
        %830 = sbr.rel (%p828) target = $region48
      $region47: #{dcgan_discriminator_forward.7} parent=43 // pred_region
        %p831 = scmp.lt.s32.totalorder %s17, 1
        %s832 = scalar_select %p831, %s17, 1
        %s833 = smul.addr %s832, 3
        %s834 = smul.addr %s833, 4
        %s835 = scalar_lea.vmem %s3, %s834
      $region48: #{dcgan_discriminator_forward.7} parent=43 // pred_fallthru
        _
      // Predicated region
      $region49: #{dcgan_discriminator_forward.7} parent=43 // pred_check
        %p836 = pneg %p134
      $region50: #{dcgan_discriminator_forward.7} parent=43 // pred_check_branch
        %838 = sbr.rel (%p836) target = $region52
      $region51: #{dcgan_discriminator_forward.7} parent=43 // pred_region
        %p839 = scmp.lt.s32.totalorder %s17, 1
        %s840 = scalar_select %p839, %s17, 1
        %s841 = smul.addr %s840, 2
        %s842 = scalar_lea.vmem %s4, %s841
      $region52: #{dcgan_discriminator_forward.7} parent=43 // pred_fallthru
        _
    $region44: #{dcgan_discriminator_forward.7} parent=5 // pred_fallthru
      _
  $region6: #{dcgan_discriminator_forward.7} parent=0 // loop_footer
    %s15 = sadd.s32 1, %s11
  $region7: #{dcgan_discriminator_forward.7} parent=0 // loop_footer_branch
    %10 = sbr.rel target = $region3
  $region8: #{dcgan_discriminator_forward.7} parent=0 // loop_exit
    _

// kernel: dcgan_discriminator_forward.8
$region0: #{dcgan_discriminator_forward.8}
  #allocation0 [shape = 'u32[]', space=smem, size = 0x4, offset = 0x4, fixed_abs, tag = 'smem constant byte address 0x4 - core index']
  #allocation1 [shape = 'u32[144,128]{1,0:T(1,128)}', space=vmem, size = 0x12000, scoped, tag = 'internal scratch']
  %s0 = inlined_call_operand.vmem [shape: bf16[2,16,128], index: 0, kind: input, shape index: {}]
  %s1 = inlined_call_operand.vmem [shape: bf16[4,128,128], index: 1, kind: input, shape index: {}]
  %s2 = inlined_call_operand.vmem [shape: f32[6,1], index: 2, kind: input, shape index: {}]
  %s3 = inlined_call_operand.vmem [shape: bf16[2,6,128], index: 3, kind: output, shape index: {0}]
  %s4 = inlined_call_operand.vmem [shape: f32[2,2,128], index: 4, kind: output, shape index: {1}]
  %5 = xla_tuple %s3, %s4
  %s6 = sld [smem:[#allocation0]]
  $region53: #{dcgan_discriminator_forward.8} parent=0
    _
  %s8 = ssub.s32 1, %s6
  %s9 = scalar_select 0, %s8, %s6
  loop: start=0, step=1, limit=4
  $region2: #{dcgan_discriminator_forward.8} parent=0 // loop_pre_header
    _
  $region3: #{dcgan_discriminator_forward.8} parent=0 // loop_header
    %s11 = sphi 0, %s15
    %p12 = scmp.ge.s32.totalorder %s11, 4
    %s21 = sphi 0, %s23
    %s24 = sphi 0, %s21
    %s25 = sphi 0, %s24
    %s41 = sphi 0, %s25
    %s45 = sphi 0, %s45
    %s47 = sphi 0, %s45
    %s48 = sphi 0, %s47
    %s62 = sphi 0, %s48
    %s66 = sphi 0, %s66
    %s68 = sphi 0, %s66
    %s69 = sphi 0, %s68
    %s83 = sphi 0, %s69
    %s89 = sphi 0, %s91
    %s92 = sphi 0, %s89
    %s93 = sphi 0, %s92
    %s109 = sphi 0, %s93
    %s115 = sphi 0, %s117
    %s118 = sphi 0, %s115
    %s119 = sphi 0, %s118
    %s135 = sphi 0, %s119
  $region4: #{dcgan_discriminator_forward.8} parent=0 // loop_header_branch
    %14 = sbr.rel (%p12) target = $region8
  $region5: #{dcgan_discriminator_forward.8} parent=0 // loop_body
    %s16 = ssub.s32 %s11, 1
    %s17 = ssub.s32 %s11, 2
    %s18 = sadd.s32 %s11, 1
    %s19 = ssub.s32 %s11, %s18
    %p20 = scmp.eq.s32.totalorder %s19, 0
    %s22 = sadd.s32 %s21, 1
    %s23 = scalar_select %p20, %s21, %s22
    %p26 = pneg %p20
    %p27 = scmp.eq.s32.totalorder %s11, 1
    %p28 = por %p26, %p27
    %p29 = scmp.ne.s32.totalorder %s21, %s24
    %p30 = scmp.eq.s32.totalorder %s11, 0
    %p31 = por %p29, %p30
    %p32 = scmp.ne.s32.totalorder %s21, %s24
    %p33 = scmp.eq.s32.totalorder %s16, 1
    %p34 = por %p32, %p33
    %p35 = scmp.ne.s32.totalorder %s24, %s25
    %p36 = scmp.eq.s32.totalorder %s16, 0
    %p37 = por %p35, %p36
    %p38 = scmp.ne.s32.totalorder %s24, %s25
    %p39 = scmp.eq.s32.totalorder %s17, 1
    %p40 = por %p38, %p39
    %p42 = scmp.ne.s32.totalorder %s25, %s41
    %p43 = scmp.eq.s32.totalorder %s17, 0
    %p44 = por %p42, %p43
    %s46 = sadd.s32 %s45, 1
    %p49 = scmp.eq.s32.totalorder %s11, 1
    %p50 = scmp.ne.s32.totalorder %s45, %s47
    %p51 = scmp.eq.s32.totalorder %s11, 0
    %p52 = por %p50, %p51
    %p53 = scmp.ne.s32.totalorder %s45, %s47
    %p54 = scmp.eq.s32.totalorder %s16, 1
    %p55 = por %p53, %p54
    %p56 = scmp.ne.s32.totalorder %s47, %s48
    %p57 = scmp.eq.s32.totalorder %s16, 0
    %p58 = por %p56, %p57
    %p59 = scmp.ne.s32.totalorder %s47, %s48
    %p60 = scmp.eq.s32.totalorder %s17, 1
    %p61 = por %p59, %p60
    %p63 = scmp.ne.s32.totalorder %s48, %s62
    %p64 = scmp.eq.s32.totalorder %s17, 0
    %p65 = por %p63, %p64
    %s67 = sadd.s32 %s66, 1
    %p70 = scmp.eq.s32.totalorder %s11, 1
    %p71 = scmp.ne.s32.totalorder %s66, %s68
    %p72 = scmp.eq.s32.totalorder %s11, 0
    %p73 = por %p71, %p72
    %p74 = scmp.ne.s32.totalorder %s66, %s68
    %p75 = scmp.eq.s32.totalorder %s16, 1
    %p76 = por %p74, %p75
    %p77 = scmp.ne.s32.totalorder %s68, %s69
    %p78 = scmp.eq.s32.totalorder %s16, 0
    %p79 = por %p77, %p78
    %p80 = scmp.ne.s32.totalorder %s68, %s69
    %p81 = scmp.eq.s32.totalorder %s17, 1
    %p82 = por %p80, %p81
    %p84 = scmp.ne.s32.totalorder %s69, %s83
    %p85 = scmp.eq.s32.totalorder %s17, 0
    %p86 = por %p84, %p85
    %s87 = ssub.s32 %s11, %s18
    %p88 = scmp.eq.s32.totalorder %s87, 0
    %s90 = sadd.s32 %s89, 1
    %s91 = scalar_select %p88, %s89, %s90
    %p94 = pneg %p88
    %p95 = scmp.eq.s32.totalorder %s11, 1
    %p96 = por %p94, %p95
    %p97 = scmp.ne.s32.totalorder %s89, %s92
    %p98 = scmp.eq.s32.totalorder %s11, 0
    %p99 = por %p97, %p98
    %p100 = scmp.ne.s32.totalorder %s89, %s92
    %p101 = scmp.eq.s32.totalorder %s16, 1
    %p102 = por %p100, %p101
    %p103 = scmp.ne.s32.totalorder %s92, %s93
    %p104 = scmp.eq.s32.totalorder %s16, 0
    %p105 = por %p103, %p104
    %p106 = scmp.ne.s32.totalorder %s92, %s93
    %p107 = scmp.eq.s32.totalorder %s17, 1
    %p108 = por %p106, %p107
    %p110 = scmp.ne.s32.totalorder %s93, %s109
    %p111 = scmp.eq.s32.totalorder %s17, 0
    %p112 = por %p110, %p111
    %s113 = ssub.s32 %s11, %s18
    %p114 = scmp.eq.s32.totalorder %s113, 0
    %s116 = sadd.s32 %s115, 1
    %s117 = scalar_select %p114, %s115, %s116
    %p120 = pneg %p114
    %p121 = scmp.eq.s32.totalorder %s11, 1
    %p122 = por %p120, %p121
    %p123 = scmp.ne.s32.totalorder %s115, %s118
    %p124 = scmp.eq.s32.totalorder %s11, 0
    %p125 = por %p123, %p124
    %p126 = scmp.ne.s32.totalorder %s115, %s118
    %p127 = scmp.eq.s32.totalorder %s16, 1
    %p128 = por %p126, %p127
    %p129 = scmp.ne.s32.totalorder %s118, %s119
    %p130 = scmp.eq.s32.totalorder %s16, 0
    %p131 = por %p129, %p130
    %p132 = scmp.ne.s32.totalorder %s118, %s119
    %p133 = scmp.eq.s32.totalorder %s17, 1
    %p134 = por %p132, %p133
    %p136 = scmp.ne.s32.totalorder %s119, %s135
    %p137 = scmp.eq.s32.totalorder %s17, 0
    %p138 = por %p136, %p137
    %p139 = scmp.le.s32.totalorder 1, %s11
    %p140 = scmp.lt.s32.totalorder %s11, 3
    %p141 = pnand %p139, %p140
    %p142 = pneg %p141
    // Predicated region
    $region9: #{dcgan_discriminator_forward.8} parent=5 // pred_check
      _
    $region10: #{dcgan_discriminator_forward.8} parent=5 // pred_check_branch
      %144 = sbr.rel (%p141) target = $region12
    $region11: #{dcgan_discriminator_forward.8} parent=5 // pred_region
      %s145 = ssub.s32 %s11, 1
      // Predicated region
      $region13: #{dcgan_discriminator_forward.8} parent=11 // pred_check
        %p146 = pneg %p58
      $region14: #{dcgan_discriminator_forward.8} parent=11 // pred_check_branch
        %148 = sbr.rel (%p146) target = $region16
      $region15: #{dcgan_discriminator_forward.8} parent=11 // pred_region
        _
      $region16: #{dcgan_discriminator_forward.8} parent=11 // pred_fallthru
        _
      // Predicated region
      $region17: #{dcgan_discriminator_forward.8} parent=11 // pred_check
        %p149 = pneg %p79
      $region18: #{dcgan_discriminator_forward.8} parent=11 // pred_check_branch
        %151 = sbr.rel (%p149) target = $region20
      $region19: #{dcgan_discriminator_forward.8} parent=11 // pred_region
        _
      $region20: #{dcgan_discriminator_forward.8} parent=11 // pred_fallthru
        _
    $region12: #{dcgan_discriminator_forward.8} parent=5 // pred_fallthru
      _
    %p152 = scmp.lt.s32.totalorder %s11, 2
    // Predicated region
    $region21: #{dcgan_discriminator_forward.8} parent=5 // pred_check
      %p153 = pneg %p152
    $region22: #{dcgan_discriminator_forward.8} parent=5 // pred_check_branch
      %155 = sbr.rel (%p153) target = $region24
    $region23: #{dcgan_discriminator_forward.8} parent=5 // pred_region
      // Predicated region
      $region25: #{dcgan_discriminator_forward.8} parent=23 // pred_check
        %p156 = pneg %p31
      $region26: #{dcgan_discriminator_forward.8} parent=23 // pred_check_branch
        %158 = sbr.rel (%p156) target = $region28
      $region27: #{dcgan_discriminator_forward.8} parent=23 // pred_region
        %p159 = scmp.lt.s32.totalorder %s11, 1
        %s160 = scalar_select %p159, %s11, 1
        %s161 = smul.addr %s160, 2
        %s162 = smul.addr %s161, 4
        %s163 = scalar_lea.vmem %s0, %s162
      $region28: #{dcgan_discriminator_forward.8} parent=23 // pred_fallthru
        _
    $region24: #{dcgan_discriminator_forward.8} parent=5 // pred_fallthru
      _
    %p164 = scmp.le.s32.totalorder 1, %s11
    %p165 = scmp.lt.s32.totalorder %s11, 3
    %p166 = pnand %p164, %p165
    %p167 = pneg %p166
    // Predicated region
    $region29: #{dcgan_discriminator_forward.8} parent=5 // pred_check
      _
    $region30: #{dcgan_discriminator_forward.8} parent=5 // pred_check_branch
      %169 = sbr.rel (%p166) target = $region32
    $region31: #{dcgan_discriminator_forward.8} parent=5 // pred_region
      %s170 = ssub.s32 %s11, 1
      %p171 = scmp.lt.s32.totalorder %s16, 1
      %s172 = scalar_select %p171, %s16, 1
      %s173 = smul.addr %s172, 2
      %s174 = smul.addr %s173, 4
      %s175 = scalar_lea.vmem %s0, %s174
      %p176 = pneg %p37
      %p177 = pneg %p34
      %p178 = pneg %p58
      %p179 = pneg %p55
      %p180 = pneg %p79
      %p181 = pneg %p76
      %p182 = pneg %p105
      %p183 = pneg %p102
      %p184 = scmp.lt.s32.totalorder %s16, 1
      %s185 = scalar_select %p184, %s16, 1
      %s186 = smul.addr %s185, 4
      %s187 = scalar_lea.vmem %s3, %s186
      %p188 = pneg %p131
      %p189 = pneg %p128
      %p190 = scmp.lt.s32.totalorder %s16, 1
      %s191 = scalar_select %p190, %s16, 1
      %s192 = smul.addr %s191, 2
      %s193 = scalar_lea.vmem %s4, %s192
      %p194 = scmp.lt.s32.totalorder %s16, 1
      %s195 = scalar_select %p194, %s16, 1
      %s196 = smul.addr %s195, 2
      %s197 = smul.addr %s196, 4
      %s198 = scalar_lea.vmem %s0, %s197
      %p199 = scmp.lt.s32.totalorder %s16, 1
      %s200 = scalar_select %p199, %s16, 1
      %s201 = smul.addr %s200, 4
      %s202 = scalar_lea.vmem %s3, %s201
      %p203 = scmp.lt.s32.totalorder %s16, 1
      %s204 = scalar_select %p203, %s16, 1
      %s205 = smul.addr %s204, 2
      %s206 = scalar_lea.vmem %s4, %s205
      %v208 = vld [vmem:[%s198] sm:$0x7]
      %v209 = vld [vmem:[%s1] sm:$0xf]
      %v210 = vld [vmem:[%s1 + $0x4] sm:$0xf]
      %v211 = vld [vmem:[%s1 + $0x8] sm:$0xf]
      %v212 = vld [vmem:[%s1 + $0xc] sm:$0xf]
      %v213 = vld [vmem:[%s1 + $0x10] sm:$0xf]
      %v214 = vld [vmem:[%s1 + $0x14] sm:$0xf]
      %v215 = vld [vmem:[%s1 + $0x18] sm:$0xf]
      %v216 = vld [vmem:[%s1 + $0x1c] sm:$0xf]
      %v217 = vld [vmem:[%s1 + $0x20] sm:$0xf]
      %v218 = vld [vmem:[%s1 + $0x24] sm:$0xf]
      %v219 = vld [vmem:[%s1 + $0x28] sm:$0xf]
      %v220 = vld [vmem:[%s1 + $0x2c] sm:$0xf]
      %v221 = vld [vmem:[%s1 + $0x30] sm:$0xf]
      %v222 = vld [vmem:[%s1 + $0x34] sm:$0xf]
      %v223 = vld [vmem:[%s1 + $0x38] sm:$0xf]
      %v224 = vld [vmem:[%s1 + $0x3c] sm:$0xf]
      %v225 = vld [vmem:[%s198] sm:$0xf]
      %s226 = scalar_lea.vmem %s1, 64
      %v227 = vld [vmem:[%s226] sm:$0xf]
      %v228 = vld [vmem:[%s226 + $0x4] sm:$0xf]
      %v229 = vld [vmem:[%s226 + $0x8] sm:$0xf]
      %v230 = vld [vmem:[%s226 + $0xc] sm:$0xf]
      %v231 = vld [vmem:[%s226 + $0x10] sm:$0xf]
      %v232 = vld [vmem:[%s226 + $0x14] sm:$0xf]
      %v233 = vld [vmem:[%s226 + $0x18] sm:$0xf]
      %v234 = vld [vmem:[%s226 + $0x1c] sm:$0xf]
      %v235 = vld [vmem:[%s226 + $0x20] sm:$0xf]
      %v236 = vld [vmem:[%s226 + $0x24] sm:$0xf]
      %v237 = vld [vmem:[%s226 + $0x28] sm:$0xf]
      %v238 = vld [vmem:[%s226 + $0x2c] sm:$0xf]
      %v239 = vld [vmem:[%s226 + $0x30] sm:$0xf]
      %v240 = vld [vmem:[%s226 + $0x34] sm:$0xf]
      %v241 = vld [vmem:[%s226 + $0x38] sm:$0xf]
      %v242 = vld [vmem:[%s226 + $0x3c] sm:$0xf]
      %v244 = vunpack.c.l.b16 %v225
      %v245 = vpack.c.b16 %v244, %v244
      %v247 = vshrl.u32 %v245, 16
      %v249 = vshll.u32 %v245, 16
      %v251 = vrot.slane %v249, 1
      %v252 = vor.u32 %v247, %v251
      %v270 = vunpack.c.l.b16 %v227
      %v271 = vunpack.c.l.b16 %v228
      %v272 = vunpack.c.l.b16 %v229
      %v273 = vunpack.c.l.b16 %v230
      %v274 = vunpack.c.l.b16 %v231
      %v275 = vunpack.c.l.b16 %v232
      %v276 = vunpack.c.l.b16 %v233
      %v277 = vunpack.c.l.b16 %v234
      %v278 = vunpack.c.l.b16 %v235
      %v279 = vunpack.c.l.b16 %v236
      %v280 = vunpack.c.l.b16 %v237
      %v281 = vunpack.c.l.b16 %v238
      %v282 = vunpack.c.l.b16 %v239
      %v283 = vunpack.c.l.b16 %v240
      %v284 = vunpack.c.l.b16 %v241
      %v285 = vunpack.c.l.b16 %v242
      %v286 = vpack.c.b16 %v271, %v270
      %v287 = vpack.c.b16 %v273, %v272
      %v288 = vpack.c.b16 %v275, %v274
      %v289 = vpack.c.b16 %v277, %v276
      %v290 = vpack.c.b16 %v279, %v278
      %v291 = vpack.c.b16 %v281, %v280
      %v292 = vpack.c.b16 %v283, %v282
      %v293 = vpack.c.b16 %v285, %v284
      %302 = vmatprep.subr.bf16.mxu0 0
      %303 = vmatpush1.bf16.msra.mxu0 %v293
      %304 = vmatprep.subr.bf16.mxu0 0
      %305 = vmatpush1.bf16.msra.mxu0 %v292
      %306 = vmatprep.subr.bf16.mxu0 0
      %307 = vmatpush1.bf16.msra.mxu0 %v291
      %308 = vmatprep.subr.bf16.mxu0 0
      %309 = vmatpush1.bf16.msra.mxu0 %v290
      %310 = vmatprep.subr.bf16.mxu0 0
      %311 = vmatpush1.bf16.msra.mxu0 %v289
      %312 = vmatprep.subr.bf16.mxu0 0
      %313 = vmatpush1.bf16.msra.mxu0 %v288
      %314 = vmatprep.subr.bf16.mxu0 0
      %315 = vmatpush1.bf16.msra.mxu0 %v287
      %316 = vmatprep.subr.bf16.mxu0 0
      %317 = vmatpush1.bf16.msra.mxu0 %v286
      %318 = vmatprep.subr.bf16.mxu0 0
      %319 = vmatpush2.bf16.msra.mxu0 0
      %320 = vmatprep.subr.bf16.mxu0 0
      %321 = vmatpush2.bf16.msra.mxu0 0
      %322 = vmatprep.subr.bf16.mxu0 0
      %323 = vmatpush2.bf16.msra.mxu0 0
      %324 = vmatprep.subr.bf16.mxu0 0
      %325 = vmatpush2.bf16.msra.mxu0 0
      %326 = vmatprep.subr.bf16.mxu0 0
      %327 = vmatpush2.bf16.msra.mxu0 0
      %328 = vmatprep.subr.bf16.mxu0 0
      %329 = vmatpush2.bf16.msra.mxu0 0
      %330 = vmatprep.subr.bf16.mxu0 0
      %331 = vmatpush2.bf16.msra.mxu0 0
      %332 = vmatprep.subr.bf16.mxu0 0
      %333 = vmatpush2.bf16.msra.mxu0 0
      %334 = vmatprep.mubr.bf16.mxu0 0
      %335 = vmatmul.mubr.bf16.gmra.mxu0 %v252
      %v336 = vpop.f32.mrf.mxu0
      %v337 = vadd.f32 0.0, %v336
      %v338 = vpop.f32.mrf.mxu0
      %v339 = vpop.f32.mrf.mxu0
      %v340 = vpop.f32.mrf.mxu0
      %341 = vdwg.mxu0
      %v358 = vunpack.c.l.b16 %v209
      %v359 = vunpack.c.l.b16 %v210
      %v360 = vunpack.c.l.b16 %v211
      %v361 = vunpack.c.l.b16 %v212
      %v362 = vunpack.c.l.b16 %v213
      %v363 = vunpack.c.l.b16 %v214
      %v364 = vunpack.c.l.b16 %v215
      %v365 = vunpack.c.l.b16 %v216
      %v366 = vunpack.c.l.b16 %v217
      %v367 = vunpack.c.l.b16 %v218
      %v368 = vunpack.c.l.b16 %v219
      %v369 = vunpack.c.l.b16 %v220
      %v370 = vunpack.c.l.b16 %v221
      %v371 = vunpack.c.l.b16 %v222
      %v372 = vunpack.c.l.b16 %v223
      %v373 = vunpack.c.l.b16 %v224
      %v374 = vpack.c.b16 %v359, %v358
      %v375 = vpack.c.b16 %v361, %v360
      %v376 = vpack.c.b16 %v363, %v362
      %v377 = vpack.c.b16 %v365, %v364
      %v378 = vpack.c.b16 %v367, %v366
      %v379 = vpack.c.b16 %v369, %v368
      %v380 = vpack.c.b16 %v371, %v370
      %v381 = vpack.c.b16 %v373, %v372
      %390 = vmatprep.subr.bf16.mxu0 0
      %391 = vmatpush1.bf16.msra.mxu0 %v381
      %392 = vmatprep.subr.bf16.mxu0 0
      %393 = vmatpush1.bf16.msra.mxu0 %v380
      %394 = vmatprep.subr.bf16.mxu0 0
      %395 = vmatpush1.bf16.msra.mxu0 %v379
      %396 = vmatprep.subr.bf16.mxu0 0
      %397 = vmatpush1.bf16.msra.mxu0 %v378
      %398 = vmatprep.subr.bf16.mxu0 0
      %399 = vmatpush1.bf16.msra.mxu0 %v377
      %400 = vmatprep.subr.bf16.mxu0 0
      %401 = vmatpush1.bf16.msra.mxu0 %v376
      %402 = vmatprep.subr.bf16.mxu0 0
      %403 = vmatpush1.bf16.msra.mxu0 %v375
      %404 = vmatprep.subr.bf16.mxu0 0
      %405 = vmatpush1.bf16.msra.mxu0 %v374
      %406 = vmatprep.subr.bf16.mxu0 0
      %407 = vmatpush2.bf16.msra.mxu0 0
      %408 = vmatprep.subr.bf16.mxu0 0
      %409 = vmatpush2.bf16.msra.mxu0 0
      %410 = vmatprep.subr.bf16.mxu0 0
      %411 = vmatpush2.bf16.msra.mxu0 0
      %412 = vmatprep.subr.bf16.mxu0 0
      %413 = vmatpush2.bf16.msra.mxu0 0
      %414 = vmatprep.subr.bf16.mxu0 0
      %415 = vmatpush2.bf16.msra.mxu0 0
      %416 = vmatprep.subr.bf16.mxu0 0
      %417 = vmatpush2.bf16.msra.mxu0 0
      %418 = vmatprep.subr.bf16.mxu0 0
      %419 = vmatpush2.bf16.msra.mxu0 0
      %420 = vmatprep.subr.bf16.mxu0 0
      %421 = vmatpush2.bf16.msra.mxu0 0
      %422 = vmatprep.mubr.bf16.mxu0 0
      %423 = vmatmul.mubr.bf16.gmra.mxu0 %v208
      %v424 = vpop.f32.mrf.mxu0
      %v425 = vadd.f32 %v337, %v424
      %v426 = vpop.f32.mrf.mxu0
      %v427 = vpop.f32.mrf.mxu0
      %v428 = vpop.f32.mrf.mxu0
      %429 = vdwg.mxu0
      %v430 = vld [vmem:[%s198] sm:$0xe]
      %v431 = vld [vmem:[%s198 + $0x4] sm:$0x1]
      %s432 = scalar_lea.vmem %s1, 128
      %v433 = vld [vmem:[%s432] sm:$0xf]
      %v434 = vld [vmem:[%s432 + $0x4] sm:$0xf]
      %v435 = vld [vmem:[%s432 + $0x8] sm:$0xf]
      %v436 = vld [vmem:[%s432 + $0xc] sm:$0xf]
      %v437 = vld [vmem:[%s432 + $0x10] sm:$0xf]
      %v438 = vld [vmem:[%s432 + $0x14] sm:$0xf]
      %v439 = vld [vmem:[%s432 + $0x18] sm:$0xf]
      %v440 = vld [vmem:[%s432 + $0x1c] sm:$0xf]
      %v441 = vld [vmem:[%s432 + $0x20] sm:$0xf]
      %v442 = vld [vmem:[%s432 + $0x24] sm:$0xf]
      %v443 = vld [vmem:[%s432 + $0x28] sm:$0xf]
      %v444 = vld [vmem:[%s432 + $0x2c] sm:$0xf]
      %v445 = vld [vmem:[%s432 + $0x30] sm:$0xf]
      %v446 = vld [vmem:[%s432 + $0x34] sm:$0xf]
      %v447 = vld [vmem:[%s432 + $0x38] sm:$0xf]
      %v448 = vld [vmem:[%s432 + $0x3c] sm:$0xf]
      %v451 = vunpack.c.l.b16 %v430
      %v452 = vunpack.c.l.b16 %v431
      %v453 = vpack.c.b16 %v452, %v451
      %v455 = vshrl.u32 %v453, 16
      %v457 = vrot.slane %v455, 1
      %v458 = vshll.u32 %v453, 16
      %v460 = vrot.slane %v458, 2
      %v461 = vor.u32 %v457, %v460
      %v479 = vunpack.c.l.b16 %v433
      %v480 = vunpack.c.l.b16 %v434
      %v481 = vunpack.c.l.b16 %v435
      %v482 = vunpack.c.l.b16 %v436
      %v483 = vunpack.c.l.b16 %v437
      %v484 = vunpack.c.l.b16 %v438
      %v485 = vunpack.c.l.b16 %v439
      %v486 = vunpack.c.l.b16 %v440
      %v487 = vunpack.c.l.b16 %v441
      %v488 = vunpack.c.l.b16 %v442
      %v489 = vunpack.c.l.b16 %v443
      %v490 = vunpack.c.l.b16 %v444
      %v491 = vunpack.c.l.b16 %v445
      %v492 = vunpack.c.l.b16 %v446
      %v493 = vunpack.c.l.b16 %v447
      %v494 = vunpack.c.l.b16 %v448
      %v495 = vpack.c.b16 %v480, %v479
      %v496 = vpack.c.b16 %v482, %v481
      %v497 = vpack.c.b16 %v484, %v483
      %v498 = vpack.c.b16 %v486, %v485
      %v499 = vpack.c.b16 %v488, %v487
      %v500 = vpack.c.b16 %v490, %v489
      %v501 = vpack.c.b16 %v492, %v491
      %v502 = vpack.c.b16 %v494, %v493
      %511 = vmatprep.subr.bf16.mxu0 0
      %512 = vmatpush1.bf16.msra.mxu0 %v502
      %513 = vmatprep.subr.bf16.mxu0 0
      %514 = vmatpush1.bf16.msra.mxu0 %v501
      %515 = vmatprep.subr.bf16.mxu0 0
      %516 = vmatpush1.bf16.msra.mxu0 %v500
      %517 = vmatprep.subr.bf16.mxu0 0
      %518 = vmatpush1.bf16.msra.mxu0 %v499
      %519 = vmatprep.subr.bf16.mxu0 0
      %520 = vmatpush1.bf16.msra.mxu0 %v498
      %521 = vmatprep.subr.bf16.mxu0 0
      %522 = vmatpush1.bf16.msra.mxu0 %v497
      %523 = vmatprep.subr.bf16.mxu0 0
      %524 = vmatpush1.bf16.msra.mxu0 %v496
      %525 = vmatprep.subr.bf16.mxu0 0
      %526 = vmatpush1.bf16.msra.mxu0 %v495
      %527 = vmatprep.subr.bf16.mxu0 0
      %528 = vmatpush2.bf16.msra.mxu0 0
      %529 = vmatprep.subr.bf16.mxu0 0
      %530 = vmatpush2.bf16.msra.mxu0 0
      %531 = vmatprep.subr.bf16.mxu0 0
      %532 = vmatpush2.bf16.msra.mxu0 0
      %533 = vmatprep.subr.bf16.mxu0 0
      %534 = vmatpush2.bf16.msra.mxu0 0
      %535 = vmatprep.subr.bf16.mxu0 0
      %536 = vmatpush2.bf16.msra.mxu0 0
      %537 = vmatprep.subr.bf16.mxu0 0
      %538 = vmatpush2.bf16.msra.mxu0 0
      %539 = vmatprep.subr.bf16.mxu0 0
      %540 = vmatpush2.bf16.msra.mxu0 0
      %541 = vmatprep.subr.bf16.mxu0 0
      %542 = vmatpush2.bf16.msra.mxu0 0
      %543 = vmatprep.mubr.bf16.mxu0 0
      %544 = vmatmul.mubr.bf16.gmra.mxu0 %v461
      %v545 = vpop.f32.mrf.mxu0
      %v546 = vadd.f32 0.0, %v545
      %v547 = vpop.f32.mrf.mxu0
      %v548 = vpop.f32.mrf.mxu0
      %v549 = vpop.f32.mrf.mxu0
      %550 = vdwg.mxu0
      %v551 = vadd.f32 %v425, %v546
      %v552 = vld [vmem:[%s198] sm:$0xc]
      %s553 = scalar_lea.vmem %s1, 192
      %v554 = vld [vmem:[%s553] sm:$0xf]
      %v555 = vld [vmem:[%s553 + $0x4] sm:$0xf]
      %v556 = vld [vmem:[%s553 + $0x8] sm:$0xf]
      %v557 = vld [vmem:[%s553 + $0xc] sm:$0xf]
      %v558 = vld [vmem:[%s553 + $0x10] sm:$0xf]
      %v559 = vld [vmem:[%s553 + $0x14] sm:$0xf]
      %v560 = vld [vmem:[%s553 + $0x18] sm:$0xf]
      %v561 = vld [vmem:[%s553 + $0x1c] sm:$0xf]
      %v562 = vld [vmem:[%s553 + $0x20] sm:$0xf]
      %v563 = vld [vmem:[%s553 + $0x24] sm:$0xf]
      %v564 = vld [vmem:[%s553 + $0x28] sm:$0xf]
      %v565 = vld [vmem:[%s553 + $0x2c] sm:$0xf]
      %v566 = vld [vmem:[%s553 + $0x30] sm:$0xf]
      %v567 = vld [vmem:[%s553 + $0x34] sm:$0xf]
      %v568 = vld [vmem:[%s553 + $0x38] sm:$0xf]
      %v569 = vld [vmem:[%s553 + $0x3c] sm:$0xf]
      %v571 = vunpack.c.l.b16 %v552
      %v572 = vpack.c.b16 %v452, %v571
      %v573 = vrot.slane %v572, 2
      %v591 = vunpack.c.l.b16 %v554
      %v592 = vunpack.c.l.b16 %v555
      %v593 = vunpack.c.l.b16 %v556
      %v594 = vunpack.c.l.b16 %v557
      %v595 = vunpack.c.l.b16 %v558
      %v596 = vunpack.c.l.b16 %v559
      %v597 = vunpack.c.l.b16 %v560
      %v598 = vunpack.c.l.b16 %v561
      %v599 = vunpack.c.l.b16 %v562
      %v600 = vunpack.c.l.b16 %v563
      %v601 = vunpack.c.l.b16 %v564
      %v602 = vunpack.c.l.b16 %v565
      %v603 = vunpack.c.l.b16 %v566
      %v604 = vunpack.c.l.b16 %v567
      %v605 = vunpack.c.l.b16 %v568
      %v606 = vunpack.c.l.b16 %v569
      %v607 = vpack.c.b16 %v592, %v591
      %v608 = vpack.c.b16 %v594, %v593
      %v609 = vpack.c.b16 %v596, %v595
      %v610 = vpack.c.b16 %v598, %v597
      %v611 = vpack.c.b16 %v600, %v599
      %v612 = vpack.c.b16 %v602, %v601
      %v613 = vpack.c.b16 %v604, %v603
      %v614 = vpack.c.b16 %v606, %v605
      %623 = vmatprep.subr.bf16.mxu0 0
      %624 = vmatpush1.bf16.msra.mxu0 %v614
      %625 = vmatprep.subr.bf16.mxu0 0
      %626 = vmatpush1.bf16.msra.mxu0 %v613
      %627 = vmatprep.subr.bf16.mxu0 0
      %628 = vmatpush1.bf16.msra.mxu0 %v612
      %629 = vmatprep.subr.bf16.mxu0 0
      %630 = vmatpush1.bf16.msra.mxu0 %v611
      %631 = vmatprep.subr.bf16.mxu0 0
      %632 = vmatpush1.bf16.msra.mxu0 %v610
      %633 = vmatprep.subr.bf16.mxu0 0
      %634 = vmatpush1.bf16.msra.mxu0 %v609
      %635 = vmatprep.subr.bf16.mxu0 0
      %636 = vmatpush1.bf16.msra.mxu0 %v608
      %637 = vmatprep.subr.bf16.mxu0 0
      %638 = vmatpush1.bf16.msra.mxu0 %v607
      %639 = vmatprep.subr.bf16.mxu0 0
      %640 = vmatpush2.bf16.msra.mxu0 0
      %641 = vmatprep.subr.bf16.mxu0 0
      %642 = vmatpush2.bf16.msra.mxu0 0
      %643 = vmatprep.subr.bf16.mxu0 0
      %644 = vmatpush2.bf16.msra.mxu0 0
      %645 = vmatprep.subr.bf16.mxu0 0
      %646 = vmatpush2.bf16.msra.mxu0 0
      %647 = vmatprep.subr.bf16.mxu0 0
      %648 = vmatpush2.bf16.msra.mxu0 0
      %649 = vmatprep.subr.bf16.mxu0 0
      %650 = vmatpush2.bf16.msra.mxu0 0
      %651 = vmatprep.subr.bf16.mxu0 0
      %652 = vmatpush2.bf16.msra.mxu0 0
      %653 = vmatprep.subr.bf16.mxu0 0
      %654 = vmatpush2.bf16.msra.mxu0 0
      %655 = vmatprep.mubr.bf16.mxu0 0
      %656 = vmatmul.mubr.bf16.gmra.mxu0 %v573
      %v657 = vpop.f32.mrf.mxu0
      %v658 = vadd.f32 0.0, %v657
      %v659 = vpop.f32.mrf.mxu0
      %v660 = vpop.f32.mrf.mxu0
      %v661 = vpop.f32.mrf.mxu0
      %662 = vdwg.mxu0
      %v663 = vadd.f32 %v551, %v658
      %v664 = vpack.c.bf16 %v663, %v663
      %665 = vst [vmem:[%s202] sm:$0x7] %v664
      %v666 = vld [vmem:[%s2] sm:$0x3f]
      %668 = vset.pattern.permute.xlu0 0
      %669 = vperm.xlu0 %668, %v666
      %v670 = vpop.permute.xlu0 %669
      %v672 = vmul.f32 %v663, %v670
      %vm673 = vcmask 1045504
      %v674 = vsel %vm673, %v672, 0.0
      %v675 = vrot.slane %v674, 4
      %v676 = vadd.f32 %v674, %v675
      %v677 = vrot.slane %v676, 2
      %v678 = vadd.f32 %v676, %v677
      %v679 = vrot.slane %v678, 1
      %v680 = vadd.f32 %v678, %v679
      %v681 = vmul.f32 %v672, %v663
      %v682 = vsel %vm673, %v681, 0.0
      %v683 = vrot.slane %v682, 4
      %v684 = vadd.f32 %v682, %v683
      %v685 = vrot.slane %v684, 2
      %v686 = vadd.f32 %v684, %v685
      %v687 = vrot.slane %v686, 1
      %v688 = vadd.f32 %v686, %v687
      %vm689 = vcmask 1040384
      %v690 = vsel %vm689, %v680, %v688
      %691 = vst [vmem:[%s206] sm:$0x3] %v690
      %p692 = scmp.lt.s32.totalorder %s16, 1
      %s693 = scalar_select %p692, %s16, 1
      %s694 = smul.addr %s693, 4
      %s695 = scalar_lea.vmem %s3, %s694
      %p696 = scmp.lt.s32.totalorder %s16, 1
      %s697 = scalar_select %p696, %s16, 1
      %s698 = smul.addr %s697, 2
      %s699 = scalar_lea.vmem %s4, %s698
      // Predicated region
      $region33: #{dcgan_discriminator_forward.8} parent=31 // pred_check
        %p700 = pneg %p102
      $region34: #{dcgan_discriminator_forward.8} parent=31 // pred_check_branch
        %702 = sbr.rel (%p700) target = $region36
      $region35: #{dcgan_discriminator_forward.8} parent=31 // pred_region
        _
      $region36: #{dcgan_discriminator_forward.8} parent=31 // pred_fallthru
        _
      // Predicated region
      $region37: #{dcgan_discriminator_forward.8} parent=31 // pred_check
        %p703 = pneg %p128
      $region38: #{dcgan_discriminator_forward.8} parent=31 // pred_check_branch
        %705 = sbr.rel (%p703) target = $region40
      $region39: #{dcgan_discriminator_forward.8} parent=31 // pred_region
        _
      $region40: #{dcgan_discriminator_forward.8} parent=31 // pred_fallthru
        _
    $region32: #{dcgan_discriminator_forward.8} parent=5 // pred_fallthru
      _
    %p706 = scmp.le.s32.totalorder 2, %s11
    // Predicated region
    $region41: #{dcgan_discriminator_forward.8} parent=5 // pred_check
      %p707 = pneg %p706
    $region42: #{dcgan_discriminator_forward.8} parent=5 // pred_check_branch
      %709 = sbr.rel (%p707) target = $region44
    $region43: #{dcgan_discriminator_forward.8} parent=5 // pred_region
      %s710 = ssub.s32 %s11, 2
      // Predicated region
      $region45: #{dcgan_discriminator_forward.8} parent=43 // pred_check
        %p711 = pneg %p108
      $region46: #{dcgan_discriminator_forward.8} parent=43 // pred_check_branch
        %713 = sbr.rel (%p711) target = $region48
      $region47: #{dcgan_discriminator_forward.8} parent=43 // pred_region
        %p714 = scmp.lt.s32.totalorder %s17, 1
        %s715 = scalar_select %p714, %s17, 1
        %s716 = smul.addr %s715, 4
        %s717 = scalar_lea.vmem %s3, %s716
      $region48: #{dcgan_discriminator_forward.8} parent=43 // pred_fallthru
        _
      // Predicated region
      $region49: #{dcgan_discriminator_forward.8} parent=43 // pred_check
        %p718 = pneg %p134
      $region50: #{dcgan_discriminator_forward.8} parent=43 // pred_check_branch
        %720 = sbr.rel (%p718) target = $region52
      $region51: #{dcgan_discriminator_forward.8} parent=43 // pred_region
        %p721 = scmp.lt.s32.totalorder %s17, 1
        %s722 = scalar_select %p721, %s17, 1
        %s723 = smul.addr %s722, 2
        %s724 = scalar_lea.vmem %s4, %s723
      $region52: #{dcgan_discriminator_forward.8} parent=43 // pred_fallthru
        _
    $region44: #{dcgan_discriminator_forward.8} parent=5 // pred_fallthru
      _
  $region6: #{dcgan_discriminator_forward.8} parent=0 // loop_footer
    %s15 = sadd.s32 1, %s11
  $region7: #{dcgan_discriminator_forward.8} parent=0 // loop_footer_branch
    %10 = sbr.rel target = $region3
  $region8: #{dcgan_discriminator_forward.8} parent=0 // loop_exit
    _

// kernel: dcgan_discriminator_forward.9
$region0: #{dcgan_discriminator_forward.9}
  #allocation0 [shape = 'u32[]', space=smem, size = 0x4, offset = 0x4, fixed_abs, tag = 'smem constant byte address 0x4 - core index']
  #allocation1 [shape = 'u32[144,128]{1,0:T(1,128)}', space=vmem, size = 0x12000, scoped, tag = 'internal scratch']
  %s0 = inlined_call_operand.vmem [shape: bf16[2,8,128], index: 0, kind: input, shape index: {}]
  %s1 = inlined_call_operand.vmem [shape: bf16[4,128,128], index: 1, kind: input, shape index: {}]
  %s2 = inlined_call_operand.vmem [shape: f32[2,2,128], index: 2, kind: output, shape index: {}]
  %s3 = sld [smem:[#allocation0]]
  $region41: #{dcgan_discriminator_forward.9} parent=0
    _
  %s5 = ssub.s32 1, %s3
  %s6 = scalar_select 0, %s5, %s3
  loop: start=0, step=1, limit=4
  $region2: #{dcgan_discriminator_forward.9} parent=0 // loop_pre_header
    _
  $region3: #{dcgan_discriminator_forward.9} parent=0 // loop_header
    %s8 = sphi 0, %s12
    %p9 = scmp.ge.s32.totalorder %s8, 4
    %s18 = sphi 0, %s20
    %s21 = sphi 0, %s18
    %s22 = sphi 0, %s21
    %s38 = sphi 0, %s22
    %s42 = sphi 0, %s42
    %s44 = sphi 0, %s42
    %s45 = sphi 0, %s44
    %s59 = sphi 0, %s45
    %s65 = sphi 0, %s67
    %s68 = sphi 0, %s65
    %s69 = sphi 0, %s68
    %s85 = sphi 0, %s69
  $region4: #{dcgan_discriminator_forward.9} parent=0 // loop_header_branch
    %11 = sbr.rel (%p9) target = $region8
  $region5: #{dcgan_discriminator_forward.9} parent=0 // loop_body
    %s13 = ssub.s32 %s8, 1
    %s14 = ssub.s32 %s8, 2
    %s15 = sadd.s32 %s8, 1
    %s16 = ssub.s32 %s8, %s15
    %p17 = scmp.eq.s32.totalorder %s16, 0
    %s19 = sadd.s32 %s18, 1
    %s20 = scalar_select %p17, %s18, %s19
    %p23 = pneg %p17
    %p24 = scmp.eq.s32.totalorder %s8, 1
    %p25 = por %p23, %p24
    %p26 = scmp.ne.s32.totalorder %s18, %s21
    %p27 = scmp.eq.s32.totalorder %s8, 0
    %p28 = por %p26, %p27
    %p29 = scmp.ne.s32.totalorder %s18, %s21
    %p30 = scmp.eq.s32.totalorder %s13, 1
    %p31 = por %p29, %p30
    %p32 = scmp.ne.s32.totalorder %s21, %s22
    %p33 = scmp.eq.s32.totalorder %s13, 0
    %p34 = por %p32, %p33
    %p35 = scmp.ne.s32.totalorder %s21, %s22
    %p36 = scmp.eq.s32.totalorder %s14, 1
    %p37 = por %p35, %p36
    %p39 = scmp.ne.s32.totalorder %s22, %s38
    %p40 = scmp.eq.s32.totalorder %s14, 0
    %p41 = por %p39, %p40
    %s43 = sadd.s32 %s42, 1
    %p46 = scmp.eq.s32.totalorder %s8, 1
    %p47 = scmp.ne.s32.totalorder %s42, %s44
    %p48 = scmp.eq.s32.totalorder %s8, 0
    %p49 = por %p47, %p48
    %p50 = scmp.ne.s32.totalorder %s42, %s44
    %p51 = scmp.eq.s32.totalorder %s13, 1
    %p52 = por %p50, %p51
    %p53 = scmp.ne.s32.totalorder %s44, %s45
    %p54 = scmp.eq.s32.totalorder %s13, 0
    %p55 = por %p53, %p54
    %p56 = scmp.ne.s32.totalorder %s44, %s45
    %p57 = scmp.eq.s32.totalorder %s14, 1
    %p58 = por %p56, %p57
    %p60 = scmp.ne.s32.totalorder %s45, %s59
    %p61 = scmp.eq.s32.totalorder %s14, 0
    %p62 = por %p60, %p61
    %s63 = ssub.s32 %s8, %s15
    %p64 = scmp.eq.s32.totalorder %s63, 0
    %s66 = sadd.s32 %s65, 1
    %s67 = scalar_select %p64, %s65, %s66
    %p70 = pneg %p64
    %p71 = scmp.eq.s32.totalorder %s8, 1
    %p72 = por %p70, %p71
    %p73 = scmp.ne.s32.totalorder %s65, %s68
    %p74 = scmp.eq.s32.totalorder %s8, 0
    %p75 = por %p73, %p74
    %p76 = scmp.ne.s32.totalorder %s65, %s68
    %p77 = scmp.eq.s32.totalorder %s13, 1
    %p78 = por %p76, %p77
    %p79 = scmp.ne.s32.totalorder %s68, %s69
    %p80 = scmp.eq.s32.totalorder %s13, 0
    %p81 = por %p79, %p80
    %p82 = scmp.ne.s32.totalorder %s68, %s69
    %p83 = scmp.eq.s32.totalorder %s14, 1
    %p84 = por %p82, %p83
    %p86 = scmp.ne.s32.totalorder %s69, %s85
    %p87 = scmp.eq.s32.totalorder %s14, 0
    %p88 = por %p86, %p87
    %p89 = scmp.le.s32.totalorder 1, %s8
    %p90 = scmp.lt.s32.totalorder %s8, 3
    %p91 = pnand %p89, %p90
    %p92 = pneg %p91
    // Predicated region
    $region9: #{dcgan_discriminator_forward.9} parent=5 // pred_check
      _
    $region10: #{dcgan_discriminator_forward.9} parent=5 // pred_check_branch
      %94 = sbr.rel (%p91) target = $region12
    $region11: #{dcgan_discriminator_forward.9} parent=5 // pred_region
      %s95 = ssub.s32 %s8, 1
      // Predicated region
      $region13: #{dcgan_discriminator_forward.9} parent=11 // pred_check
        %p96 = pneg %p55
      $region14: #{dcgan_discriminator_forward.9} parent=11 // pred_check_branch
        %98 = sbr.rel (%p96) target = $region16
      $region15: #{dcgan_discriminator_forward.9} parent=11 // pred_region
        _
      $region16: #{dcgan_discriminator_forward.9} parent=11 // pred_fallthru
        _
    $region12: #{dcgan_discriminator_forward.9} parent=5 // pred_fallthru
      _
    %p99 = scmp.lt.s32.totalorder %s8, 2
    // Predicated region
    $region17: #{dcgan_discriminator_forward.9} parent=5 // pred_check
      %p100 = pneg %p99
    $region18: #{dcgan_discriminator_forward.9} parent=5 // pred_check_branch
      %102 = sbr.rel (%p100) target = $region20
    $region19: #{dcgan_discriminator_forward.9} parent=5 // pred_region
      // Predicated region
      $region21: #{dcgan_discriminator_forward.9} parent=19 // pred_check
        %p103 = pneg %p28
      $region22: #{dcgan_discriminator_forward.9} parent=19 // pred_check_branch
        %105 = sbr.rel (%p103) target = $region24
      $region23: #{dcgan_discriminator_forward.9} parent=19 // pred_region
        %p106 = scmp.lt.s32.totalorder %s8, 1
        %s107 = scalar_select %p106, %s8, 1
        %s108 = smul.addr %s107, 4
        %s109 = scalar_lea.vmem %s0, %s108
      $region24: #{dcgan_discriminator_forward.9} parent=19 // pred_fallthru
        _
    $region20: #{dcgan_discriminator_forward.9} parent=5 // pred_fallthru
      _
    %p110 = scmp.le.s32.totalorder 1, %s8
    %p111 = scmp.lt.s32.totalorder %s8, 3
    %p112 = pnand %p110, %p111
    %p113 = pneg %p112
    // Predicated region
    $region25: #{dcgan_discriminator_forward.9} parent=5 // pred_check
      _
    $region26: #{dcgan_discriminator_forward.9} parent=5 // pred_check_branch
      %115 = sbr.rel (%p112) target = $region28
    $region27: #{dcgan_discriminator_forward.9} parent=5 // pred_region
      %s116 = ssub.s32 %s8, 1
      %p117 = scmp.lt.s32.totalorder %s13, 1
      %s118 = scalar_select %p117, %s13, 1
      %s119 = smul.addr %s118, 4
      %s120 = scalar_lea.vmem %s0, %s119
      %p121 = pneg %p34
      %p122 = pneg %p31
      %p123 = pneg %p55
      %p124 = pneg %p52
      %p125 = pneg %p81
      %p126 = pneg %p78
      %p127 = scmp.lt.s32.totalorder %s13, 1
      %s128 = scalar_select %p127, %s13, 1
      %s129 = smul.addr %s128, 2
      %s130 = scalar_lea.vmem %s2, %s129
      %p131 = scmp.lt.s32.totalorder %s13, 1
      %s132 = scalar_select %p131, %s13, 1
      %s133 = smul.addr %s132, 4
      %s134 = scalar_lea.vmem %s0, %s133
      %p135 = scmp.lt.s32.totalorder %s13, 1
      %s136 = scalar_select %p135, %s13, 1
      %s137 = smul.addr %s136, 2
      %s138 = scalar_lea.vmem %s2, %s137
      %v140 = vld [vmem:[%s134] sm:$0x1]
      %v141 = vld [vmem:[%s1] sm:$0xf]
      %v142 = vld [vmem:[%s1 + $0x4] sm:$0xf]
      %v143 = vld [vmem:[%s1 + $0x8] sm:$0xf]
      %v144 = vld [vmem:[%s1 + $0xc] sm:$0xf]
      %v145 = vld [vmem:[%s1 + $0x10] sm:$0xf]
      %v146 = vld [vmem:[%s1 + $0x14] sm:$0xf]
      %v147 = vld [vmem:[%s1 + $0x18] sm:$0xf]
      %v148 = vld [vmem:[%s1 + $0x1c] sm:$0xf]
      %v149 = vld [vmem:[%s1 + $0x20] sm:$0xf]
      %v150 = vld [vmem:[%s1 + $0x24] sm:$0xf]
      %v151 = vld [vmem:[%s1 + $0x28] sm:$0xf]
      %v152 = vld [vmem:[%s1 + $0x2c] sm:$0xf]
      %v153 = vld [vmem:[%s1 + $0x30] sm:$0xf]
      %v154 = vld [vmem:[%s1 + $0x34] sm:$0xf]
      %v155 = vld [vmem:[%s1 + $0x38] sm:$0xf]
      %v156 = vld [vmem:[%s1 + $0x3c] sm:$0xf]
      %v157 = vld [vmem:[%s134] sm:$0x3]
      %s158 = scalar_lea.vmem %s1, 64
      %v159 = vld [vmem:[%s158] sm:$0xf]
      %v160 = vld [vmem:[%s158 + $0x4] sm:$0xf]
      %v161 = vld [vmem:[%s158 + $0x8] sm:$0xf]
      %v162 = vld [vmem:[%s158 + $0xc] sm:$0xf]
      %v163 = vld [vmem:[%s158 + $0x10] sm:$0xf]
      %v164 = vld [vmem:[%s158 + $0x14] sm:$0xf]
      %v165 = vld [vmem:[%s158 + $0x18] sm:$0xf]
      %v166 = vld [vmem:[%s158 + $0x1c] sm:$0xf]
      %v167 = vld [vmem:[%s158 + $0x20] sm:$0xf]
      %v168 = vld [vmem:[%s158 + $0x24] sm:$0xf]
      %v169 = vld [vmem:[%s158 + $0x28] sm:$0xf]
      %v170 = vld [vmem:[%s158 + $0x2c] sm:$0xf]
      %v171 = vld [vmem:[%s158 + $0x30] sm:$0xf]
      %v172 = vld [vmem:[%s158 + $0x34] sm:$0xf]
      %v173 = vld [vmem:[%s158 + $0x38] sm:$0xf]
      %v174 = vld [vmem:[%s158 + $0x3c] sm:$0xf]
      %v176 = vunpack.c.l.b16 %v157
      %v177 = vpack.c.b16 %v176, %v176
      %v179 = vshrl.u32 %v177, 16
      %v181 = vshll.u32 %v177, 16
      %v183 = vrot.slane %v181, 1
      %v184 = vor.u32 %v179, %v183
      %v202 = vunpack.c.l.b16 %v159
      %v203 = vunpack.c.l.b16 %v160
      %v204 = vunpack.c.l.b16 %v161
      %v205 = vunpack.c.l.b16 %v162
      %v206 = vunpack.c.l.b16 %v163
      %v207 = vunpack.c.l.b16 %v164
      %v208 = vunpack.c.l.b16 %v165
      %v209 = vunpack.c.l.b16 %v166
      %v210 = vunpack.c.l.b16 %v167
      %v211 = vunpack.c.l.b16 %v168
      %v212 = vunpack.c.l.b16 %v169
      %v213 = vunpack.c.l.b16 %v170
      %v214 = vunpack.c.l.b16 %v171
      %v215 = vunpack.c.l.b16 %v172
      %v216 = vunpack.c.l.b16 %v173
      %v217 = vunpack.c.l.b16 %v174
      %v218 = vpack.c.b16 %v203, %v202
      %v219 = vpack.c.b16 %v205, %v204
      %v220 = vpack.c.b16 %v207, %v206
      %v221 = vpack.c.b16 %v209, %v208
      %v222 = vpack.c.b16 %v211, %v210
      %v223 = vpack.c.b16 %v213, %v212
      %v224 = vpack.c.b16 %v215, %v214
      %v225 = vpack.c.b16 %v217, %v216
      %234 = vmatprep.subr.bf16.mxu0 0
      %235 = vmatpush1.bf16.msra.mxu0 %v225
      %236 = vmatprep.subr.bf16.mxu0 0
      %237 = vmatpush1.bf16.msra.mxu0 %v224
      %238 = vmatprep.subr.bf16.mxu0 0
      %239 = vmatpush1.bf16.msra.mxu0 %v223
      %240 = vmatprep.subr.bf16.mxu0 0
      %241 = vmatpush1.bf16.msra.mxu0 %v222
      %242 = vmatprep.subr.bf16.mxu0 0
      %243 = vmatpush1.bf16.msra.mxu0 %v221
      %244 = vmatprep.subr.bf16.mxu0 0
      %245 = vmatpush1.bf16.msra.mxu0 %v220
      %246 = vmatprep.subr.bf16.mxu0 0
      %247 = vmatpush1.bf16.msra.mxu0 %v219
      %248 = vmatprep.subr.bf16.mxu0 0
      %249 = vmatpush1.bf16.msra.mxu0 %v218
      %250 = vmatprep.subr.bf16.mxu0 0
      %251 = vmatpush2.bf16.msra.mxu0 0
      %252 = vmatprep.subr.bf16.mxu0 0
      %253 = vmatpush2.bf16.msra.mxu0 0
      %254 = vmatprep.subr.bf16.mxu0 0
      %255 = vmatpush2.bf16.msra.mxu0 0
      %256 = vmatprep.subr.bf16.mxu0 0
      %257 = vmatpush2.bf16.msra.mxu0 0
      %258 = vmatprep.subr.bf16.mxu0 0
      %259 = vmatpush2.bf16.msra.mxu0 0
      %260 = vmatprep.subr.bf16.mxu0 0
      %261 = vmatpush2.bf16.msra.mxu0 0
      %262 = vmatprep.subr.bf16.mxu0 0
      %263 = vmatpush2.bf16.msra.mxu0 0
      %264 = vmatprep.subr.bf16.mxu0 0
      %265 = vmatpush2.bf16.msra.mxu0 0
      %266 = vmatprep.mubr.bf16.mxu0 0
      %267 = vmatmul.mubr.bf16.gmra.mxu0 %v184
      %v268 = vpop.f32.mrf.mxu0
      %v269 = vadd.f32 0.0, %v268
      %v270 = vpop.f32.mrf.mxu0
      %v271 = vpop.f32.mrf.mxu0
      %v272 = vpop.f32.mrf.mxu0
      %273 = vdwg.mxu0
      %v290 = vunpack.c.l.b16 %v141
      %v291 = vunpack.c.l.b16 %v142
      %v292 = vunpack.c.l.b16 %v143
      %v293 = vunpack.c.l.b16 %v144
      %v294 = vunpack.c.l.b16 %v145
      %v295 = vunpack.c.l.b16 %v146
      %v296 = vunpack.c.l.b16 %v147
      %v297 = vunpack.c.l.b16 %v148
      %v298 = vunpack.c.l.b16 %v149
      %v299 = vunpack.c.l.b16 %v150
      %v300 = vunpack.c.l.b16 %v151
      %v301 = vunpack.c.l.b16 %v152
      %v302 = vunpack.c.l.b16 %v153
      %v303 = vunpack.c.l.b16 %v154
      %v304 = vunpack.c.l.b16 %v155
      %v305 = vunpack.c.l.b16 %v156
      %v306 = vpack.c.b16 %v291, %v290
      %v307 = vpack.c.b16 %v293, %v292
      %v308 = vpack.c.b16 %v295, %v294
      %v309 = vpack.c.b16 %v297, %v296
      %v310 = vpack.c.b16 %v299, %v298
      %v311 = vpack.c.b16 %v301, %v300
      %v312 = vpack.c.b16 %v303, %v302
      %v313 = vpack.c.b16 %v305, %v304
      %322 = vmatprep.subr.bf16.mxu0 0
      %323 = vmatpush1.bf16.msra.mxu0 %v313
      %324 = vmatprep.subr.bf16.mxu0 0
      %325 = vmatpush1.bf16.msra.mxu0 %v312
      %326 = vmatprep.subr.bf16.mxu0 0
      %327 = vmatpush1.bf16.msra.mxu0 %v311
      %328 = vmatprep.subr.bf16.mxu0 0
      %329 = vmatpush1.bf16.msra.mxu0 %v310
      %330 = vmatprep.subr.bf16.mxu0 0
      %331 = vmatpush1.bf16.msra.mxu0 %v309
      %332 = vmatprep.subr.bf16.mxu0 0
      %333 = vmatpush1.bf16.msra.mxu0 %v308
      %334 = vmatprep.subr.bf16.mxu0 0
      %335 = vmatpush1.bf16.msra.mxu0 %v307
      %336 = vmatprep.subr.bf16.mxu0 0
      %337 = vmatpush1.bf16.msra.mxu0 %v306
      %338 = vmatprep.subr.bf16.mxu0 0
      %339 = vmatpush2.bf16.msra.mxu0 0
      %340 = vmatprep.subr.bf16.mxu0 0
      %341 = vmatpush2.bf16.msra.mxu0 0
      %342 = vmatprep.subr.bf16.mxu0 0
      %343 = vmatpush2.bf16.msra.mxu0 0
      %344 = vmatprep.subr.bf16.mxu0 0
      %345 = vmatpush2.bf16.msra.mxu0 0
      %346 = vmatprep.subr.bf16.mxu0 0
      %347 = vmatpush2.bf16.msra.mxu0 0
      %348 = vmatprep.subr.bf16.mxu0 0
      %349 = vmatpush2.bf16.msra.mxu0 0
      %350 = vmatprep.subr.bf16.mxu0 0
      %351 = vmatpush2.bf16.msra.mxu0 0
      %352 = vmatprep.subr.bf16.mxu0 0
      %353 = vmatpush2.bf16.msra.mxu0 0
      %354 = vmatprep.mubr.bf16.mxu0 0
      %355 = vmatmul.mubr.bf16.gmra.mxu0 %v140
      %v356 = vpop.f32.mrf.mxu0
      %v357 = vadd.f32 %v269, %v356
      %v358 = vpop.f32.mrf.mxu0
      %v359 = vpop.f32.mrf.mxu0
      %v360 = vpop.f32.mrf.mxu0
      %361 = vdwg.mxu0
      %v362 = vld [vmem:[%s134] sm:$0x2]
      %s363 = scalar_lea.vmem %s1, 128
      %v364 = vld [vmem:[%s363] sm:$0xf]
      %v365 = vld [vmem:[%s363 + $0x4] sm:$0xf]
      %v366 = vld [vmem:[%s363 + $0x8] sm:$0xf]
      %v367 = vld [vmem:[%s363 + $0xc] sm:$0xf]
      %v368 = vld [vmem:[%s363 + $0x10] sm:$0xf]
      %v369 = vld [vmem:[%s363 + $0x14] sm:$0xf]
      %v370 = vld [vmem:[%s363 + $0x18] sm:$0xf]
      %v371 = vld [vmem:[%s363 + $0x1c] sm:$0xf]
      %v372 = vld [vmem:[%s363 + $0x20] sm:$0xf]
      %v373 = vld [vmem:[%s363 + $0x24] sm:$0xf]
      %v374 = vld [vmem:[%s363 + $0x28] sm:$0xf]
      %v375 = vld [vmem:[%s363 + $0x2c] sm:$0xf]
      %v376 = vld [vmem:[%s363 + $0x30] sm:$0xf]
      %v377 = vld [vmem:[%s363 + $0x34] sm:$0xf]
      %v378 = vld [vmem:[%s363 + $0x38] sm:$0xf]
      %v379 = vld [vmem:[%s363 + $0x3c] sm:$0xf]
      %v381 = vunpack.c.l.b16 %v362
      %v382 = vpack.c.b16 %v381, %v381
      %v383 = vrot.slane %v382, 1
      %v401 = vunpack.c.l.b16 %v364
      %v402 = vunpack.c.l.b16 %v365
      %v403 = vunpack.c.l.b16 %v366
      %v404 = vunpack.c.l.b16 %v367
      %v405 = vunpack.c.l.b16 %v368
      %v406 = vunpack.c.l.b16 %v369
      %v407 = vunpack.c.l.b16 %v370
      %v408 = vunpack.c.l.b16 %v371
      %v409 = vunpack.c.l.b16 %v372
      %v410 = vunpack.c.l.b16 %v373
      %v411 = vunpack.c.l.b16 %v374
      %v412 = vunpack.c.l.b16 %v375
      %v413 = vunpack.c.l.b16 %v376
      %v414 = vunpack.c.l.b16 %v377
      %v415 = vunpack.c.l.b16 %v378
      %v416 = vunpack.c.l.b16 %v379
      %v417 = vpack.c.b16 %v402, %v401
      %v418 = vpack.c.b16 %v404, %v403
      %v419 = vpack.c.b16 %v406, %v405
      %v420 = vpack.c.b16 %v408, %v407
      %v421 = vpack.c.b16 %v410, %v409
      %v422 = vpack.c.b16 %v412, %v411
      %v423 = vpack.c.b16 %v414, %v413
      %v424 = vpack.c.b16 %v416, %v415
      %433 = vmatprep.subr.bf16.mxu0 0
      %434 = vmatpush1.bf16.msra.mxu0 %v424
      %435 = vmatprep.subr.bf16.mxu0 0
      %436 = vmatpush1.bf16.msra.mxu0 %v423
      %437 = vmatprep.subr.bf16.mxu0 0
      %438 = vmatpush1.bf16.msra.mxu0 %v422
      %439 = vmatprep.subr.bf16.mxu0 0
      %440 = vmatpush1.bf16.msra.mxu0 %v421
      %441 = vmatprep.subr.bf16.mxu0 0
      %442 = vmatpush1.bf16.msra.mxu0 %v420
      %443 = vmatprep.subr.bf16.mxu0 0
      %444 = vmatpush1.bf16.msra.mxu0 %v419
      %445 = vmatprep.subr.bf16.mxu0 0
      %446 = vmatpush1.bf16.msra.mxu0 %v418
      %447 = vmatprep.subr.bf16.mxu0 0
      %448 = vmatpush1.bf16.msra.mxu0 %v417
      %449 = vmatprep.subr.bf16.mxu0 0
      %450 = vmatpush2.bf16.msra.mxu0 0
      %451 = vmatprep.subr.bf16.mxu0 0
      %452 = vmatpush2.bf16.msra.mxu0 0
      %453 = vmatprep.subr.bf16.mxu0 0
      %454 = vmatpush2.bf16.msra.mxu0 0
      %455 = vmatprep.subr.bf16.mxu0 0
      %456 = vmatpush2.bf16.msra.mxu0 0
      %457 = vmatprep.subr.bf16.mxu0 0
      %458 = vmatpush2.bf16.msra.mxu0 0
      %459 = vmatprep.subr.bf16.mxu0 0
      %460 = vmatpush2.bf16.msra.mxu0 0
      %461 = vmatprep.subr.bf16.mxu0 0
      %462 = vmatpush2.bf16.msra.mxu0 0
      %463 = vmatprep.subr.bf16.mxu0 0
      %464 = vmatpush2.bf16.msra.mxu0 0
      %465 = vmatprep.mubr.bf16.mxu0 0
      %466 = vmatmul.mubr.bf16.gmra.mxu0 %v383
      %v467 = vpop.f32.mrf.mxu0
      %v468 = vadd.f32 0.0, %v467
      %v469 = vpop.f32.mrf.mxu0
      %v470 = vpop.f32.mrf.mxu0
      %v471 = vpop.f32.mrf.mxu0
      %472 = vdwg.mxu0
      %v473 = vadd.f32 %v357, %v468
      %v474 = vld [vmem:[%s134] sm:$0x6]
      %s475 = scalar_lea.vmem %s1, 192
      %v476 = vld [vmem:[%s475] sm:$0xf]
      %v477 = vld [vmem:[%s475 + $0x4] sm:$0xf]
      %v478 = vld [vmem:[%s475 + $0x8] sm:$0xf]
      %v479 = vld [vmem:[%s475 + $0xc] sm:$0xf]
      %v480 = vld [vmem:[%s475 + $0x10] sm:$0xf]
      %v481 = vld [vmem:[%s475 + $0x14] sm:$0xf]
      %v482 = vld [vmem:[%s475 + $0x18] sm:$0xf]
      %v483 = vld [vmem:[%s475 + $0x1c] sm:$0xf]
      %v484 = vld [vmem:[%s475 + $0x20] sm:$0xf]
      %v485 = vld [vmem:[%s475 + $0x24] sm:$0xf]
      %v486 = vld [vmem:[%s475 + $0x28] sm:$0xf]
      %v487 = vld [vmem:[%s475 + $0x2c] sm:$0xf]
      %v488 = vld [vmem:[%s475 + $0x30] sm:$0xf]
      %v489 = vld [vmem:[%s475 + $0x34] sm:$0xf]
      %v490 = vld [vmem:[%s475 + $0x38] sm:$0xf]
      %v491 = vld [vmem:[%s475 + $0x3c] sm:$0xf]
      %v493 = vunpack.c.l.b16 %v474
      %v494 = vpack.c.b16 %v493, %v493
      %v496 = vshrl.u32 %v494, 16
      %v498 = vrot.slane %v496, 1
      %v499 = vshll.u32 %v494, 16
      %v501 = vrot.slane %v499, 2
      %v502 = vor.u32 %v498, %v501
      %v520 = vunpack.c.l.b16 %v476
      %v521 = vunpack.c.l.b16 %v477
      %v522 = vunpack.c.l.b16 %v478
      %v523 = vunpack.c.l.b16 %v479
      %v524 = vunpack.c.l.b16 %v480
      %v525 = vunpack.c.l.b16 %v481
      %v526 = vunpack.c.l.b16 %v482
      %v527 = vunpack.c.l.b16 %v483
      %v528 = vunpack.c.l.b16 %v484
      %v529 = vunpack.c.l.b16 %v485
      %v530 = vunpack.c.l.b16 %v486
      %v531 = vunpack.c.l.b16 %v487
      %v532 = vunpack.c.l.b16 %v488
      %v533 = vunpack.c.l.b16 %v489
      %v534 = vunpack.c.l.b16 %v490
      %v535 = vunpack.c.l.b16 %v491
      %v536 = vpack.c.b16 %v521, %v520
      %v537 = vpack.c.b16 %v523, %v522
      %v538 = vpack.c.b16 %v525, %v524
      %v539 = vpack.c.b16 %v527, %v526
      %v540 = vpack.c.b16 %v529, %v528
      %v541 = vpack.c.b16 %v531, %v530
      %v542 = vpack.c.b16 %v533, %v532
      %v543 = vpack.c.b16 %v535, %v534
      %552 = vmatprep.subr.bf16.mxu0 0
      %553 = vmatpush1.bf16.msra.mxu0 %v543
      %554 = vmatprep.subr.bf16.mxu0 0
      %555 = vmatpush1.bf16.msra.mxu0 %v542
      %556 = vmatprep.subr.bf16.mxu0 0
      %557 = vmatpush1.bf16.msra.mxu0 %v541
      %558 = vmatprep.subr.bf16.mxu0 0
      %559 = vmatpush1.bf16.msra.mxu0 %v540
      %560 = vmatprep.subr.bf16.mxu0 0
      %561 = vmatpush1.bf16.msra.mxu0 %v539
      %562 = vmatprep.subr.bf16.mxu0 0
      %563 = vmatpush1.bf16.msra.mxu0 %v538
      %564 = vmatprep.subr.bf16.mxu0 0
      %565 = vmatpush1.bf16.msra.mxu0 %v537
      %566 = vmatprep.subr.bf16.mxu0 0
      %567 = vmatpush1.bf16.msra.mxu0 %v536
      %568 = vmatprep.subr.bf16.mxu0 0
      %569 = vmatpush2.bf16.msra.mxu0 0
      %570 = vmatprep.subr.bf16.mxu0 0
      %571 = vmatpush2.bf16.msra.mxu0 0
      %572 = vmatprep.subr.bf16.mxu0 0
      %573 = vmatpush2.bf16.msra.mxu0 0
      %574 = vmatprep.subr.bf16.mxu0 0
      %575 = vmatpush2.bf16.msra.mxu0 0
      %576 = vmatprep.subr.bf16.mxu0 0
      %577 = vmatpush2.bf16.msra.mxu0 0
      %578 = vmatprep.subr.bf16.mxu0 0
      %579 = vmatpush2.bf16.msra.mxu0 0
      %580 = vmatprep.subr.bf16.mxu0 0
      %581 = vmatpush2.bf16.msra.mxu0 0
      %582 = vmatprep.subr.bf16.mxu0 0
      %583 = vmatpush2.bf16.msra.mxu0 0
      %584 = vmatprep.mubr.bf16.mxu0 0
      %585 = vmatmul.mubr.bf16.gmra.mxu0 %v502
      %v586 = vpop.f32.mrf.mxu0
      %v587 = vadd.f32 0.0, %v586
      %v588 = vpop.f32.mrf.mxu0
      %v589 = vpop.f32.mrf.mxu0
      %v590 = vpop.f32.mrf.mxu0
      %591 = vdwg.mxu0
      %v592 = vadd.f32 %v473, %v587
      %v593 = vsub.f32 0.0, %v592
      %v594 = vmul.f32 %v593, 1.442695
      %v595 = vpow.pop %v594
      %v596 = vadd.f32 %v595, 1.0
      %v597 = vrcp.pop %v596
      %v598 = vmul.f32 1.0, %v597
      %599 = vst [vmem:[%s138] sm:$0x3] %v598
      %p600 = scmp.lt.s32.totalorder %s13, 1
      %s601 = scalar_select %p600, %s13, 1
      %s602 = smul.addr %s601, 2
      %s603 = scalar_lea.vmem %s2, %s602
      // Predicated region
      $region29: #{dcgan_discriminator_forward.9} parent=27 // pred_check
        %p604 = pneg %p78
      $region30: #{dcgan_discriminator_forward.9} parent=27 // pred_check_branch
        %606 = sbr.rel (%p604) target = $region32
      $region31: #{dcgan_discriminator_forward.9} parent=27 // pred_region
        _
      $region32: #{dcgan_discriminator_forward.9} parent=27 // pred_fallthru
        _
    $region28: #{dcgan_discriminator_forward.9} parent=5 // pred_fallthru
      _
    %p607 = scmp.le.s32.totalorder 2, %s8
    // Predicated region
    $region33: #{dcgan_discriminator_forward.9} parent=5 // pred_check
      %p608 = pneg %p607
    $region34: #{dcgan_discriminator_forward.9} parent=5 // pred_check_branch
      %610 = sbr.rel (%p608) target = $region36
    $region35: #{dcgan_discriminator_forward.9} parent=5 // pred_region
      %s611 = ssub.s32 %s8, 2
      // Predicated region
      $region37: #{dcgan_discriminator_forward.9} parent=35 // pred_check
        %p612 = pneg %p84
      $region38: #{dcgan_discriminator_forward.9} parent=35 // pred_check_branch
        %614 = sbr.rel (%p612) target = $region40
      $region39: #{dcgan_discriminator_forward.9} parent=35 // pred_region
        %p615 = scmp.lt.s32.totalorder %s14, 1
        %s616 = scalar_select %p615, %s14, 1
        %s617 = smul.addr %s616, 2
        %s618 = scalar_lea.vmem %s2, %s617
      $region40: #{dcgan_discriminator_forward.9} parent=35 // pred_fallthru
        _
    $region36: #{dcgan_discriminator_forward.9} parent=5 // pred_fallthru
      _
  $region6: #{dcgan_discriminator_forward.9} parent=0 // loop_footer
    %s12 = sadd.s32 1, %s8
  $region7: #{dcgan_discriminator_forward.9} parent=0 // loop_footer_branch
    %7 = sbr.rel target = $region3
  $region8: #{dcgan_discriminator_forward.9} parent=0 // loop_exit
    _

</llo_original>
